<compile_context>
chip_gen: v7x
topology: tpu7x:2x2x1
jax: 0.10.0
libtpu: 0.0.40
codegen_flags: <defaults>
</compile_context>

<pallas_src>
import jax
import jax.numpy as jnp
from jax.experimental import pallas as pl
from jax.experimental.pallas import tpu as pltpu

HIDDEN = 768


def _round_up(x, m):
    return ((x + m - 1) // m) * m


def highway_kernel(t_ref, w_ref, b_ref, o_ref):
    # t_ref: (tm, 768) activations; w_ref: (768, 1536) fused [Wp | Wgate];
    # b_ref: (1, 1536) fused [bp | bgate]; o_ref: (tm, 768).
    t = t_ref[...]                                   # residual path (f32)
    w = w_ref[...]

    # Single fused MXU pass over both projections, f32 accumulation.
    x = jnp.dot(t.astype(w.dtype), w, preferred_element_type=jnp.float32)
    x = x + b_ref[...]

    # 768 is a multiple of 128, so these lane slices are free.
    xp = jnp.maximum(x[:, :HIDDEN], 0.0)             # ReLU   (VPU)
    xg = jax.nn.sigmoid(x[:, HIDDEN:])               # Sigmoid (EUP)

    # Xhighway = g*Xp + T - g*T  ==  g*(Xp - T) + T   (one fewer multiply)
    o_ref[...] = (xg * (xp - t) + t).astype(o_ref.dtype)


def highway_layer(t, wp, bp, wg, bg, *, tm=256, matmul_dtype=None):
    """Highway layer forward.

    t: (rows, 768); wp/wg: (768, 768); bp/bg: (768,).
    tm: requested row tile (multiple of 8; shrunk adaptively for small inputs
        so the grid keeps >= 2 steps where possible, which matters on v7x's
        2 TensorCores).
    matmul_dtype: optional MXU operand dtype (e.g. jnp.bfloat16 on v6e/v7x);
        accumulation and all elementwise / gating math remain f32.
    """
    rows, hidden = t.shape
    assert hidden == HIDDEN

    # Fuse the two projections: one (768, 1536) weight and one (1, 1536) bias.
    w = jnp.concatenate([wp, wg], axis=1)
    if matmul_dtype is not None:
        w = w.astype(matmul_dtype)
    b = jnp.concatenate([bp.reshape(-1), bg.reshape(-1)]).reshape(1, 2 * HIDDEN)
    b = b.astype(jnp.float32)

    # Adaptive row tile: multiple of 8 sublanes, no bigger than needed, and
    # capped so the grid has >= 2 steps when the row count allows it.
    tm = _round_up(max(8, tm), 8)
    tm_cap = _round_up(max(8, pl.cdiv(rows, 2)), 8)
    tm = min(tm, tm_cap)

    # Pad rows to a multiple of the tile (one partial tile instead of forcing
    # a tiny always-legal tile).
    padded_rows = _round_up(rows, tm)
    t_in = t if padded_rows == rows else jnp.pad(t, ((0, padded_rows - rows), (0, 0)))

    grid = (padded_rows // tm,)
    out = pl.pallas_call(
        highway_kernel,
        out_shape=jax.ShapeDtypeStruct((padded_rows, HIDDEN), t.dtype),
        grid_spec=pltpu.PrefetchScalarGridSpec(
            num_scalar_prefetch=0,
            grid=grid,
            in_specs=[
                pl.BlockSpec((tm, HIDDEN), lambda i: (i, 0)),          # T tile
                pl.BlockSpec((HIDDEN, 2 * HIDDEN), lambda i: (0, 0)),  # fused W
                pl.BlockSpec((1, 2 * HIDDEN), lambda i: (0, 0)),       # fused b
            ],
            out_specs=pl.BlockSpec((tm, HIDDEN), lambda i: (i, 0)),
        ),
        compiler_params=pltpu.CompilerParams(
            dimension_semantics=("parallel",),
        ),
    )(t_in, w, b)

    return out[:rows] if padded_rows != rows else out


def highway_ref(t, wp, bp, wg, bg):
    xp = jnp.maximum(t @ wp + bp, 0.0)
    xg = jax.nn.sigmoid(t @ wg + bg)
    return xg * xp + t - xg * t


if __name__ == "__main__":
    key = jax.random.PRNGKey(0)
    k_t, k_wp, k_bp, k_wg, k_bg = jax.random.split(key, 5)

    batch, seq = 2, 8                 # small example shapes; hidden fixed at 768
    T = jax.random.normal(k_t, (batch, seq, HIDDEN), dtype=jnp.float32)

    # Deterministic parameter init matching the PyTorch module's shapes:
    #   Wp, Wgate: xavier-normal (768, 768); bp, bgate: uniform(-0.8, 0.8) (768,)
    xavier_std = (2.0 / (HIDDEN + HIDDEN)) ** 0.5
    Wp = jax.random.normal(k_wp, (HIDDEN, HIDDEN), dtype=jnp.float32) * xavier_std
    Wgate = jax.random.normal(k_wg, (HIDDEN, HIDDEN), dtype=jnp.float32) * xavier_std
    bp = jax.random.uniform(k_bp, (HIDDEN,), minval=-0.8, maxval=0.8,
                            dtype=jnp.float32)
    bgate = jax.random.uniform(k_bg, (HIDDEN,), minval=-0.8, maxval=0.8,
                               dtype=jnp.float32)

    # Flatten leading dims for the kernel ([B, S, H] -> [B*S, H]) and restore.
    t2d = T.reshape(-1, HIDDEN)
    ref2d = highway_ref(t2d, Wp, bp, Wgate, bgate)

    # f32 operands: exact module semantics.
    out2d = highway_layer(t2d, Wp, bp, Wgate, bgate, tm=256)
    out2d = jax.block_until_ready(out2d)
    assert jnp.allclose(out2d, ref2d, atol=1e-4, rtol=1e-4), "f32 mismatch vs reference"

    # bf16 MXU operands (v6e/v7x fast path), f32 accumulation + f32 gating.
    out2d_bf16 = highway_layer(t2d, Wp, bp, Wgate, bgate, tm=256,
                               matmul_dtype=jnp.bfloat16)
    out2d_bf16 = jax.block_until_ready(out2d_bf16)
    assert jnp.allclose(out2d_bf16, ref2d, atol=5e-2, rtol=5e-2), "bf16 mismatch vs reference"

    out = out2d.reshape(batch, seq, HIDDEN)
    print("KERNEL_OK")
</pallas_src>

<mosaic_0001>
module attributes {stable_mosaic.version = 11 : i64} {
  func.func @highway_kernel(%arg0: i32, %arg1: memref<8x768xf32, #tpu.memory_space<vmem>>, %arg2: memref<768x1536xf32, #tpu.memory_space<vmem>>, %arg3: memref<1x1536xf32, #tpu.memory_space<vmem>>, %arg4: memref<8x768xf32, #tpu.memory_space<vmem>>) attributes {dimension_semantics = [#tpu.dimension_semantics<parallel>], iteration_bounds = array<i64: 2>, scalar_prefetch = 0 : i64, scratch_operands = 0 : i64, tpu.core_type = #tpu.core_type<tc>, window_params = [{transform_indices = @transform_0, window_bounds = array<i64: 8, 768>}, {pipeline_mode = #tpu.pipeline_mode<synchronous>, transform_indices = @transform_1, window_bounds = array<i64: 768, 1536>}, {pipeline_mode = #tpu.pipeline_mode<synchronous>, transform_indices = @transform_2, window_bounds = array<i64: 1, 1536>}, {transform_indices = @transform_3, window_bounds = array<i64: 8, 768>}]} {
    %c0 = arith.constant 0 : index
    %c0_0 = arith.constant 0 : index
    %0 = vector.load %arg1[%c0, %c0_0] : memref<8x768xf32, #tpu.memory_space<vmem>>, vector<8x768xf32>
    %c0_1 = arith.constant 0 : index
    %c0_2 = arith.constant 0 : index
    %1 = vector.load %arg2[%c0_1, %c0_2] : memref<768x1536xf32, #tpu.memory_space<vmem>>, vector<768x1536xf32>
    %cst = arith.constant dense<0.000000e+00> : vector<8x1536xf32>
    %2 = tpu.matmul %0, %1, %cst {dimension_numbers = #tpu.dot_dimension_numbers<[1], [0], [0], [1], [0, 0, 1, 1], [], []>} : vector<8x768xf32>, vector<768x1536xf32>, vector<8x1536xf32> -> vector<8x1536xf32>
    %c0_3 = arith.constant 0 : index
    %c0_4 = arith.constant 0 : index
    %3 = vector.load %arg3[%c0_3, %c0_4] : memref<1x1536xf32, #tpu.memory_space<vmem>>, vector<1x1536xf32>
    %4 = vector.broadcast %3 : vector<1x1536xf32> to vector<8x1536xf32>
    %5 = arith.addf %2, %4 : vector<8x1536xf32>
    %6 = vector.extract_strided_slice %5 {offsets = [0, 0], sizes = [8, 768], strides = [1, 1]} : vector<8x1536xf32> to vector<8x768xf32>
    %cst_5 = arith.constant 0.000000e+00 : f32
    %7 = vector.broadcast %cst_5 : f32 to vector<8x768xf32>
    %8 = arith.maximumf %6, %7 : vector<8x768xf32>
    %9 = vector.extract_strided_slice %5 {offsets = [0, 768], sizes = [8, 768], strides = [1, 1]} : vector<8x1536xf32> to vector<8x768xf32>
    %10 = arith.negf %9 : vector<8x768xf32>
    %11 = math.exp %10 : vector<8x768xf32>
    %cst_6 = arith.constant 1.000000e+00 : f32
    %12 = vector.broadcast %cst_6 : f32 to vector<8x768xf32>
    %13 = arith.addf %12, %11 : vector<8x768xf32>
    %14 = arith.divf %12, %13 : vector<8x768xf32>
    %15 = arith.subf %8, %0 : vector<8x768xf32>
    %16 = arith.mulf %14, %15 : vector<8x768xf32>
    %17 = arith.addf %16, %0 : vector<8x768xf32>
    %c0_7 = arith.constant 0 : index
    %c0_8 = arith.constant 0 : index
    %18 = vector.load %arg4[%c0_7, %c0_8] : memref<8x768xf32, #tpu.memory_space<vmem>>, vector<8x768xf32>
    tpu.vector_store %arg4[%c0_7, %c0_8], %17 {strides = array<i32>} : memref<8x768xf32, #tpu.memory_space<vmem>>, vector<8x768xf32>,
    return
  }
  func.func @transform_0(%arg0: i32) -> (i32, i32) {
    %c0_i32 = arith.constant 0 : i32
    %c0_i32_0 = arith.constant 0 : i32
    return %arg0, %c0_i32 : i32, i32
  }
  func.func @transform_1(%arg0: i32) -> (i32, i32) {
    %c0_i32 = arith.constant 0 : i32
    %c0_i32_0 = arith.constant 0 : i32
    %c0_i32_1 = arith.constant 0 : i32
    return %c0_i32, %c0_i32_0 : i32, i32
  }
  func.func @transform_2(%arg0: i32) -> (i32, i32) {
    %c0_i32 = arith.constant 0 : i32
    %c0_i32_0 = arith.constant 0 : i32
    %c0_i32_1 = arith.constant 0 : i32
    return %c0_i32, %c0_i32_0 : i32, i32
  }
  func.func @transform_3(%arg0: i32) -> (i32, i32) {
    %c0_i32 = arith.constant 0 : i32
    %c0_i32_0 = arith.constant 0 : i32
    return %arg0, %c0_i32 : i32, i32
  }
}

</mosaic_0001>

<llo_original>
// kernel: tpu_custom_call.1
$region0: #{tpu_custom_call.1}
  #allocation0 [shape = 'u32[]', space=smem, size = 0x4, offset = 0x4, fixed_abs, tag = 'smem constant byte address 0x4 - core index']
  #allocation1 [shape = 'u32[144,128]{1,0:T(1,128)}', space=vmem, size = 0x12000, scoped, tag = 'internal scratch']
  %s0 = inlined_call_operand.hbm [shape: f32[16,768], index: 0, kind: input, shape index: {}]
  %s1 = inlined_call_operand.hbm [shape: f32[768,1536], index: 1, kind: input, shape index: {}]
  %s2 = inlined_call_operand.hbm [shape: f32[1,1536], index: 2, kind: input, shape index: {}]
  %s3 = inlined_call_operand.hbm [shape: f32[16,768], index: 3, kind: output, shape index: {}]
  %s4 = sld [smem:[#allocation0]]
  $region57: #{tpu_custom_call.1} parent=0
    _
  %s6 = ssub.s32 1, %s4
  %s7 = scalar_select 0, %s6, %s4
  $region1: #{tpu_custom_call.1} parent=0
    #allocation2 [shape = 'u8[49152]{0}', space=vmem, size = 0xc000, scoped, tag = 'input window, operand 0']
    #allocation3 [shape = 's32[2]{0}', space=sflag, size = 0x8, scoped, tag = 'scoped memory for tpu_custom_call.1']
    #allocation4 [shape = 's32[2]{0}', space=sflag, size = 0x8, scoped, tag = 'scoped memory for tpu_custom_call.1']
    #allocation5 [shape = 'u8[4718592]{0}', space=vmem, size = 0x480000, scoped, tag = 'input window, operand 1, single buffered']
    #allocation6 [shape = 's32[1]{0}', space=sflag, size = 0x4, scoped, tag = 'scoped memory for tpu_custom_call.1']
    #allocation7 [shape = 'u8[6144]{0}', space=vmem, size = 0x1800, scoped, tag = 'input window, operand 2, single buffered']
    #allocation8 [shape = 'u8[49152]{0}', space=vmem, size = 0xc000, scoped, tag = 'output window, operand 0']
    %8 = vsyncpa [#allocation3], 0
    %s9 = scalar_lea.sflag [#allocation3], 1
    %10 = vsyncpa %s9, 0
    %11 = vsyncpa [#allocation6], 0
    %12 = vsyncpa [#allocation4], 0
    %s13 = scalar_lea.sflag [#allocation4], 1
    %14 = vsyncpa %s13, 0
    loop: start=0, step=1, limit=4
    $region2: #{tpu_custom_call.1} parent=1 // loop_pre_header
      _
    $region3: #{tpu_custom_call.1} parent=1 // loop_header
      %s16 = sphi 0, %s20
      %p17 = scmp.ge.s32.totalorder %s16, 4
      %s26 = sphi 0, %s28
      %s29 = sphi 0, %s26
      %s30 = sphi 0, %s29
      %s46 = sphi 0, %s30
      %s50 = sphi 0, %s50
      %s52 = sphi 0, %s50
      %s53 = sphi 0, %s52
      %s67 = sphi 0, %s53
      %s71 = sphi 0, %s71
      %s73 = sphi 0, %s71
      %s74 = sphi 0, %s73
      %s88 = sphi 0, %s74
      %s94 = sphi 0, %s96
      %s97 = sphi 0, %s94
      %s98 = sphi 0, %s97
      %s114 = sphi 0, %s98
    $region4: #{tpu_custom_call.1} parent=1 // loop_header_branch
      %19 = sbr.rel (%p17) target = $region8
    $region5: #{tpu_custom_call.1} parent=1 // loop_body
      %s21 = ssub.s32 %s16, 1
      %s22 = ssub.s32 %s16, 2
      %s23 = sadd.s32 %s16, 1
      %s24 = ssub.s32 %s16, %s23
      %p25 = scmp.eq.s32.totalorder %s24, 0
      %s27 = sadd.s32 %s26, 1
      %s28 = scalar_select %p25, %s26, %s27
      %p31 = pneg %p25
      %p32 = scmp.eq.s32.totalorder %s16, 1
      %p33 = por %p31, %p32
      %p34 = scmp.ne.s32.totalorder %s26, %s29
      %p35 = scmp.eq.s32.totalorder %s16, 0
      %p36 = por %p34, %p35
      %p37 = scmp.ne.s32.totalorder %s26, %s29
      %p38 = scmp.eq.s32.totalorder %s21, 1
      %p39 = por %p37, %p38
      %p40 = scmp.ne.s32.totalorder %s29, %s30
      %p41 = scmp.eq.s32.totalorder %s21, 0
      %p42 = por %p40, %p41
      %p43 = scmp.ne.s32.totalorder %s29, %s30
      %p44 = scmp.eq.s32.totalorder %s22, 1
      %p45 = por %p43, %p44
      %p47 = scmp.ne.s32.totalorder %s30, %s46
      %p48 = scmp.eq.s32.totalorder %s22, 0
      %p49 = por %p47, %p48
      %s51 = sadd.s32 %s50, 1
      %p54 = scmp.eq.s32.totalorder %s16, 1
      %p55 = scmp.ne.s32.totalorder %s50, %s52
      %p56 = scmp.eq.s32.totalorder %s16, 0
      %p57 = por %p55, %p56
      %p58 = scmp.ne.s32.totalorder %s50, %s52
      %p59 = scmp.eq.s32.totalorder %s21, 1
      %p60 = por %p58, %p59
      %p61 = scmp.ne.s32.totalorder %s52, %s53
      %p62 = scmp.eq.s32.totalorder %s21, 0
      %p63 = por %p61, %p62
      %p64 = scmp.ne.s32.totalorder %s52, %s53
      %p65 = scmp.eq.s32.totalorder %s22, 1
      %p66 = por %p64, %p65
      %p68 = scmp.ne.s32.totalorder %s53, %s67
      %p69 = scmp.eq.s32.totalorder %s22, 0
      %p70 = por %p68, %p69
      %s72 = sadd.s32 %s71, 1
      %p75 = scmp.eq.s32.totalorder %s16, 1
      %p76 = scmp.ne.s32.totalorder %s71, %s73
      %p77 = scmp.eq.s32.totalorder %s16, 0
      %p78 = por %p76, %p77
      %p79 = scmp.ne.s32.totalorder %s71, %s73
      %p80 = scmp.eq.s32.totalorder %s21, 1
      %p81 = por %p79, %p80
      %p82 = scmp.ne.s32.totalorder %s73, %s74
      %p83 = scmp.eq.s32.totalorder %s21, 0
      %p84 = por %p82, %p83
      %p85 = scmp.ne.s32.totalorder %s73, %s74
      %p86 = scmp.eq.s32.totalorder %s22, 1
      %p87 = por %p85, %p86
      %p89 = scmp.ne.s32.totalorder %s74, %s88
      %p90 = scmp.eq.s32.totalorder %s22, 0
      %p91 = por %p89, %p90
      %s92 = ssub.s32 %s16, %s23
      %p93 = scmp.eq.s32.totalorder %s92, 0
      %s95 = sadd.s32 %s94, 1
      %s96 = scalar_select %p93, %s94, %s95
      %p99 = pneg %p93
      %p100 = scmp.eq.s32.totalorder %s16, 1
      %p101 = por %p99, %p100
      %p102 = scmp.ne.s32.totalorder %s94, %s97
      %p103 = scmp.eq.s32.totalorder %s16, 0
      %p104 = por %p102, %p103
      %p105 = scmp.ne.s32.totalorder %s94, %s97
      %p106 = scmp.eq.s32.totalorder %s21, 1
      %p107 = por %p105, %p106
      %p108 = scmp.ne.s32.totalorder %s97, %s98
      %p109 = scmp.eq.s32.totalorder %s21, 0
      %p110 = por %p108, %p109
      %p111 = scmp.ne.s32.totalorder %s97, %s98
      %p112 = scmp.eq.s32.totalorder %s22, 1
      %p113 = por %p111, %p112
      %p115 = scmp.ne.s32.totalorder %s98, %s114
      %p116 = scmp.eq.s32.totalorder %s22, 0
      %p117 = por %p115, %p116
      %p118 = scmp.le.s32.totalorder 1, %s16
      %p119 = scmp.lt.s32.totalorder %s16, 3
      %p120 = pnand %p118, %p119
      %p121 = pneg %p120
      // Predicated region
      $region9: #{tpu_custom_call.1} parent=5 // pred_check
        _
      $region10: #{tpu_custom_call.1} parent=5 // pred_check_branch
        %123 = sbr.rel (%p120) target = $region12
      $region11: #{tpu_custom_call.1} parent=5 // pred_region
        %s124 = ssub.s32 %s16, 1
        // Predicated region
        $region13: #{tpu_custom_call.1} parent=11 // pred_check
          %p125 = pneg %p63
        $region14: #{tpu_custom_call.1} parent=11 // pred_check_branch
          %127 = sbr.rel (%p125) target = $region16
        $region15: #{tpu_custom_call.1} parent=11 // pred_region
          %s129 = ssub.s32 147456, 147456
          %130 = vsyncadd [#allocation6], %s129
          %s131 = sshll.u32 [#allocation5], 4
          %s132 = int_to_ptr.vmem [resolvable:$true] %s131
          %137 = dma.hbm_to_vmem [thread:$0]  %s1, 147456, %s132, [#allocation6], 1536, 1536, 96
        $region16: #{tpu_custom_call.1} parent=11 // pred_fallthru
          _
        // Predicated region
        $region17: #{tpu_custom_call.1} parent=11 // pred_check
          %p138 = pneg %p84
        $region18: #{tpu_custom_call.1} parent=11 // pred_check_branch
          %140 = sbr.rel (%p138) target = $region20
        $region19: #{tpu_custom_call.1} parent=11 // pred_region
          %s142 = ssub.s32 192, 192
          %143 = vsyncadd [#allocation6], %s142
          %s145 = sshll.u32 [#allocation7], 4
          %s146 = int_to_ptr.vmem [resolvable:$true] %s145
          %148 = dma.hbm_to_vmem [thread:$0]  %s2, 192, %s146, [#allocation6]
        $region20: #{tpu_custom_call.1} parent=11 // pred_fallthru
          _
      $region12: #{tpu_custom_call.1} parent=5 // pred_fallthru
        _
      %p149 = scmp.lt.s32.totalorder %s16, 2
      // Predicated region
      $region21: #{tpu_custom_call.1} parent=5 // pred_check
        %p150 = pneg %p149
      $region22: #{tpu_custom_call.1} parent=5 // pred_check_branch
        %152 = sbr.rel (%p150) target = $region24
      $region23: #{tpu_custom_call.1} parent=5 // pred_region
        // Predicated region
        $region25: #{tpu_custom_call.1} parent=23 // pred_check
          %p153 = pneg %p36
        $region26: #{tpu_custom_call.1} parent=23 // pred_check_branch
          %155 = sbr.rel (%p153) target = $region28
        $region27: #{tpu_custom_call.1} parent=23 // pred_region
          %s156 = sand.u32 %s26, 1
          %s157 = scalar_lea.sflag [#allocation3], %s156
          %s158 = sand.u32 %s26, 1
          %s159 = smul.addr %s158, 48
          %s160 = scalar_lea.vmem [#allocation2], %s159
          %s162 = ssub.s32 768, 768
          %163 = vsyncadd %s157, %s162
          %s164 = smul.addr %s16, 6
          %s165 = smul.addr %s164, 128
          %s166 = scalar_lea.hbm %s0, %s165
          %s168 = sshll.u32 %s160, 4
          %s169 = int_to_ptr.vmem [resolvable:$true] %s168
          %171 = dma.hbm_to_vmem [thread:$0]  %s166, 768, %s169, %s157
        $region28: #{tpu_custom_call.1} parent=23 // pred_fallthru
          _
      $region24: #{tpu_custom_call.1} parent=5 // pred_fallthru
        _
      %p172 = scmp.le.s32.totalorder 1, %s16
      %p173 = scmp.lt.s32.totalorder %s16, 3
      %p174 = pnand %p172, %p173
      %p175 = pneg %p174
      // Predicated region
      $region29: #{tpu_custom_call.1} parent=5 // pred_check
        _
      $region30: #{tpu_custom_call.1} parent=5 // pred_check_branch
        %177 = sbr.rel (%p174) target = $region32
      $region31: #{tpu_custom_call.1} parent=5 // pred_region
        %s178 = ssub.s32 %s16, 1
        %s179 = sand.u32 %s29, 1
        %s180 = scalar_lea.sflag [#allocation3], %s179
        %s181 = sand.u32 %s29, 1
        %s182 = smul.addr %s181, 48
        %s183 = scalar_lea.vmem [#allocation2], %s182
        // Predicated region
        $region33: #{tpu_custom_call.1} parent=31 // pred_check
          %p184 = pneg %p42
        $region34: #{tpu_custom_call.1} parent=31 // pred_check_branch
          %186 = sbr.rel (%p184) target = $region36
        $region35: #{tpu_custom_call.1} parent=31 // pred_region
          %187 = dma.done %s180, 768
        $region36: #{tpu_custom_call.1} parent=31 // pred_fallthru
          _
        // Predicated region
        $region37: #{tpu_custom_call.1} parent=31 // pred_check
          %p188 = pneg %p63
        $region38: #{tpu_custom_call.1} parent=31 // pred_check_branch
          %190 = sbr.rel (%p188) target = $region40
        $region39: #{tpu_custom_call.1} parent=31 // pred_region
          %191 = dma.done [#allocation6], 147456
        $region40: #{tpu_custom_call.1} parent=31 // pred_fallthru
          _
        // Predicated region
        $region41: #{tpu_custom_call.1} parent=31 // pred_check
          %p192 = pneg %p84
        $region42: #{tpu_custom_call.1} parent=31 // pred_check_branch
          %194 = sbr.rel (%p192) target = $region44
        $region43: #{tpu_custom_call.1} parent=31 // pred_region
          %195 = dma.done [#allocation6], 192
        $region44: #{tpu_custom_call.1} parent=31 // pred_fallthru
          _
        %s196 = sand.u32 %s29, 1
        %s197 = scalar_lea.sflag [#allocation3], %s196
        %s198 = sand.u32 %s29, 1
        %s199 = smul.addr %s198, 48
        %s200 = scalar_lea.vmem [#allocation2], %s199
        %p201 = pneg %p42
        %p202 = pneg %p39
        %p203 = pneg %p63
        %p204 = pneg %p60
        %p205 = pneg %p84
        %p206 = pneg %p81
        %p207 = pneg %p110
        %p208 = pneg %p107
        %s209 = sand.u32 %s97, 1
        %s210 = scalar_lea.sflag [#allocation4], %s209
        %s211 = sand.u32 %s97, 1
        %s212 = smul.addr %s211, 48
        %s213 = scalar_lea.vmem [#allocation8], %s212
        %v214 = vld [vmem:[%s183] sm:$0xff]
        %v215 = vld [vmem:[%s183 + $0x8] sm:$0xff]
        %v216 = vld [vmem:[%s183 + $0x10] sm:$0xff]
        %v217 = vld [vmem:[%s183 + $0x18] sm:$0xff]
        %v218 = vld [vmem:[%s183 + $0x20] sm:$0xff]
        %v219 = vld [vmem:[%s183 + $0x28] sm:$0xff]
        %v220 = vld [vmem:[#allocation5] sm:$0xff]
        %v221 = vld [vmem:[#allocation5 + $0x8] sm:$0xff]
        %v222 = vld [vmem:[#allocation5 + $0x10] sm:$0xff]
        %v223 = vld [vmem:[#allocation5 + $0x18] sm:$0xff]
        %v224 = vld [vmem:[#allocation5 + $0x20] sm:$0xff]
        %v225 = vld [vmem:[#allocation5 + $0x28] sm:$0xff]
        %v226 = vld [vmem:[#allocation5 + $0x30] sm:$0xff]
        %v227 = vld [vmem:[#allocation5 + $0x38] sm:$0xff]
        %v228 = vld [vmem:[#allocation5 + $0x40] sm:$0xff]
        %v229 = vld [vmem:[#allocation5 + $0x48] sm:$0xff]
        %v230 = vld [vmem:[#allocation5 + $0x50] sm:$0xff]
        %v231 = vld [vmem:[#allocation5 + $0x58] sm:$0xff]
        %v232 = vld [vmem:[#allocation5 + $0x60] sm:$0xff]
        %v233 = vld [vmem:[#allocation5 + $0x68] sm:$0xff]
        %v234 = vld [vmem:[#allocation5 + $0x70] sm:$0xff]
        %v235 = vld [vmem:[#allocation5 + $0x78] sm:$0xff]
        %v236 = vld [vmem:[#allocation5 + $0x80] sm:$0xff]
        %v237 = vld [vmem:[#allocation5 + $0x88] sm:$0xff]
        %v238 = vld [vmem:[#allocation5 + $0x90] sm:$0xff]
        %v239 = vld [vmem:[#allocation5 + $0x98] sm:$0xff]
        %v240 = vld [vmem:[#allocation5 + $0xa0] sm:$0xff]
        %v241 = vld [vmem:[#allocation5 + $0xa8] sm:$0xff]
        %v242 = vld [vmem:[#allocation5 + $0xb0] sm:$0xff]
        %v243 = vld [vmem:[#allocation5 + $0xb8] sm:$0xff]
        %v244 = vld [vmem:[#allocation5 + $0xc0] sm:$0xff]
        %v245 = vld [vmem:[#allocation5 + $0xc8] sm:$0xff]
        %v246 = vld [vmem:[#allocation5 + $0xd0] sm:$0xff]
        %v247 = vld [vmem:[#allocation5 + $0xd8] sm:$0xff]
        %v248 = vld [vmem:[#allocation5 + $0xe0] sm:$0xff]
        %v249 = vld [vmem:[#allocation5 + $0xe8] sm:$0xff]
        %v250 = vld [vmem:[#allocation5 + $0xf0] sm:$0xff]
        %v251 = vld [vmem:[#allocation5 + $0xf8] sm:$0xff]
        %v252 = vld [vmem:[#allocation5 + $0x100] sm:$0xff]
        %v253 = vld [vmem:[#allocation5 + $0x108] sm:$0xff]
        %v254 = vld [vmem:[#allocation5 + $0x110] sm:$0xff]
        %v255 = vld [vmem:[#allocation5 + $0x118] sm:$0xff]
        %v256 = vld [vmem:[#allocation5 + $0x120] sm:$0xff]
        %v257 = vld [vmem:[#allocation5 + $0x128] sm:$0xff]
        %v258 = vld [vmem:[#allocation5 + $0x130] sm:$0xff]
        %v259 = vld [vmem:[#allocation5 + $0x138] sm:$0xff]
        %v260 = vld [vmem:[#allocation5 + $0x140] sm:$0xff]
        %v261 = vld [vmem:[#allocation5 + $0x148] sm:$0xff]
        %v262 = vld [vmem:[#allocation5 + $0x150] sm:$0xff]
        %v263 = vld [vmem:[#allocation5 + $0x158] sm:$0xff]
        %v264 = vld [vmem:[#allocation5 + $0x160] sm:$0xff]
        %v265 = vld [vmem:[#allocation5 + $0x168] sm:$0xff]
        %v266 = vld [vmem:[#allocation5 + $0x170] sm:$0xff]
        %v267 = vld [vmem:[#allocation5 + $0x178] sm:$0xff]
        %v268 = vld [vmem:[#allocation5 + $0x180] sm:$0xff]
        %v269 = vld [vmem:[#allocation5 + $0x188] sm:$0xff]
        %v270 = vld [vmem:[#allocation5 + $0x190] sm:$0xff]
        %v271 = vld [vmem:[#allocation5 + $0x198] sm:$0xff]
        %v272 = vld [vmem:[#allocation5 + $0x1a0] sm:$0xff]
        %v273 = vld [vmem:[#allocation5 + $0x1a8] sm:$0xff]
        %v274 = vld [vmem:[#allocation5 + $0x1b0] sm:$0xff]
        %v275 = vld [vmem:[#allocation5 + $0x1b8] sm:$0xff]
        %v276 = vld [vmem:[#allocation5 + $0x1c0] sm:$0xff]
        %v277 = vld [vmem:[#allocation5 + $0x1c8] sm:$0xff]
        %v278 = vld [vmem:[#allocation5 + $0x1d0] sm:$0xff]
        %v279 = vld [vmem:[#allocation5 + $0x1d8] sm:$0xff]
        %v280 = vld [vmem:[#allocation5 + $0x1e0] sm:$0xff]
        %v281 = vld [vmem:[#allocation5 + $0x1e8] sm:$0xff]
        %v282 = vld [vmem:[#allocation5 + $0x1f0] sm:$0xff]
        %v283 = vld [vmem:[#allocation5 + $0x1f8] sm:$0xff]
        %v284 = vld [vmem:[#allocation5 + $0x200] sm:$0xff]
        %v285 = vld [vmem:[#allocation5 + $0x208] sm:$0xff]
        %v286 = vld [vmem:[#allocation5 + $0x210] sm:$0xff]
        %v287 = vld [vmem:[#allocation5 + $0x218] sm:$0xff]
        %v288 = vld [vmem:[#allocation5 + $0x220] sm:$0xff]
        %v289 = vld [vmem:[#allocation5 + $0x228] sm:$0xff]
        %v290 = vld [vmem:[#allocation5 + $0x230] sm:$0xff]
        %v291 = vld [vmem:[#allocation5 + $0x238] sm:$0xff]
        %v292 = vld [vmem:[#allocation5 + $0x240] sm:$0xff]
        %v293 = vld [vmem:[#allocation5 + $0x248] sm:$0xff]
        %v294 = vld [vmem:[#allocation5 + $0x250] sm:$0xff]
        %v295 = vld [vmem:[#allocation5 + $0x258] sm:$0xff]
        %v296 = vld [vmem:[#allocation5 + $0x260] sm:$0xff]
        %v297 = vld [vmem:[#allocation5 + $0x268] sm:$0xff]
        %v298 = vld [vmem:[#allocation5 + $0x270] sm:$0xff]
        %v299 = vld [vmem:[#allocation5 + $0x278] sm:$0xff]
        %v300 = vld [vmem:[#allocation5 + $0x280] sm:$0xff]
        %v301 = vld [vmem:[#allocation5 + $0x288] sm:$0xff]
        %v302 = vld [vmem:[#allocation5 + $0x290] sm:$0xff]
        %v303 = vld [vmem:[#allocation5 + $0x298] sm:$0xff]
        %v304 = vld [vmem:[#allocation5 + $0x2a0] sm:$0xff]
        %v305 = vld [vmem:[#allocation5 + $0x2a8] sm:$0xff]
        %v306 = vld [vmem:[#allocation5 + $0x2b0] sm:$0xff]
        %v307 = vld [vmem:[#allocation5 + $0x2b8] sm:$0xff]
        %v308 = vld [vmem:[#allocation5 + $0x2c0] sm:$0xff]
        %v309 = vld [vmem:[#allocation5 + $0x2c8] sm:$0xff]
        %v310 = vld [vmem:[#allocation5 + $0x2d0] sm:$0xff]
        %v311 = vld [vmem:[#allocation5 + $0x2d8] sm:$0xff]
        %v312 = vld [vmem:[#allocation5 + $0x2e0] sm:$0xff]
        %v313 = vld [vmem:[#allocation5 + $0x2e8] sm:$0xff]
        %v314 = vld [vmem:[#allocation5 + $0x2f0] sm:$0xff]
        %v315 = vld [vmem:[#allocation5 + $0x2f8] sm:$0xff]
        %v316 = vld [vmem:[#allocation5 + $0x300] sm:$0xff]
        %v317 = vld [vmem:[#allocation5 + $0x308] sm:$0xff]
        %v318 = vld [vmem:[#allocation5 + $0x310] sm:$0xff]
        %v319 = vld [vmem:[#allocation5 + $0x318] sm:$0xff]
        %v320 = vld [vmem:[#allocation5 + $0x320] sm:$0xff]
        %v321 = vld [vmem:[#allocation5 + $0x328] sm:$0xff]
        %v322 = vld [vmem:[#allocation5 + $0x330] sm:$0xff]
        %v323 = vld [vmem:[#allocation5 + $0x338] sm:$0xff]
        %v324 = vld [vmem:[#allocation5 + $0x340] sm:$0xff]
        %v325 = vld [vmem:[#allocation5 + $0x348] sm:$0xff]
        %v326 = vld [vmem:[#allocation5 + $0x350] sm:$0xff]
        %v327 = vld [vmem:[#allocation5 + $0x358] sm:$0xff]
        %v328 = vld [vmem:[#allocation5 + $0x360] sm:$0xff]
        %v329 = vld [vmem:[#allocation5 + $0x368] sm:$0xff]
        %v330 = vld [vmem:[#allocation5 + $0x370] sm:$0xff]
        %v331 = vld [vmem:[#allocation5 + $0x378] sm:$0xff]
        %v332 = vld [vmem:[#allocation5 + $0x380] sm:$0xff]
        %v333 = vld [vmem:[#allocation5 + $0x388] sm:$0xff]
        %v334 = vld [vmem:[#allocation5 + $0x390] sm:$0xff]
        %v335 = vld [vmem:[#allocation5 + $0x398] sm:$0xff]
        %v336 = vld [vmem:[#allocation5 + $0x3a0] sm:$0xff]
        %v337 = vld [vmem:[#allocation5 + $0x3a8] sm:$0xff]
        %v338 = vld [vmem:[#allocation5 + $0x3b0] sm:$0xff]
        %v339 = vld [vmem:[#allocation5 + $0x3b8] sm:$0xff]
        %v340 = vld [vmem:[#allocation5 + $0x3c0] sm:$0xff]
        %v341 = vld [vmem:[#allocation5 + $0x3c8] sm:$0xff]
        %v342 = vld [vmem:[#allocation5 + $0x3d0] sm:$0xff]
        %v343 = vld [vmem:[#allocation5 + $0x3d8] sm:$0xff]
        %v344 = vld [vmem:[#allocation5 + $0x3e0] sm:$0xff]
        %v345 = vld [vmem:[#allocation5 + $0x3e8] sm:$0xff]
        %v346 = vld [vmem:[#allocation5 + $0x3f0] sm:$0xff]
        %v347 = vld [vmem:[#allocation5 + $0x3f8] sm:$0xff]
        %v348 = vld [vmem:[#allocation5 + $0x400] sm:$0xff]
        %v349 = vld [vmem:[#allocation5 + $0x408] sm:$0xff]
        %v350 = vld [vmem:[#allocation5 + $0x410] sm:$0xff]
        %v351 = vld [vmem:[#allocation5 + $0x418] sm:$0xff]
        %v352 = vld [vmem:[#allocation5 + $0x420] sm:$0xff]
        %v353 = vld [vmem:[#allocation5 + $0x428] sm:$0xff]
        %v354 = vld [vmem:[#allocation5 + $0x430] sm:$0xff]
        %v355 = vld [vmem:[#allocation5 + $0x438] sm:$0xff]
        %v356 = vld [vmem:[#allocation5 + $0x440] sm:$0xff]
        %v357 = vld [vmem:[#allocation5 + $0x448] sm:$0xff]
        %v358 = vld [vmem:[#allocation5 + $0x450] sm:$0xff]
        %v359 = vld [vmem:[#allocation5 + $0x458] sm:$0xff]
        %v360 = vld [vmem:[#allocation5 + $0x460] sm:$0xff]
        %v361 = vld [vmem:[#allocation5 + $0x468] sm:$0xff]
        %v362 = vld [vmem:[#allocation5 + $0x470] sm:$0xff]
        %v363 = vld [vmem:[#allocation5 + $0x478] sm:$0xff]
        %v364 = vld [vmem:[#allocation5 + $0x480] sm:$0xff]
        %v365 = vld [vmem:[#allocation5 + $0x488] sm:$0xff]
        %v366 = vld [vmem:[#allocation5 + $0x490] sm:$0xff]
        %v367 = vld [vmem:[#allocation5 + $0x498] sm:$0xff]
        %v368 = vld [vmem:[#allocation5 + $0x4a0] sm:$0xff]
        %v369 = vld [vmem:[#allocation5 + $0x4a8] sm:$0xff]
        %v370 = vld [vmem:[#allocation5 + $0x4b0] sm:$0xff]
        %v371 = vld [vmem:[#allocation5 + $0x4b8] sm:$0xff]
        %v372 = vld [vmem:[#allocation5 + $0x4c0] sm:$0xff]
        %v373 = vld [vmem:[#allocation5 + $0x4c8] sm:$0xff]
        %v374 = vld [vmem:[#allocation5 + $0x4d0] sm:$0xff]
        %v375 = vld [vmem:[#allocation5 + $0x4d8] sm:$0xff]
        %v376 = vld [vmem:[#allocation5 + $0x4e0] sm:$0xff]
        %v377 = vld [vmem:[#allocation5 + $0x4e8] sm:$0xff]
        %v378 = vld [vmem:[#allocation5 + $0x4f0] sm:$0xff]
        %v379 = vld [vmem:[#allocation5 + $0x4f8] sm:$0xff]
        %v380 = vld [vmem:[#allocation5 + $0x500] sm:$0xff]
        %v381 = vld [vmem:[#allocation5 + $0x508] sm:$0xff]
        %v382 = vld [vmem:[#allocation5 + $0x510] sm:$0xff]
        %v383 = vld [vmem:[#allocation5 + $0x518] sm:$0xff]
        %v384 = vld [vmem:[#allocation5 + $0x520] sm:$0xff]
        %v385 = vld [vmem:[#allocation5 + $0x528] sm:$0xff]
        %v386 = vld [vmem:[#allocation5 + $0x530] sm:$0xff]
        %v387 = vld [vmem:[#allocation5 + $0x538] sm:$0xff]
        %v388 = vld [vmem:[#allocation5 + $0x540] sm:$0xff]
        %v389 = vld [vmem:[#allocation5 + $0x548] sm:$0xff]
        %v390 = vld [vmem:[#allocation5 + $0x550] sm:$0xff]
        %v391 = vld [vmem:[#allocation5 + $0x558] sm:$0xff]
        %v392 = vld [vmem:[#allocation5 + $0x560] sm:$0xff]
        %v393 = vld [vmem:[#allocation5 + $0x568] sm:$0xff]
        %v394 = vld [vmem:[#allocation5 + $0x570] sm:$0xff]
        %v395 = vld [vmem:[#allocation5 + $0x578] sm:$0xff]
        %v396 = vld [vmem:[#allocation5 + $0x580] sm:$0xff]
        %v397 = vld [vmem:[#allocation5 + $0x588] sm:$0xff]
        %v398 = vld [vmem:[#allocation5 + $0x590] sm:$0xff]
        %v399 = vld [vmem:[#allocation5 + $0x598] sm:$0xff]
        %v400 = vld [vmem:[#allocation5 + $0x5a0] sm:$0xff]
        %v401 = vld [vmem:[#allocation5 + $0x5a8] sm:$0xff]
        %v402 = vld [vmem:[#allocation5 + $0x5b0] sm:$0xff]
        %v403 = vld [vmem:[#allocation5 + $0x5b8] sm:$0xff]
        %v404 = vld [vmem:[#allocation5 + $0x5c0] sm:$0xff]
        %v405 = vld [vmem:[#allocation5 + $0x5c8] sm:$0xff]
        %v406 = vld [vmem:[#allocation5 + $0x5d0] sm:$0xff]
        %v407 = vld [vmem:[#allocation5 + $0x5d8] sm:$0xff]
        %v408 = vld [vmem:[#allocation5 + $0x5e0] sm:$0xff]
        %v409 = vld [vmem:[#allocation5 + $0x5e8] sm:$0xff]
        %v410 = vld [vmem:[#allocation5 + $0x5f0] sm:$0xff]
        %v411 = vld [vmem:[#allocation5 + $0x5f8] sm:$0xff]
        %v412 = vld [vmem:[#allocation5 + $0x600] sm:$0xff]
        %v413 = vld [vmem:[#allocation5 + $0x608] sm:$0xff]
        %v414 = vld [vmem:[#allocation5 + $0x610] sm:$0xff]
        %v415 = vld [vmem:[#allocation5 + $0x618] sm:$0xff]
        %v416 = vld [vmem:[#allocation5 + $0x620] sm:$0xff]
        %v417 = vld [vmem:[#allocation5 + $0x628] sm:$0xff]
        %v418 = vld [vmem:[#allocation5 + $0x630] sm:$0xff]
        %v419 = vld [vmem:[#allocation5 + $0x638] sm:$0xff]
        %v420 = vld [vmem:[#allocation5 + $0x640] sm:$0xff]
        %v421 = vld [vmem:[#allocation5 + $0x648] sm:$0xff]
        %v422 = vld [vmem:[#allocation5 + $0x650] sm:$0xff]
        %v423 = vld [vmem:[#allocation5 + $0x658] sm:$0xff]
        %v424 = vld [vmem:[#allocation5 + $0x660] sm:$0xff]
        %v425 = vld [vmem:[#allocation5 + $0x668] sm:$0xff]
        %v426 = vld [vmem:[#allocation5 + $0x670] sm:$0xff]
        %v427 = vld [vmem:[#allocation5 + $0x678] sm:$0xff]
        %v428 = vld [vmem:[#allocation5 + $0x680] sm:$0xff]
        %v429 = vld [vmem:[#allocation5 + $0x688] sm:$0xff]
        %v430 = vld [vmem:[#allocation5 + $0x690] sm:$0xff]
        %v431 = vld [vmem:[#allocation5 + $0x698] sm:$0xff]
        %v432 = vld [vmem:[#allocation5 + $0x6a0] sm:$0xff]
        %v433 = vld [vmem:[#allocation5 + $0x6a8] sm:$0xff]
        %v434 = vld [vmem:[#allocation5 + $0x6b0] sm:$0xff]
        %v435 = vld [vmem:[#allocation5 + $0x6b8] sm:$0xff]
        %v436 = vld [vmem:[#allocation5 + $0x6c0] sm:$0xff]
        %v437 = vld [vmem:[#allocation5 + $0x6c8] sm:$0xff]
        %v438 = vld [vmem:[#allocation5 + $0x6d0] sm:$0xff]
        %v439 = vld [vmem:[#allocation5 + $0x6d8] sm:$0xff]
        %v440 = vld [vmem:[#allocation5 + $0x6e0] sm:$0xff]
        %v441 = vld [vmem:[#allocation5 + $0x6e8] sm:$0xff]
        %v442 = vld [vmem:[#allocation5 + $0x6f0] sm:$0xff]
        %v443 = vld [vmem:[#allocation5 + $0x6f8] sm:$0xff]
        %v444 = vld [vmem:[#allocation5 + $0x700] sm:$0xff]
        %v445 = vld [vmem:[#allocation5 + $0x708] sm:$0xff]
        %v446 = vld [vmem:[#allocation5 + $0x710] sm:$0xff]
        %v447 = vld [vmem:[#allocation5 + $0x718] sm:$0xff]
        %v448 = vld [vmem:[#allocation5 + $0x720] sm:$0xff]
        %v449 = vld [vmem:[#allocation5 + $0x728] sm:$0xff]
        %v450 = vld [vmem:[#allocation5 + $0x730] sm:$0xff]
        %v451 = vld [vmem:[#allocation5 + $0x738] sm:$0xff]
        %v452 = vld [vmem:[#allocation5 + $0x740] sm:$0xff]
        %v453 = vld [vmem:[#allocation5 + $0x748] sm:$0xff]
        %v454 = vld [vmem:[#allocation5 + $0x750] sm:$0xff]
        %v455 = vld [vmem:[#allocation5 + $0x758] sm:$0xff]
        %v456 = vld [vmem:[#allocation5 + $0x760] sm:$0xff]
        %v457 = vld [vmem:[#allocation5 + $0x768] sm:$0xff]
        %v458 = vld [vmem:[#allocation5 + $0x770] sm:$0xff]
        %v459 = vld [vmem:[#allocation5 + $0x778] sm:$0xff]
        %v460 = vld [vmem:[#allocation5 + $0x780] sm:$0xff]
        %v461 = vld [vmem:[#allocation5 + $0x788] sm:$0xff]
        %v462 = vld [vmem:[#allocation5 + $0x790] sm:$0xff]
        %v463 = vld [vmem:[#allocation5 + $0x798] sm:$0xff]
        %v464 = vld [vmem:[#allocation5 + $0x7a0] sm:$0xff]
        %v465 = vld [vmem:[#allocation5 + $0x7a8] sm:$0xff]
        %v466 = vld [vmem:[#allocation5 + $0x7b0] sm:$0xff]
        %v467 = vld [vmem:[#allocation5 + $0x7b8] sm:$0xff]
        %v468 = vld [vmem:[#allocation5 + $0x7c0] sm:$0xff]
        %v469 = vld [vmem:[#allocation5 + $0x7c8] sm:$0xff]
        %v470 = vld [vmem:[#allocation5 + $0x7d0] sm:$0xff]
        %v471 = vld [vmem:[#allocation5 + $0x7d8] sm:$0xff]
        %v472 = vld [vmem:[#allocation5 + $0x7e0] sm:$0xff]
        %v473 = vld [vmem:[#allocation5 + $0x7e8] sm:$0xff]
        %v474 = vld [vmem:[#allocation5 + $0x7f0] sm:$0xff]
        %v475 = vld [vmem:[#allocation5 + $0x7f8] sm:$0xff]
        %v476 = vld [vmem:[#allocation5 + $0x800] sm:$0xff]
        %v477 = vld [vmem:[#allocation5 + $0x808] sm:$0xff]
        %v478 = vld [vmem:[#allocation5 + $0x810] sm:$0xff]
        %v479 = vld [vmem:[#allocation5 + $0x818] sm:$0xff]
        %v480 = vld [vmem:[#allocation5 + $0x820] sm:$0xff]
        %v481 = vld [vmem:[#allocation5 + $0x828] sm:$0xff]
        %v482 = vld [vmem:[#allocation5 + $0x830] sm:$0xff]
        %v483 = vld [vmem:[#allocation5 + $0x838] sm:$0xff]
        %v484 = vld [vmem:[#allocation5 + $0x840] sm:$0xff]
        %v485 = vld [vmem:[#allocation5 + $0x848] sm:$0xff]
        %v486 = vld [vmem:[#allocation5 + $0x850] sm:$0xff]
        %v487 = vld [vmem:[#allocation5 + $0x858] sm:$0xff]
        %v488 = vld [vmem:[#allocation5 + $0x860] sm:$0xff]
        %v489 = vld [vmem:[#allocation5 + $0x868] sm:$0xff]
        %v490 = vld [vmem:[#allocation5 + $0x870] sm:$0xff]
        %v491 = vld [vmem:[#allocation5 + $0x878] sm:$0xff]
        %v492 = vld [vmem:[#allocation5 + $0x880] sm:$0xff]
        %v493 = vld [vmem:[#allocation5 + $0x888] sm:$0xff]
        %v494 = vld [vmem:[#allocation5 + $0x890] sm:$0xff]
        %v495 = vld [vmem:[#allocation5 + $0x898] sm:$0xff]
        %v496 = vld [vmem:[#allocation5 + $0x8a0] sm:$0xff]
        %v497 = vld [vmem:[#allocation5 + $0x8a8] sm:$0xff]
        %v498 = vld [vmem:[#allocation5 + $0x8b0] sm:$0xff]
        %v499 = vld [vmem:[#allocation5 + $0x8b8] sm:$0xff]
        %v500 = vld [vmem:[#allocation5 + $0x8c0] sm:$0xff]
        %v501 = vld [vmem:[#allocation5 + $0x8c8] sm:$0xff]
        %v502 = vld [vmem:[#allocation5 + $0x8d0] sm:$0xff]
        %v503 = vld [vmem:[#allocation5 + $0x8d8] sm:$0xff]
        %v504 = vld [vmem:[#allocation5 + $0x8e0] sm:$0xff]
        %v505 = vld [vmem:[#allocation5 + $0x8e8] sm:$0xff]
        %v506 = vld [vmem:[#allocation5 + $0x8f0] sm:$0xff]
        %v507 = vld [vmem:[#allocation5 + $0x8f8] sm:$0xff]
        %v508 = vld [vmem:[#allocation5 + $0x900] sm:$0xff]
        %v509 = vld [vmem:[#allocation5 + $0x908] sm:$0xff]
        %v510 = vld [vmem:[#allocation5 + $0x910] sm:$0xff]
        %v511 = vld [vmem:[#allocation5 + $0x918] sm:$0xff]
        %v512 = vld [vmem:[#allocation5 + $0x920] sm:$0xff]
        %v513 = vld [vmem:[#allocation5 + $0x928] sm:$0xff]
        %v514 = vld [vmem:[#allocation5 + $0x930] sm:$0xff]
        %v515 = vld [vmem:[#allocation5 + $0x938] sm:$0xff]
        %v516 = vld [vmem:[#allocation5 + $0x940] sm:$0xff]
        %v517 = vld [vmem:[#allocation5 + $0x948] sm:$0xff]
        %v518 = vld [vmem:[#allocation5 + $0x950] sm:$0xff]
        %v519 = vld [vmem:[#allocation5 + $0x958] sm:$0xff]
        %v520 = vld [vmem:[#allocation5 + $0x960] sm:$0xff]
        %v521 = vld [vmem:[#allocation5 + $0x968] sm:$0xff]
        %v522 = vld [vmem:[#allocation5 + $0x970] sm:$0xff]
        %v523 = vld [vmem:[#allocation5 + $0x978] sm:$0xff]
        %v524 = vld [vmem:[#allocation5 + $0x980] sm:$0xff]
        %v525 = vld [vmem:[#allocation5 + $0x988] sm:$0xff]
        %v526 = vld [vmem:[#allocation5 + $0x990] sm:$0xff]
        %v527 = vld [vmem:[#allocation5 + $0x998] sm:$0xff]
        %v528 = vld [vmem:[#allocation5 + $0x9a0] sm:$0xff]
        %v529 = vld [vmem:[#allocation5 + $0x9a8] sm:$0xff]
        %v530 = vld [vmem:[#allocation5 + $0x9b0] sm:$0xff]
        %v531 = vld [vmem:[#allocation5 + $0x9b8] sm:$0xff]
        %v532 = vld [vmem:[#allocation5 + $0x9c0] sm:$0xff]
        %v533 = vld [vmem:[#allocation5 + $0x9c8] sm:$0xff]
        %v534 = vld [vmem:[#allocation5 + $0x9d0] sm:$0xff]
        %v535 = vld [vmem:[#allocation5 + $0x9d8] sm:$0xff]
        %v536 = vld [vmem:[#allocation5 + $0x9e0] sm:$0xff]
        %v537 = vld [vmem:[#allocation5 + $0x9e8] sm:$0xff]
        %v538 = vld [vmem:[#allocation5 + $0x9f0] sm:$0xff]
        %v539 = vld [vmem:[#allocation5 + $0x9f8] sm:$0xff]
        %v540 = vld [vmem:[#allocation5 + $0xa00] sm:$0xff]
        %v541 = vld [vmem:[#allocation5 + $0xa08] sm:$0xff]
        %v542 = vld [vmem:[#allocation5 + $0xa10] sm:$0xff]
        %v543 = vld [vmem:[#allocation5 + $0xa18] sm:$0xff]
        %v544 = vld [vmem:[#allocation5 + $0xa20] sm:$0xff]
        %v545 = vld [vmem:[#allocation5 + $0xa28] sm:$0xff]
        %v546 = vld [vmem:[#allocation5 + $0xa30] sm:$0xff]
        %v547 = vld [vmem:[#allocation5 + $0xa38] sm:$0xff]
        %v548 = vld [vmem:[#allocation5 + $0xa40] sm:$0xff]
        %v549 = vld [vmem:[#allocation5 + $0xa48] sm:$0xff]
        %v550 = vld [vmem:[#allocation5 + $0xa50] sm:$0xff]
        %v551 = vld [vmem:[#allocation5 + $0xa58] sm:$0xff]
        %v552 = vld [vmem:[#allocation5 + $0xa60] sm:$0xff]
        %v553 = vld [vmem:[#allocation5 + $0xa68] sm:$0xff]
        %v554 = vld [vmem:[#allocation5 + $0xa70] sm:$0xff]
        %v555 = vld [vmem:[#allocation5 + $0xa78] sm:$0xff]
        %v556 = vld [vmem:[#allocation5 + $0xa80] sm:$0xff]
        %v557 = vld [vmem:[#allocation5 + $0xa88] sm:$0xff]
        %v558 = vld [vmem:[#allocation5 + $0xa90] sm:$0xff]
        %v559 = vld [vmem:[#allocation5 + $0xa98] sm:$0xff]
        %v560 = vld [vmem:[#allocation5 + $0xaa0] sm:$0xff]
        %v561 = vld [vmem:[#allocation5 + $0xaa8] sm:$0xff]
        %v562 = vld [vmem:[#allocation5 + $0xab0] sm:$0xff]
        %v563 = vld [vmem:[#allocation5 + $0xab8] sm:$0xff]
        %v564 = vld [vmem:[#allocation5 + $0xac0] sm:$0xff]
        %v565 = vld [vmem:[#allocation5 + $0xac8] sm:$0xff]
        %v566 = vld [vmem:[#allocation5 + $0xad0] sm:$0xff]
        %v567 = vld [vmem:[#allocation5 + $0xad8] sm:$0xff]
        %v568 = vld [vmem:[#allocation5 + $0xae0] sm:$0xff]
        %v569 = vld [vmem:[#allocation5 + $0xae8] sm:$0xff]
        %v570 = vld [vmem:[#allocation5 + $0xaf0] sm:$0xff]
        %v571 = vld [vmem:[#allocation5 + $0xaf8] sm:$0xff]
        %v572 = vld [vmem:[#allocation5 + $0xb00] sm:$0xff]
        %v573 = vld [vmem:[#allocation5 + $0xb08] sm:$0xff]
        %v574 = vld [vmem:[#allocation5 + $0xb10] sm:$0xff]
        %v575 = vld [vmem:[#allocation5 + $0xb18] sm:$0xff]
        %v576 = vld [vmem:[#allocation5 + $0xb20] sm:$0xff]
        %v577 = vld [vmem:[#allocation5 + $0xb28] sm:$0xff]
        %v578 = vld [vmem:[#allocation5 + $0xb30] sm:$0xff]
        %v579 = vld [vmem:[#allocation5 + $0xb38] sm:$0xff]
        %v580 = vld [vmem:[#allocation5 + $0xb40] sm:$0xff]
        %v581 = vld [vmem:[#allocation5 + $0xb48] sm:$0xff]
        %v582 = vld [vmem:[#allocation5 + $0xb50] sm:$0xff]
        %v583 = vld [vmem:[#allocation5 + $0xb58] sm:$0xff]
        %v584 = vld [vmem:[#allocation5 + $0xb60] sm:$0xff]
        %v585 = vld [vmem:[#allocation5 + $0xb68] sm:$0xff]
        %v586 = vld [vmem:[#allocation5 + $0xb70] sm:$0xff]
        %v587 = vld [vmem:[#allocation5 + $0xb78] sm:$0xff]
        %v588 = vld [vmem:[#allocation5 + $0xb80] sm:$0xff]
        %v589 = vld [vmem:[#allocation5 + $0xb88] sm:$0xff]
        %v590 = vld [vmem:[#allocation5 + $0xb90] sm:$0xff]
        %v591 = vld [vmem:[#allocation5 + $0xb98] sm:$0xff]
        %v592 = vld [vmem:[#allocation5 + $0xba0] sm:$0xff]
        %v593 = vld [vmem:[#allocation5 + $0xba8] sm:$0xff]
        %v594 = vld [vmem:[#allocation5 + $0xbb0] sm:$0xff]
        %v595 = vld [vmem:[#allocation5 + $0xbb8] sm:$0xff]
        %v596 = vld [vmem:[#allocation5 + $0xbc0] sm:$0xff]
        %v597 = vld [vmem:[#allocation5 + $0xbc8] sm:$0xff]
        %v598 = vld [vmem:[#allocation5 + $0xbd0] sm:$0xff]
        %v599 = vld [vmem:[#allocation5 + $0xbd8] sm:$0xff]
        %v600 = vld [vmem:[#allocation5 + $0xbe0] sm:$0xff]
        %v601 = vld [vmem:[#allocation5 + $0xbe8] sm:$0xff]
        %v602 = vld [vmem:[#allocation5 + $0xbf0] sm:$0xff]
        %v603 = vld [vmem:[#allocation5 + $0xbf8] sm:$0xff]
        %v604 = vld [vmem:[#allocation5 + $0xc00] sm:$0xff]
        %v605 = vld [vmem:[#allocation5 + $0xc08] sm:$0xff]
        %v606 = vld [vmem:[#allocation5 + $0xc10] sm:$0xff]
        %v607 = vld [vmem:[#allocation5 + $0xc18] sm:$0xff]
        %v608 = vld [vmem:[#allocation5 + $0xc20] sm:$0xff]
        %v609 = vld [vmem:[#allocation5 + $0xc28] sm:$0xff]
        %v610 = vld [vmem:[#allocation5 + $0xc30] sm:$0xff]
        %v611 = vld [vmem:[#allocation5 + $0xc38] sm:$0xff]
        %v612 = vld [vmem:[#allocation5 + $0xc40] sm:$0xff]
        %v613 = vld [vmem:[#allocation5 + $0xc48] sm:$0xff]
        %v614 = vld [vmem:[#allocation5 + $0xc50] sm:$0xff]
        %v615 = vld [vmem:[#allocation5 + $0xc58] sm:$0xff]
        %v616 = vld [vmem:[#allocation5 + $0xc60] sm:$0xff]
        %v617 = vld [vmem:[#allocation5 + $0xc68] sm:$0xff]
        %v618 = vld [vmem:[#allocation5 + $0xc70] sm:$0xff]
        %v619 = vld [vmem:[#allocation5 + $0xc78] sm:$0xff]
        %v620 = vld [vmem:[#allocation5 + $0xc80] sm:$0xff]
        %v621 = vld [vmem:[#allocation5 + $0xc88] sm:$0xff]
        %v622 = vld [vmem:[#allocation5 + $0xc90] sm:$0xff]
        %v623 = vld [vmem:[#allocation5 + $0xc98] sm:$0xff]
        %v624 = vld [vmem:[#allocation5 + $0xca0] sm:$0xff]
        %v625 = vld [vmem:[#allocation5 + $0xca8] sm:$0xff]
        %v626 = vld [vmem:[#allocation5 + $0xcb0] sm:$0xff]
        %v627 = vld [vmem:[#allocation5 + $0xcb8] sm:$0xff]
        %v628 = vld [vmem:[#allocation5 + $0xcc0] sm:$0xff]
        %v629 = vld [vmem:[#allocation5 + $0xcc8] sm:$0xff]
        %v630 = vld [vmem:[#allocation5 + $0xcd0] sm:$0xff]
        %v631 = vld [vmem:[#allocation5 + $0xcd8] sm:$0xff]
        %v632 = vld [vmem:[#allocation5 + $0xce0] sm:$0xff]
        %v633 = vld [vmem:[#allocation5 + $0xce8] sm:$0xff]
        %v634 = vld [vmem:[#allocation5 + $0xcf0] sm:$0xff]
        %v635 = vld [vmem:[#allocation5 + $0xcf8] sm:$0xff]
        %v636 = vld [vmem:[#allocation5 + $0xd00] sm:$0xff]
        %v637 = vld [vmem:[#allocation5 + $0xd08] sm:$0xff]
        %v638 = vld [vmem:[#allocation5 + $0xd10] sm:$0xff]
        %v639 = vld [vmem:[#allocation5 + $0xd18] sm:$0xff]
        %v640 = vld [vmem:[#allocation5 + $0xd20] sm:$0xff]
        %v641 = vld [vmem:[#allocation5 + $0xd28] sm:$0xff]
        %v642 = vld [vmem:[#allocation5 + $0xd30] sm:$0xff]
        %v643 = vld [vmem:[#allocation5 + $0xd38] sm:$0xff]
        %v644 = vld [vmem:[#allocation5 + $0xd40] sm:$0xff]
        %v645 = vld [vmem:[#allocation5 + $0xd48] sm:$0xff]
        %v646 = vld [vmem:[#allocation5 + $0xd50] sm:$0xff]
        %v647 = vld [vmem:[#allocation5 + $0xd58] sm:$0xff]
        %v648 = vld [vmem:[#allocation5 + $0xd60] sm:$0xff]
        %v649 = vld [vmem:[#allocation5 + $0xd68] sm:$0xff]
        %v650 = vld [vmem:[#allocation5 + $0xd70] sm:$0xff]
        %v651 = vld [vmem:[#allocation5 + $0xd78] sm:$0xff]
        %v652 = vld [vmem:[#allocation5 + $0xd80] sm:$0xff]
        %v653 = vld [vmem:[#allocation5 + $0xd88] sm:$0xff]
        %v654 = vld [vmem:[#allocation5 + $0xd90] sm:$0xff]
        %v655 = vld [vmem:[#allocation5 + $0xd98] sm:$0xff]
        %v656 = vld [vmem:[#allocation5 + $0xda0] sm:$0xff]
        %v657 = vld [vmem:[#allocation5 + $0xda8] sm:$0xff]
        %v658 = vld [vmem:[#allocation5 + $0xdb0] sm:$0xff]
        %v659 = vld [vmem:[#allocation5 + $0xdb8] sm:$0xff]
        %v660 = vld [vmem:[#allocation5 + $0xdc0] sm:$0xff]
        %v661 = vld [vmem:[#allocation5 + $0xdc8] sm:$0xff]
        %v662 = vld [vmem:[#allocation5 + $0xdd0] sm:$0xff]
        %v663 = vld [vmem:[#allocation5 + $0xdd8] sm:$0xff]
        %v664 = vld [vmem:[#allocation5 + $0xde0] sm:$0xff]
        %v665 = vld [vmem:[#allocation5 + $0xde8] sm:$0xff]
        %v666 = vld [vmem:[#allocation5 + $0xdf0] sm:$0xff]
        %v667 = vld [vmem:[#allocation5 + $0xdf8] sm:$0xff]
        %v668 = vld [vmem:[#allocation5 + $0xe00] sm:$0xff]
        %v669 = vld [vmem:[#allocation5 + $0xe08] sm:$0xff]
        %v670 = vld [vmem:[#allocation5 + $0xe10] sm:$0xff]
        %v671 = vld [vmem:[#allocation5 + $0xe18] sm:$0xff]
        %v672 = vld [vmem:[#allocation5 + $0xe20] sm:$0xff]
        %v673 = vld [vmem:[#allocation5 + $0xe28] sm:$0xff]
        %v674 = vld [vmem:[#allocation5 + $0xe30] sm:$0xff]
        %v675 = vld [vmem:[#allocation5 + $0xe38] sm:$0xff]
        %v676 = vld [vmem:[#allocation5 + $0xe40] sm:$0xff]
        %v677 = vld [vmem:[#allocation5 + $0xe48] sm:$0xff]
        %v678 = vld [vmem:[#allocation5 + $0xe50] sm:$0xff]
        %v679 = vld [vmem:[#allocation5 + $0xe58] sm:$0xff]
        %v680 = vld [vmem:[#allocation5 + $0xe60] sm:$0xff]
        %v681 = vld [vmem:[#allocation5 + $0xe68] sm:$0xff]
        %v682 = vld [vmem:[#allocation5 + $0xe70] sm:$0xff]
        %v683 = vld [vmem:[#allocation5 + $0xe78] sm:$0xff]
        %v684 = vld [vmem:[#allocation5 + $0xe80] sm:$0xff]
        %v685 = vld [vmem:[#allocation5 + $0xe88] sm:$0xff]
        %v686 = vld [vmem:[#allocation5 + $0xe90] sm:$0xff]
        %v687 = vld [vmem:[#allocation5 + $0xe98] sm:$0xff]
        %v688 = vld [vmem:[#allocation5 + $0xea0] sm:$0xff]
        %v689 = vld [vmem:[#allocation5 + $0xea8] sm:$0xff]
        %v690 = vld [vmem:[#allocation5 + $0xeb0] sm:$0xff]
        %v691 = vld [vmem:[#allocation5 + $0xeb8] sm:$0xff]
        %v692 = vld [vmem:[#allocation5 + $0xec0] sm:$0xff]
        %v693 = vld [vmem:[#allocation5 + $0xec8] sm:$0xff]
        %v694 = vld [vmem:[#allocation5 + $0xed0] sm:$0xff]
        %v695 = vld [vmem:[#allocation5 + $0xed8] sm:$0xff]
        %v696 = vld [vmem:[#allocation5 + $0xee0] sm:$0xff]
        %v697 = vld [vmem:[#allocation5 + $0xee8] sm:$0xff]
        %v698 = vld [vmem:[#allocation5 + $0xef0] sm:$0xff]
        %v699 = vld [vmem:[#allocation5 + $0xef8] sm:$0xff]
        %v700 = vld [vmem:[#allocation5 + $0xf00] sm:$0xff]
        %v701 = vld [vmem:[#allocation5 + $0xf08] sm:$0xff]
        %v702 = vld [vmem:[#allocation5 + $0xf10] sm:$0xff]
        %v703 = vld [vmem:[#allocation5 + $0xf18] sm:$0xff]
        %v704 = vld [vmem:[#allocation5 + $0xf20] sm:$0xff]
        %v705 = vld [vmem:[#allocation5 + $0xf28] sm:$0xff]
        %v706 = vld [vmem:[#allocation5 + $0xf30] sm:$0xff]
        %v707 = vld [vmem:[#allocation5 + $0xf38] sm:$0xff]
        %v708 = vld [vmem:[#allocation5 + $0xf40] sm:$0xff]
        %v709 = vld [vmem:[#allocation5 + $0xf48] sm:$0xff]
        %v710 = vld [vmem:[#allocation5 + $0xf50] sm:$0xff]
        %v711 = vld [vmem:[#allocation5 + $0xf58] sm:$0xff]
        %v712 = vld [vmem:[#allocation5 + $0xf60] sm:$0xff]
        %v713 = vld [vmem:[#allocation5 + $0xf68] sm:$0xff]
        %v714 = vld [vmem:[#allocation5 + $0xf70] sm:$0xff]
        %v715 = vld [vmem:[#allocation5 + $0xf78] sm:$0xff]
        %v716 = vld [vmem:[#allocation5 + $0xf80] sm:$0xff]
        %v717 = vld [vmem:[#allocation5 + $0xf88] sm:$0xff]
        %v718 = vld [vmem:[#allocation5 + $0xf90] sm:$0xff]
        %v719 = vld [vmem:[#allocation5 + $0xf98] sm:$0xff]
        %v720 = vld [vmem:[#allocation5 + $0xfa0] sm:$0xff]
        %v721 = vld [vmem:[#allocation5 + $0xfa8] sm:$0xff]
        %v722 = vld [vmem:[#allocation5 + $0xfb0] sm:$0xff]
        %v723 = vld [vmem:[#allocation5 + $0xfb8] sm:$0xff]
        %v724 = vld [vmem:[#allocation5 + $0xfc0] sm:$0xff]
        %v725 = vld [vmem:[#allocation5 + $0xfc8] sm:$0xff]
        %v726 = vld [vmem:[#allocation5 + $0xfd0] sm:$0xff]
        %v727 = vld [vmem:[#allocation5 + $0xfd8] sm:$0xff]
        %v728 = vld [vmem:[#allocation5 + $0xfe0] sm:$0xff]
        %v729 = vld [vmem:[#allocation5 + $0xfe8] sm:$0xff]
        %v730 = vld [vmem:[#allocation5 + $0xff0] sm:$0xff]
        %v731 = vld [vmem:[#allocation5 + $0xff8] sm:$0xff]
        %v732 = vld [vmem:[#allocation5 + $0x1000] sm:$0xff]
        %v733 = vld [vmem:[#allocation5 + $0x1008] sm:$0xff]
        %v734 = vld [vmem:[#allocation5 + $0x1010] sm:$0xff]
        %v735 = vld [vmem:[#allocation5 + $0x1018] sm:$0xff]
        %v736 = vld [vmem:[#allocation5 + $0x1020] sm:$0xff]
        %v737 = vld [vmem:[#allocation5 + $0x1028] sm:$0xff]
        %v738 = vld [vmem:[#allocation5 + $0x1030] sm:$0xff]
        %v739 = vld [vmem:[#allocation5 + $0x1038] sm:$0xff]
        %v740 = vld [vmem:[#allocation5 + $0x1040] sm:$0xff]
        %v741 = vld [vmem:[#allocation5 + $0x1048] sm:$0xff]
        %v742 = vld [vmem:[#allocation5 + $0x1050] sm:$0xff]
        %v743 = vld [vmem:[#allocation5 + $0x1058] sm:$0xff]
        %v744 = vld [vmem:[#allocation5 + $0x1060] sm:$0xff]
        %v745 = vld [vmem:[#allocation5 + $0x1068] sm:$0xff]
        %v746 = vld [vmem:[#allocation5 + $0x1070] sm:$0xff]
        %v747 = vld [vmem:[#allocation5 + $0x1078] sm:$0xff]
        %v748 = vld [vmem:[#allocation5 + $0x1080] sm:$0xff]
        %v749 = vld [vmem:[#allocation5 + $0x1088] sm:$0xff]
        %v750 = vld [vmem:[#allocation5 + $0x1090] sm:$0xff]
        %v751 = vld [vmem:[#allocation5 + $0x1098] sm:$0xff]
        %v752 = vld [vmem:[#allocation5 + $0x10a0] sm:$0xff]
        %v753 = vld [vmem:[#allocation5 + $0x10a8] sm:$0xff]
        %v754 = vld [vmem:[#allocation5 + $0x10b0] sm:$0xff]
        %v755 = vld [vmem:[#allocation5 + $0x10b8] sm:$0xff]
        %v756 = vld [vmem:[#allocation5 + $0x10c0] sm:$0xff]
        %v757 = vld [vmem:[#allocation5 + $0x10c8] sm:$0xff]
        %v758 = vld [vmem:[#allocation5 + $0x10d0] sm:$0xff]
        %v759 = vld [vmem:[#allocation5 + $0x10d8] sm:$0xff]
        %v760 = vld [vmem:[#allocation5 + $0x10e0] sm:$0xff]
        %v761 = vld [vmem:[#allocation5 + $0x10e8] sm:$0xff]
        %v762 = vld [vmem:[#allocation5 + $0x10f0] sm:$0xff]
        %v763 = vld [vmem:[#allocation5 + $0x10f8] sm:$0xff]
        %v764 = vld [vmem:[#allocation5 + $0x1100] sm:$0xff]
        %v765 = vld [vmem:[#allocation5 + $0x1108] sm:$0xff]
        %v766 = vld [vmem:[#allocation5 + $0x1110] sm:$0xff]
        %v767 = vld [vmem:[#allocation5 + $0x1118] sm:$0xff]
        %v768 = vld [vmem:[#allocation5 + $0x1120] sm:$0xff]
        %v769 = vld [vmem:[#allocation5 + $0x1128] sm:$0xff]
        %v770 = vld [vmem:[#allocation5 + $0x1130] sm:$0xff]
        %v771 = vld [vmem:[#allocation5 + $0x1138] sm:$0xff]
        %v772 = vld [vmem:[#allocation5 + $0x1140] sm:$0xff]
        %v773 = vld [vmem:[#allocation5 + $0x1148] sm:$0xff]
        %v774 = vld [vmem:[#allocation5 + $0x1150] sm:$0xff]
        %v775 = vld [vmem:[#allocation5 + $0x1158] sm:$0xff]
        %v776 = vld [vmem:[#allocation5 + $0x1160] sm:$0xff]
        %v777 = vld [vmem:[#allocation5 + $0x1168] sm:$0xff]
        %v778 = vld [vmem:[#allocation5 + $0x1170] sm:$0xff]
        %v779 = vld [vmem:[#allocation5 + $0x1178] sm:$0xff]
        %v780 = vld [vmem:[#allocation5 + $0x1180] sm:$0xff]
        %v781 = vld [vmem:[#allocation5 + $0x1188] sm:$0xff]
        %v782 = vld [vmem:[#allocation5 + $0x1190] sm:$0xff]
        %v783 = vld [vmem:[#allocation5 + $0x1198] sm:$0xff]
        %v784 = vld [vmem:[#allocation5 + $0x11a0] sm:$0xff]
        %v785 = vld [vmem:[#allocation5 + $0x11a8] sm:$0xff]
        %v786 = vld [vmem:[#allocation5 + $0x11b0] sm:$0xff]
        %v787 = vld [vmem:[#allocation5 + $0x11b8] sm:$0xff]
        %v788 = vld [vmem:[#allocation5 + $0x11c0] sm:$0xff]
        %v789 = vld [vmem:[#allocation5 + $0x11c8] sm:$0xff]
        %v790 = vld [vmem:[#allocation5 + $0x11d0] sm:$0xff]
        %v791 = vld [vmem:[#allocation5 + $0x11d8] sm:$0xff]
        %v792 = vld [vmem:[#allocation5 + $0x11e0] sm:$0xff]
        %v793 = vld [vmem:[#allocation5 + $0x11e8] sm:$0xff]
        %v794 = vld [vmem:[#allocation5 + $0x11f0] sm:$0xff]
        %v795 = vld [vmem:[#allocation5 + $0x11f8] sm:$0xff]
        %v796 = vld [vmem:[#allocation5 + $0x1200] sm:$0xff]
        %v797 = vld [vmem:[#allocation5 + $0x1208] sm:$0xff]
        %v798 = vld [vmem:[#allocation5 + $0x1210] sm:$0xff]
        %v799 = vld [vmem:[#allocation5 + $0x1218] sm:$0xff]
        %v800 = vld [vmem:[#allocation5 + $0x1220] sm:$0xff]
        %v801 = vld [vmem:[#allocation5 + $0x1228] sm:$0xff]
        %v802 = vld [vmem:[#allocation5 + $0x1230] sm:$0xff]
        %v803 = vld [vmem:[#allocation5 + $0x1238] sm:$0xff]
        %v804 = vld [vmem:[#allocation5 + $0x1240] sm:$0xff]
        %v805 = vld [vmem:[#allocation5 + $0x1248] sm:$0xff]
        %v806 = vld [vmem:[#allocation5 + $0x1250] sm:$0xff]
        %v807 = vld [vmem:[#allocation5 + $0x1258] sm:$0xff]
        %v808 = vld [vmem:[#allocation5 + $0x1260] sm:$0xff]
        %v809 = vld [vmem:[#allocation5 + $0x1268] sm:$0xff]
        %v810 = vld [vmem:[#allocation5 + $0x1270] sm:$0xff]
        %v811 = vld [vmem:[#allocation5 + $0x1278] sm:$0xff]
        %v812 = vld [vmem:[#allocation5 + $0x1280] sm:$0xff]
        %v813 = vld [vmem:[#allocation5 + $0x1288] sm:$0xff]
        %v814 = vld [vmem:[#allocation5 + $0x1290] sm:$0xff]
        %v815 = vld [vmem:[#allocation5 + $0x1298] sm:$0xff]
        %v816 = vld [vmem:[#allocation5 + $0x12a0] sm:$0xff]
        %v817 = vld [vmem:[#allocation5 + $0x12a8] sm:$0xff]
        %v818 = vld [vmem:[#allocation5 + $0x12b0] sm:$0xff]
        %v819 = vld [vmem:[#allocation5 + $0x12b8] sm:$0xff]
        %v820 = vld [vmem:[#allocation5 + $0x12c0] sm:$0xff]
        %v821 = vld [vmem:[#allocation5 + $0x12c8] sm:$0xff]
        %v822 = vld [vmem:[#allocation5 + $0x12d0] sm:$0xff]
        %v823 = vld [vmem:[#allocation5 + $0x12d8] sm:$0xff]
        %v824 = vld [vmem:[#allocation5 + $0x12e0] sm:$0xff]
        %v825 = vld [vmem:[#allocation5 + $0x12e8] sm:$0xff]
        %v826 = vld [vmem:[#allocation5 + $0x12f0] sm:$0xff]
        %v827 = vld [vmem:[#allocation5 + $0x12f8] sm:$0xff]
        %v828 = vld [vmem:[#allocation5 + $0x1300] sm:$0xff]
        %v829 = vld [vmem:[#allocation5 + $0x1308] sm:$0xff]
        %v830 = vld [vmem:[#allocation5 + $0x1310] sm:$0xff]
        %v831 = vld [vmem:[#allocation5 + $0x1318] sm:$0xff]
        %v832 = vld [vmem:[#allocation5 + $0x1320] sm:$0xff]
        %v833 = vld [vmem:[#allocation5 + $0x1328] sm:$0xff]
        %v834 = vld [vmem:[#allocation5 + $0x1330] sm:$0xff]
        %v835 = vld [vmem:[#allocation5 + $0x1338] sm:$0xff]
        %v836 = vld [vmem:[#allocation5 + $0x1340] sm:$0xff]
        %v837 = vld [vmem:[#allocation5 + $0x1348] sm:$0xff]
        %v838 = vld [vmem:[#allocation5 + $0x1350] sm:$0xff]
        %v839 = vld [vmem:[#allocation5 + $0x1358] sm:$0xff]
        %v840 = vld [vmem:[#allocation5 + $0x1360] sm:$0xff]
        %v841 = vld [vmem:[#allocation5 + $0x1368] sm:$0xff]
        %v842 = vld [vmem:[#allocation5 + $0x1370] sm:$0xff]
        %v843 = vld [vmem:[#allocation5 + $0x1378] sm:$0xff]
        %v844 = vld [vmem:[#allocation5 + $0x1380] sm:$0xff]
        %v845 = vld [vmem:[#allocation5 + $0x1388] sm:$0xff]
        %v846 = vld [vmem:[#allocation5 + $0x1390] sm:$0xff]
        %v847 = vld [vmem:[#allocation5 + $0x1398] sm:$0xff]
        %v848 = vld [vmem:[#allocation5 + $0x13a0] sm:$0xff]
        %v849 = vld [vmem:[#allocation5 + $0x13a8] sm:$0xff]
        %v850 = vld [vmem:[#allocation5 + $0x13b0] sm:$0xff]
        %v851 = vld [vmem:[#allocation5 + $0x13b8] sm:$0xff]
        %v852 = vld [vmem:[#allocation5 + $0x13c0] sm:$0xff]
        %v853 = vld [vmem:[#allocation5 + $0x13c8] sm:$0xff]
        %v854 = vld [vmem:[#allocation5 + $0x13d0] sm:$0xff]
        %v855 = vld [vmem:[#allocation5 + $0x13d8] sm:$0xff]
        %v856 = vld [vmem:[#allocation5 + $0x13e0] sm:$0xff]
        %v857 = vld [vmem:[#allocation5 + $0x13e8] sm:$0xff]
        %v858 = vld [vmem:[#allocation5 + $0x13f0] sm:$0xff]
        %v859 = vld [vmem:[#allocation5 + $0x13f8] sm:$0xff]
        %v860 = vld [vmem:[#allocation5 + $0x1400] sm:$0xff]
        %v861 = vld [vmem:[#allocation5 + $0x1408] sm:$0xff]
        %v862 = vld [vmem:[#allocation5 + $0x1410] sm:$0xff]
        %v863 = vld [vmem:[#allocation5 + $0x1418] sm:$0xff]
        %v864 = vld [vmem:[#allocation5 + $0x1420] sm:$0xff]
        %v865 = vld [vmem:[#allocation5 + $0x1428] sm:$0xff]
        %v866 = vld [vmem:[#allocation5 + $0x1430] sm:$0xff]
        %v867 = vld [vmem:[#allocation5 + $0x1438] sm:$0xff]
        %v868 = vld [vmem:[#allocation5 + $0x1440] sm:$0xff]
        %v869 = vld [vmem:[#allocation5 + $0x1448] sm:$0xff]
        %v870 = vld [vmem:[#allocation5 + $0x1450] sm:$0xff]
        %v871 = vld [vmem:[#allocation5 + $0x1458] sm:$0xff]
        %v872 = vld [vmem:[#allocation5 + $0x1460] sm:$0xff]
        %v873 = vld [vmem:[#allocation5 + $0x1468] sm:$0xff]
        %v874 = vld [vmem:[#allocation5 + $0x1470] sm:$0xff]
        %v875 = vld [vmem:[#allocation5 + $0x1478] sm:$0xff]
        %v876 = vld [vmem:[#allocation5 + $0x1480] sm:$0xff]
        %v877 = vld [vmem:[#allocation5 + $0x1488] sm:$0xff]
        %v878 = vld [vmem:[#allocation5 + $0x1490] sm:$0xff]
        %v879 = vld [vmem:[#allocation5 + $0x1498] sm:$0xff]
        %v880 = vld [vmem:[#allocation5 + $0x14a0] sm:$0xff]
        %v881 = vld [vmem:[#allocation5 + $0x14a8] sm:$0xff]
        %v882 = vld [vmem:[#allocation5 + $0x14b0] sm:$0xff]
        %v883 = vld [vmem:[#allocation5 + $0x14b8] sm:$0xff]
        %v884 = vld [vmem:[#allocation5 + $0x14c0] sm:$0xff]
        %v885 = vld [vmem:[#allocation5 + $0x14c8] sm:$0xff]
        %v886 = vld [vmem:[#allocation5 + $0x14d0] sm:$0xff]
        %v887 = vld [vmem:[#allocation5 + $0x14d8] sm:$0xff]
        %v888 = vld [vmem:[#allocation5 + $0x14e0] sm:$0xff]
        %v889 = vld [vmem:[#allocation5 + $0x14e8] sm:$0xff]
        %v890 = vld [vmem:[#allocation5 + $0x14f0] sm:$0xff]
        %v891 = vld [vmem:[#allocation5 + $0x14f8] sm:$0xff]
        %v892 = vld [vmem:[#allocation5 + $0x1500] sm:$0xff]
        %v893 = vld [vmem:[#allocation5 + $0x1508] sm:$0xff]
        %v894 = vld [vmem:[#allocation5 + $0x1510] sm:$0xff]
        %v895 = vld [vmem:[#allocation5 + $0x1518] sm:$0xff]
        %v896 = vld [vmem:[#allocation5 + $0x1520] sm:$0xff]
        %v897 = vld [vmem:[#allocation5 + $0x1528] sm:$0xff]
        %v898 = vld [vmem:[#allocation5 + $0x1530] sm:$0xff]
        %v899 = vld [vmem:[#allocation5 + $0x1538] sm:$0xff]
        %v900 = vld [vmem:[#allocation5 + $0x1540] sm:$0xff]
        %v901 = vld [vmem:[#allocation5 + $0x1548] sm:$0xff]
        %v902 = vld [vmem:[#allocation5 + $0x1550] sm:$0xff]
        %v903 = vld [vmem:[#allocation5 + $0x1558] sm:$0xff]
        %v904 = vld [vmem:[#allocation5 + $0x1560] sm:$0xff]
        %v905 = vld [vmem:[#allocation5 + $0x1568] sm:$0xff]
        %v906 = vld [vmem:[#allocation5 + $0x1570] sm:$0xff]
        %v907 = vld [vmem:[#allocation5 + $0x1578] sm:$0xff]
        %v908 = vld [vmem:[#allocation5 + $0x1580] sm:$0xff]
        %v909 = vld [vmem:[#allocation5 + $0x1588] sm:$0xff]
        %v910 = vld [vmem:[#allocation5 + $0x1590] sm:$0xff]
        %v911 = vld [vmem:[#allocation5 + $0x1598] sm:$0xff]
        %v912 = vld [vmem:[#allocation5 + $0x15a0] sm:$0xff]
        %v913 = vld [vmem:[#allocation5 + $0x15a8] sm:$0xff]
        %v914 = vld [vmem:[#allocation5 + $0x15b0] sm:$0xff]
        %v915 = vld [vmem:[#allocation5 + $0x15b8] sm:$0xff]
        %v916 = vld [vmem:[#allocation5 + $0x15c0] sm:$0xff]
        %v917 = vld [vmem:[#allocation5 + $0x15c8] sm:$0xff]
        %v918 = vld [vmem:[#allocation5 + $0x15d0] sm:$0xff]
        %v919 = vld [vmem:[#allocation5 + $0x15d8] sm:$0xff]
        %v920 = vld [vmem:[#allocation5 + $0x15e0] sm:$0xff]
        %v921 = vld [vmem:[#allocation5 + $0x15e8] sm:$0xff]
        %v922 = vld [vmem:[#allocation5 + $0x15f0] sm:$0xff]
        %v923 = vld [vmem:[#allocation5 + $0x15f8] sm:$0xff]
        %v924 = vld [vmem:[#allocation5 + $0x1600] sm:$0xff]
        %v925 = vld [vmem:[#allocation5 + $0x1608] sm:$0xff]
        %v926 = vld [vmem:[#allocation5 + $0x1610] sm:$0xff]
        %v927 = vld [vmem:[#allocation5 + $0x1618] sm:$0xff]
        %v928 = vld [vmem:[#allocation5 + $0x1620] sm:$0xff]
        %v929 = vld [vmem:[#allocation5 + $0x1628] sm:$0xff]
        %v930 = vld [vmem:[#allocation5 + $0x1630] sm:$0xff]
        %v931 = vld [vmem:[#allocation5 + $0x1638] sm:$0xff]
        %v932 = vld [vmem:[#allocation5 + $0x1640] sm:$0xff]
        %v933 = vld [vmem:[#allocation5 + $0x1648] sm:$0xff]
        %v934 = vld [vmem:[#allocation5 + $0x1650] sm:$0xff]
        %v935 = vld [vmem:[#allocation5 + $0x1658] sm:$0xff]
        %v936 = vld [vmem:[#allocation5 + $0x1660] sm:$0xff]
        %v937 = vld [vmem:[#allocation5 + $0x1668] sm:$0xff]
        %v938 = vld [vmem:[#allocation5 + $0x1670] sm:$0xff]
        %v939 = vld [vmem:[#allocation5 + $0x1678] sm:$0xff]
        %v940 = vld [vmem:[#allocation5 + $0x1680] sm:$0xff]
        %v941 = vld [vmem:[#allocation5 + $0x1688] sm:$0xff]
        %v942 = vld [vmem:[#allocation5 + $0x1690] sm:$0xff]
        %v943 = vld [vmem:[#allocation5 + $0x1698] sm:$0xff]
        %v944 = vld [vmem:[#allocation5 + $0x16a0] sm:$0xff]
        %v945 = vld [vmem:[#allocation5 + $0x16a8] sm:$0xff]
        %v946 = vld [vmem:[#allocation5 + $0x16b0] sm:$0xff]
        %v947 = vld [vmem:[#allocation5 + $0x16b8] sm:$0xff]
        %v948 = vld [vmem:[#allocation5 + $0x16c0] sm:$0xff]
        %v949 = vld [vmem:[#allocation5 + $0x16c8] sm:$0xff]
        %v950 = vld [vmem:[#allocation5 + $0x16d0] sm:$0xff]
        %v951 = vld [vmem:[#allocation5 + $0x16d8] sm:$0xff]
        %v952 = vld [vmem:[#allocation5 + $0x16e0] sm:$0xff]
        %v953 = vld [vmem:[#allocation5 + $0x16e8] sm:$0xff]
        %v954 = vld [vmem:[#allocation5 + $0x16f0] sm:$0xff]
        %v955 = vld [vmem:[#allocation5 + $0x16f8] sm:$0xff]
        %v956 = vld [vmem:[#allocation5 + $0x1700] sm:$0xff]
        %v957 = vld [vmem:[#allocation5 + $0x1708] sm:$0xff]
        %v958 = vld [vmem:[#allocation5 + $0x1710] sm:$0xff]
        %v959 = vld [vmem:[#allocation5 + $0x1718] sm:$0xff]
        %v960 = vld [vmem:[#allocation5 + $0x1720] sm:$0xff]
        %v961 = vld [vmem:[#allocation5 + $0x1728] sm:$0xff]
        %v962 = vld [vmem:[#allocation5 + $0x1730] sm:$0xff]
        %v963 = vld [vmem:[#allocation5 + $0x1738] sm:$0xff]
        %v964 = vld [vmem:[#allocation5 + $0x1740] sm:$0xff]
        %v965 = vld [vmem:[#allocation5 + $0x1748] sm:$0xff]
        %v966 = vld [vmem:[#allocation5 + $0x1750] sm:$0xff]
        %v967 = vld [vmem:[#allocation5 + $0x1758] sm:$0xff]
        %v968 = vld [vmem:[#allocation5 + $0x1760] sm:$0xff]
        %v969 = vld [vmem:[#allocation5 + $0x1768] sm:$0xff]
        %v970 = vld [vmem:[#allocation5 + $0x1770] sm:$0xff]
        %v971 = vld [vmem:[#allocation5 + $0x1778] sm:$0xff]
        %v972 = vld [vmem:[#allocation5 + $0x1780] sm:$0xff]
        %v973 = vld [vmem:[#allocation5 + $0x1788] sm:$0xff]
        %v974 = vld [vmem:[#allocation5 + $0x1790] sm:$0xff]
        %v975 = vld [vmem:[#allocation5 + $0x1798] sm:$0xff]
        %v976 = vld [vmem:[#allocation5 + $0x17a0] sm:$0xff]
        %v977 = vld [vmem:[#allocation5 + $0x17a8] sm:$0xff]
        %v978 = vld [vmem:[#allocation5 + $0x17b0] sm:$0xff]
        %v979 = vld [vmem:[#allocation5 + $0x17b8] sm:$0xff]
        %v980 = vld [vmem:[#allocation5 + $0x17c0] sm:$0xff]
        %v981 = vld [vmem:[#allocation5 + $0x17c8] sm:$0xff]
        %v982 = vld [vmem:[#allocation5 + $0x17d0] sm:$0xff]
        %v983 = vld [vmem:[#allocation5 + $0x17d8] sm:$0xff]
        %v984 = vld [vmem:[#allocation5 + $0x17e0] sm:$0xff]
        %v985 = vld [vmem:[#allocation5 + $0x17e8] sm:$0xff]
        %v986 = vld [vmem:[#allocation5 + $0x17f0] sm:$0xff]
        %v987 = vld [vmem:[#allocation5 + $0x17f8] sm:$0xff]
        %v988 = vld [vmem:[#allocation5 + $0x1800] sm:$0xff]
        %v989 = vld [vmem:[#allocation5 + $0x1808] sm:$0xff]
        %v990 = vld [vmem:[#allocation5 + $0x1810] sm:$0xff]
        %v991 = vld [vmem:[#allocation5 + $0x1818] sm:$0xff]
        %v992 = vld [vmem:[#allocation5 + $0x1820] sm:$0xff]
        %v993 = vld [vmem:[#allocation5 + $0x1828] sm:$0xff]
        %v994 = vld [vmem:[#allocation5 + $0x1830] sm:$0xff]
        %v995 = vld [vmem:[#allocation5 + $0x1838] sm:$0xff]
        %v996 = vld [vmem:[#allocation5 + $0x1840] sm:$0xff]
        %v997 = vld [vmem:[#allocation5 + $0x1848] sm:$0xff]
        %v998 = vld [vmem:[#allocation5 + $0x1850] sm:$0xff]
        %v999 = vld [vmem:[#allocation5 + $0x1858] sm:$0xff]
        %v1000 = vld [vmem:[#allocation5 + $0x1860] sm:$0xff]
        %v1001 = vld [vmem:[#allocation5 + $0x1868] sm:$0xff]
        %v1002 = vld [vmem:[#allocation5 + $0x1870] sm:$0xff]
        %v1003 = vld [vmem:[#allocation5 + $0x1878] sm:$0xff]
        %v1004 = vld [vmem:[#allocation5 + $0x1880] sm:$0xff]
        %v1005 = vld [vmem:[#allocation5 + $0x1888] sm:$0xff]
        %v1006 = vld [vmem:[#allocation5 + $0x1890] sm:$0xff]
        %v1007 = vld [vmem:[#allocation5 + $0x1898] sm:$0xff]
        %v1008 = vld [vmem:[#allocation5 + $0x18a0] sm:$0xff]
        %v1009 = vld [vmem:[#allocation5 + $0x18a8] sm:$0xff]
        %v1010 = vld [vmem:[#allocation5 + $0x18b0] sm:$0xff]
        %v1011 = vld [vmem:[#allocation5 + $0x18b8] sm:$0xff]
        %v1012 = vld [vmem:[#allocation5 + $0x18c0] sm:$0xff]
        %v1013 = vld [vmem:[#allocation5 + $0x18c8] sm:$0xff]
        %v1014 = vld [vmem:[#allocation5 + $0x18d0] sm:$0xff]
        %v1015 = vld [vmem:[#allocation5 + $0x18d8] sm:$0xff]
        %v1016 = vld [vmem:[#allocation5 + $0x18e0] sm:$0xff]
        %v1017 = vld [vmem:[#allocation5 + $0x18e8] sm:$0xff]
        %v1018 = vld [vmem:[#allocation5 + $0x18f0] sm:$0xff]
        %v1019 = vld [vmem:[#allocation5 + $0x18f8] sm:$0xff]
        %v1020 = vld [vmem:[#allocation5 + $0x1900] sm:$0xff]
        %v1021 = vld [vmem:[#allocation5 + $0x1908] sm:$0xff]
        %v1022 = vld [vmem:[#allocation5 + $0x1910] sm:$0xff]
        %v1023 = vld [vmem:[#allocation5 + $0x1918] sm:$0xff]
        %v1024 = vld [vmem:[#allocation5 + $0x1920] sm:$0xff]
        %v1025 = vld [vmem:[#allocation5 + $0x1928] sm:$0xff]
        %v1026 = vld [vmem:[#allocation5 + $0x1930] sm:$0xff]
        %v1027 = vld [vmem:[#allocation5 + $0x1938] sm:$0xff]
        %v1028 = vld [vmem:[#allocation5 + $0x1940] sm:$0xff]
        %v1029 = vld [vmem:[#allocation5 + $0x1948] sm:$0xff]
        %v1030 = vld [vmem:[#allocation5 + $0x1950] sm:$0xff]
        %v1031 = vld [vmem:[#allocation5 + $0x1958] sm:$0xff]
        %v1032 = vld [vmem:[#allocation5 + $0x1960] sm:$0xff]
        %v1033 = vld [vmem:[#allocation5 + $0x1968] sm:$0xff]
        %v1034 = vld [vmem:[#allocation5 + $0x1970] sm:$0xff]
        %v1035 = vld [vmem:[#allocation5 + $0x1978] sm:$0xff]
        %v1036 = vld [vmem:[#allocation5 + $0x1980] sm:$0xff]
        %v1037 = vld [vmem:[#allocation5 + $0x1988] sm:$0xff]
        %v1038 = vld [vmem:[#allocation5 + $0x1990] sm:$0xff]
        %v1039 = vld [vmem:[#allocation5 + $0x1998] sm:$0xff]
        %v1040 = vld [vmem:[#allocation5 + $0x19a0] sm:$0xff]
        %v1041 = vld [vmem:[#allocation5 + $0x19a8] sm:$0xff]
        %v1042 = vld [vmem:[#allocation5 + $0x19b0] sm:$0xff]
        %v1043 = vld [vmem:[#allocation5 + $0x19b8] sm:$0xff]
        %v1044 = vld [vmem:[#allocation5 + $0x19c0] sm:$0xff]
        %v1045 = vld [vmem:[#allocation5 + $0x19c8] sm:$0xff]
        %v1046 = vld [vmem:[#allocation5 + $0x19d0] sm:$0xff]
        %v1047 = vld [vmem:[#allocation5 + $0x19d8] sm:$0xff]
        %v1048 = vld [vmem:[#allocation5 + $0x19e0] sm:$0xff]
        %v1049 = vld [vmem:[#allocation5 + $0x19e8] sm:$0xff]
        %v1050 = vld [vmem:[#allocation5 + $0x19f0] sm:$0xff]
        %v1051 = vld [vmem:[#allocation5 + $0x19f8] sm:$0xff]
        %v1052 = vld [vmem:[#allocation5 + $0x1a00] sm:$0xff]
        %v1053 = vld [vmem:[#allocation5 + $0x1a08] sm:$0xff]
        %v1054 = vld [vmem:[#allocation5 + $0x1a10] sm:$0xff]
        %v1055 = vld [vmem:[#allocation5 + $0x1a18] sm:$0xff]
        %v1056 = vld [vmem:[#allocation5 + $0x1a20] sm:$0xff]
        %v1057 = vld [vmem:[#allocation5 + $0x1a28] sm:$0xff]
        %v1058 = vld [vmem:[#allocation5 + $0x1a30] sm:$0xff]
        %v1059 = vld [vmem:[#allocation5 + $0x1a38] sm:$0xff]
        %v1060 = vld [vmem:[#allocation5 + $0x1a40] sm:$0xff]
        %v1061 = vld [vmem:[#allocation5 + $0x1a48] sm:$0xff]
        %v1062 = vld [vmem:[#allocation5 + $0x1a50] sm:$0xff]
        %v1063 = vld [vmem:[#allocation5 + $0x1a58] sm:$0xff]
        %v1064 = vld [vmem:[#allocation5 + $0x1a60] sm:$0xff]
        %v1065 = vld [vmem:[#allocation5 + $0x1a68] sm:$0xff]
        %v1066 = vld [vmem:[#allocation5 + $0x1a70] sm:$0xff]
        %v1067 = vld [vmem:[#allocation5 + $0x1a78] sm:$0xff]
        %v1068 = vld [vmem:[#allocation5 + $0x1a80] sm:$0xff]
        %v1069 = vld [vmem:[#allocation5 + $0x1a88] sm:$0xff]
        %v1070 = vld [vmem:[#allocation5 + $0x1a90] sm:$0xff]
        %v1071 = vld [vmem:[#allocation5 + $0x1a98] sm:$0xff]
        %v1072 = vld [vmem:[#allocation5 + $0x1aa0] sm:$0xff]
        %v1073 = vld [vmem:[#allocation5 + $0x1aa8] sm:$0xff]
        %v1074 = vld [vmem:[#allocation5 + $0x1ab0] sm:$0xff]
        %v1075 = vld [vmem:[#allocation5 + $0x1ab8] sm:$0xff]
        %v1076 = vld [vmem:[#allocation5 + $0x1ac0] sm:$0xff]
        %v1077 = vld [vmem:[#allocation5 + $0x1ac8] sm:$0xff]
        %v1078 = vld [vmem:[#allocation5 + $0x1ad0] sm:$0xff]
        %v1079 = vld [vmem:[#allocation5 + $0x1ad8] sm:$0xff]
        %v1080 = vld [vmem:[#allocation5 + $0x1ae0] sm:$0xff]
        %v1081 = vld [vmem:[#allocation5 + $0x1ae8] sm:$0xff]
        %v1082 = vld [vmem:[#allocation5 + $0x1af0] sm:$0xff]
        %v1083 = vld [vmem:[#allocation5 + $0x1af8] sm:$0xff]
        %v1084 = vld [vmem:[#allocation5 + $0x1b00] sm:$0xff]
        %v1085 = vld [vmem:[#allocation5 + $0x1b08] sm:$0xff]
        %v1086 = vld [vmem:[#allocation5 + $0x1b10] sm:$0xff]
        %v1087 = vld [vmem:[#allocation5 + $0x1b18] sm:$0xff]
        %v1088 = vld [vmem:[#allocation5 + $0x1b20] sm:$0xff]
        %v1089 = vld [vmem:[#allocation5 + $0x1b28] sm:$0xff]
        %v1090 = vld [vmem:[#allocation5 + $0x1b30] sm:$0xff]
        %v1091 = vld [vmem:[#allocation5 + $0x1b38] sm:$0xff]
        %v1092 = vld [vmem:[#allocation5 + $0x1b40] sm:$0xff]
        %v1093 = vld [vmem:[#allocation5 + $0x1b48] sm:$0xff]
        %v1094 = vld [vmem:[#allocation5 + $0x1b50] sm:$0xff]
        %v1095 = vld [vmem:[#allocation5 + $0x1b58] sm:$0xff]
        %v1096 = vld [vmem:[#allocation5 + $0x1b60] sm:$0xff]
        %v1097 = vld [vmem:[#allocation5 + $0x1b68] sm:$0xff]
        %v1098 = vld [vmem:[#allocation5 + $0x1b70] sm:$0xff]
        %v1099 = vld [vmem:[#allocation5 + $0x1b78] sm:$0xff]
        %v1100 = vld [vmem:[#allocation5 + $0x1b80] sm:$0xff]
        %v1101 = vld [vmem:[#allocation5 + $0x1b88] sm:$0xff]
        %v1102 = vld [vmem:[#allocation5 + $0x1b90] sm:$0xff]
        %v1103 = vld [vmem:[#allocation5 + $0x1b98] sm:$0xff]
        %v1104 = vld [vmem:[#allocation5 + $0x1ba0] sm:$0xff]
        %v1105 = vld [vmem:[#allocation5 + $0x1ba8] sm:$0xff]
        %v1106 = vld [vmem:[#allocation5 + $0x1bb0] sm:$0xff]
        %v1107 = vld [vmem:[#allocation5 + $0x1bb8] sm:$0xff]
        %v1108 = vld [vmem:[#allocation5 + $0x1bc0] sm:$0xff]
        %v1109 = vld [vmem:[#allocation5 + $0x1bc8] sm:$0xff]
        %v1110 = vld [vmem:[#allocation5 + $0x1bd0] sm:$0xff]
        %v1111 = vld [vmem:[#allocation5 + $0x1bd8] sm:$0xff]
        %v1112 = vld [vmem:[#allocation5 + $0x1be0] sm:$0xff]
        %v1113 = vld [vmem:[#allocation5 + $0x1be8] sm:$0xff]
        %v1114 = vld [vmem:[#allocation5 + $0x1bf0] sm:$0xff]
        %v1115 = vld [vmem:[#allocation5 + $0x1bf8] sm:$0xff]
        %v1116 = vld [vmem:[#allocation5 + $0x1c00] sm:$0xff]
        %v1117 = vld [vmem:[#allocation5 + $0x1c08] sm:$0xff]
        %v1118 = vld [vmem:[#allocation5 + $0x1c10] sm:$0xff]
        %v1119 = vld [vmem:[#allocation5 + $0x1c18] sm:$0xff]
        %v1120 = vld [vmem:[#allocation5 + $0x1c20] sm:$0xff]
        %v1121 = vld [vmem:[#allocation5 + $0x1c28] sm:$0xff]
        %v1122 = vld [vmem:[#allocation5 + $0x1c30] sm:$0xff]
        %v1123 = vld [vmem:[#allocation5 + $0x1c38] sm:$0xff]
        %v1124 = vld [vmem:[#allocation5 + $0x1c40] sm:$0xff]
        %v1125 = vld [vmem:[#allocation5 + $0x1c48] sm:$0xff]
        %v1126 = vld [vmem:[#allocation5 + $0x1c50] sm:$0xff]
        %v1127 = vld [vmem:[#allocation5 + $0x1c58] sm:$0xff]
        %v1128 = vld [vmem:[#allocation5 + $0x1c60] sm:$0xff]
        %v1129 = vld [vmem:[#allocation5 + $0x1c68] sm:$0xff]
        %v1130 = vld [vmem:[#allocation5 + $0x1c70] sm:$0xff]
        %v1131 = vld [vmem:[#allocation5 + $0x1c78] sm:$0xff]
        %v1132 = vld [vmem:[#allocation5 + $0x1c80] sm:$0xff]
        %v1133 = vld [vmem:[#allocation5 + $0x1c88] sm:$0xff]
        %v1134 = vld [vmem:[#allocation5 + $0x1c90] sm:$0xff]
        %v1135 = vld [vmem:[#allocation5 + $0x1c98] sm:$0xff]
        %v1136 = vld [vmem:[#allocation5 + $0x1ca0] sm:$0xff]
        %v1137 = vld [vmem:[#allocation5 + $0x1ca8] sm:$0xff]
        %v1138 = vld [vmem:[#allocation5 + $0x1cb0] sm:$0xff]
        %v1139 = vld [vmem:[#allocation5 + $0x1cb8] sm:$0xff]
        %v1140 = vld [vmem:[#allocation5 + $0x1cc0] sm:$0xff]
        %v1141 = vld [vmem:[#allocation5 + $0x1cc8] sm:$0xff]
        %v1142 = vld [vmem:[#allocation5 + $0x1cd0] sm:$0xff]
        %v1143 = vld [vmem:[#allocation5 + $0x1cd8] sm:$0xff]
        %v1144 = vld [vmem:[#allocation5 + $0x1ce0] sm:$0xff]
        %v1145 = vld [vmem:[#allocation5 + $0x1ce8] sm:$0xff]
        %v1146 = vld [vmem:[#allocation5 + $0x1cf0] sm:$0xff]
        %v1147 = vld [vmem:[#allocation5 + $0x1cf8] sm:$0xff]
        %v1148 = vld [vmem:[#allocation5 + $0x1d00] sm:$0xff]
        %v1149 = vld [vmem:[#allocation5 + $0x1d08] sm:$0xff]
        %v1150 = vld [vmem:[#allocation5 + $0x1d10] sm:$0xff]
        %v1151 = vld [vmem:[#allocation5 + $0x1d18] sm:$0xff]
        %v1152 = vld [vmem:[#allocation5 + $0x1d20] sm:$0xff]
        %v1153 = vld [vmem:[#allocation5 + $0x1d28] sm:$0xff]
        %v1154 = vld [vmem:[#allocation5 + $0x1d30] sm:$0xff]
        %v1155 = vld [vmem:[#allocation5 + $0x1d38] sm:$0xff]
        %v1156 = vld [vmem:[#allocation5 + $0x1d40] sm:$0xff]
        %v1157 = vld [vmem:[#allocation5 + $0x1d48] sm:$0xff]
        %v1158 = vld [vmem:[#allocation5 + $0x1d50] sm:$0xff]
        %v1159 = vld [vmem:[#allocation5 + $0x1d58] sm:$0xff]
        %v1160 = vld [vmem:[#allocation5 + $0x1d60] sm:$0xff]
        %v1161 = vld [vmem:[#allocation5 + $0x1d68] sm:$0xff]
        %v1162 = vld [vmem:[#allocation5 + $0x1d70] sm:$0xff]
        %v1163 = vld [vmem:[#allocation5 + $0x1d78] sm:$0xff]
        %v1164 = vld [vmem:[#allocation5 + $0x1d80] sm:$0xff]
        %v1165 = vld [vmem:[#allocation5 + $0x1d88] sm:$0xff]
        %v1166 = vld [vmem:[#allocation5 + $0x1d90] sm:$0xff]
        %v1167 = vld [vmem:[#allocation5 + $0x1d98] sm:$0xff]
        %v1168 = vld [vmem:[#allocation5 + $0x1da0] sm:$0xff]
        %v1169 = vld [vmem:[#allocation5 + $0x1da8] sm:$0xff]
        %v1170 = vld [vmem:[#allocation5 + $0x1db0] sm:$0xff]
        %v1171 = vld [vmem:[#allocation5 + $0x1db8] sm:$0xff]
        %v1172 = vld [vmem:[#allocation5 + $0x1dc0] sm:$0xff]
        %v1173 = vld [vmem:[#allocation5 + $0x1dc8] sm:$0xff]
        %v1174 = vld [vmem:[#allocation5 + $0x1dd0] sm:$0xff]
        %v1175 = vld [vmem:[#allocation5 + $0x1dd8] sm:$0xff]
        %v1176 = vld [vmem:[#allocation5 + $0x1de0] sm:$0xff]
        %v1177 = vld [vmem:[#allocation5 + $0x1de8] sm:$0xff]
        %v1178 = vld [vmem:[#allocation5 + $0x1df0] sm:$0xff]
        %v1179 = vld [vmem:[#allocation5 + $0x1df8] sm:$0xff]
        %v1180 = vld [vmem:[#allocation5 + $0x1e00] sm:$0xff]
        %v1181 = vld [vmem:[#allocation5 + $0x1e08] sm:$0xff]
        %v1182 = vld [vmem:[#allocation5 + $0x1e10] sm:$0xff]
        %v1183 = vld [vmem:[#allocation5 + $0x1e18] sm:$0xff]
        %v1184 = vld [vmem:[#allocation5 + $0x1e20] sm:$0xff]
        %v1185 = vld [vmem:[#allocation5 + $0x1e28] sm:$0xff]
        %v1186 = vld [vmem:[#allocation5 + $0x1e30] sm:$0xff]
        %v1187 = vld [vmem:[#allocation5 + $0x1e38] sm:$0xff]
        %v1188 = vld [vmem:[#allocation5 + $0x1e40] sm:$0xff]
        %v1189 = vld [vmem:[#allocation5 + $0x1e48] sm:$0xff]
        %v1190 = vld [vmem:[#allocation5 + $0x1e50] sm:$0xff]
        %v1191 = vld [vmem:[#allocation5 + $0x1e58] sm:$0xff]
        %v1192 = vld [vmem:[#allocation5 + $0x1e60] sm:$0xff]
        %v1193 = vld [vmem:[#allocation5 + $0x1e68] sm:$0xff]
        %v1194 = vld [vmem:[#allocation5 + $0x1e70] sm:$0xff]
        %v1195 = vld [vmem:[#allocation5 + $0x1e78] sm:$0xff]
        %v1196 = vld [vmem:[#allocation5 + $0x1e80] sm:$0xff]
        %v1197 = vld [vmem:[#allocation5 + $0x1e88] sm:$0xff]
        %v1198 = vld [vmem:[#allocation5 + $0x1e90] sm:$0xff]
        %v1199 = vld [vmem:[#allocation5 + $0x1e98] sm:$0xff]
        %v1200 = vld [vmem:[#allocation5 + $0x1ea0] sm:$0xff]
        %v1201 = vld [vmem:[#allocation5 + $0x1ea8] sm:$0xff]
        %v1202 = vld [vmem:[#allocation5 + $0x1eb0] sm:$0xff]
        %v1203 = vld [vmem:[#allocation5 + $0x1eb8] sm:$0xff]
        %v1204 = vld [vmem:[#allocation5 + $0x1ec0] sm:$0xff]
        %v1205 = vld [vmem:[#allocation5 + $0x1ec8] sm:$0xff]
        %v1206 = vld [vmem:[#allocation5 + $0x1ed0] sm:$0xff]
        %v1207 = vld [vmem:[#allocation5 + $0x1ed8] sm:$0xff]
        %v1208 = vld [vmem:[#allocation5 + $0x1ee0] sm:$0xff]
        %v1209 = vld [vmem:[#allocation5 + $0x1ee8] sm:$0xff]
        %v1210 = vld [vmem:[#allocation5 + $0x1ef0] sm:$0xff]
        %v1211 = vld [vmem:[#allocation5 + $0x1ef8] sm:$0xff]
        %v1212 = vld [vmem:[#allocation5 + $0x1f00] sm:$0xff]
        %v1213 = vld [vmem:[#allocation5 + $0x1f08] sm:$0xff]
        %v1214 = vld [vmem:[#allocation5 + $0x1f10] sm:$0xff]
        %v1215 = vld [vmem:[#allocation5 + $0x1f18] sm:$0xff]
        %v1216 = vld [vmem:[#allocation5 + $0x1f20] sm:$0xff]
        %v1217 = vld [vmem:[#allocation5 + $0x1f28] sm:$0xff]
        %v1218 = vld [vmem:[#allocation5 + $0x1f30] sm:$0xff]
        %v1219 = vld [vmem:[#allocation5 + $0x1f38] sm:$0xff]
        %v1220 = vld [vmem:[#allocation5 + $0x1f40] sm:$0xff]
        %v1221 = vld [vmem:[#allocation5 + $0x1f48] sm:$0xff]
        %v1222 = vld [vmem:[#allocation5 + $0x1f50] sm:$0xff]
        %v1223 = vld [vmem:[#allocation5 + $0x1f58] sm:$0xff]
        %v1224 = vld [vmem:[#allocation5 + $0x1f60] sm:$0xff]
        %v1225 = vld [vmem:[#allocation5 + $0x1f68] sm:$0xff]
        %v1226 = vld [vmem:[#allocation5 + $0x1f70] sm:$0xff]
        %v1227 = vld [vmem:[#allocation5 + $0x1f78] sm:$0xff]
        %v1228 = vld [vmem:[#allocation5 + $0x1f80] sm:$0xff]
        %v1229 = vld [vmem:[#allocation5 + $0x1f88] sm:$0xff]
        %v1230 = vld [vmem:[#allocation5 + $0x1f90] sm:$0xff]
        %v1231 = vld [vmem:[#allocation5 + $0x1f98] sm:$0xff]
        %v1232 = vld [vmem:[#allocation5 + $0x1fa0] sm:$0xff]
        %v1233 = vld [vmem:[#allocation5 + $0x1fa8] sm:$0xff]
        %v1234 = vld [vmem:[#allocation5 + $0x1fb0] sm:$0xff]
        %v1235 = vld [vmem:[#allocation5 + $0x1fb8] sm:$0xff]
        %v1236 = vld [vmem:[#allocation5 + $0x1fc0] sm:$0xff]
        %v1237 = vld [vmem:[#allocation5 + $0x1fc8] sm:$0xff]
        %v1238 = vld [vmem:[#allocation5 + $0x1fd0] sm:$0xff]
        %v1239 = vld [vmem:[#allocation5 + $0x1fd8] sm:$0xff]
        %v1240 = vld [vmem:[#allocation5 + $0x1fe0] sm:$0xff]
        %v1241 = vld [vmem:[#allocation5 + $0x1fe8] sm:$0xff]
        %v1242 = vld [vmem:[#allocation5 + $0x1ff0] sm:$0xff]
        %v1243 = vld [vmem:[#allocation5 + $0x1ff8] sm:$0xff]
        %v1244 = vld [vmem:[#allocation5 + $0x2000] sm:$0xff]
        %v1245 = vld [vmem:[#allocation5 + $0x2008] sm:$0xff]
        %v1246 = vld [vmem:[#allocation5 + $0x2010] sm:$0xff]
        %v1247 = vld [vmem:[#allocation5 + $0x2018] sm:$0xff]
        %v1248 = vld [vmem:[#allocation5 + $0x2020] sm:$0xff]
        %v1249 = vld [vmem:[#allocation5 + $0x2028] sm:$0xff]
        %v1250 = vld [vmem:[#allocation5 + $0x2030] sm:$0xff]
        %v1251 = vld [vmem:[#allocation5 + $0x2038] sm:$0xff]
        %v1252 = vld [vmem:[#allocation5 + $0x2040] sm:$0xff]
        %v1253 = vld [vmem:[#allocation5 + $0x2048] sm:$0xff]
        %v1254 = vld [vmem:[#allocation5 + $0x2050] sm:$0xff]
        %v1255 = vld [vmem:[#allocation5 + $0x2058] sm:$0xff]
        %v1256 = vld [vmem:[#allocation5 + $0x2060] sm:$0xff]
        %v1257 = vld [vmem:[#allocation5 + $0x2068] sm:$0xff]
        %v1258 = vld [vmem:[#allocation5 + $0x2070] sm:$0xff]
        %v1259 = vld [vmem:[#allocation5 + $0x2078] sm:$0xff]
        %v1260 = vld [vmem:[#allocation5 + $0x2080] sm:$0xff]
        %v1261 = vld [vmem:[#allocation5 + $0x2088] sm:$0xff]
        %v1262 = vld [vmem:[#allocation5 + $0x2090] sm:$0xff]
        %v1263 = vld [vmem:[#allocation5 + $0x2098] sm:$0xff]
        %v1264 = vld [vmem:[#allocation5 + $0x20a0] sm:$0xff]
        %v1265 = vld [vmem:[#allocation5 + $0x20a8] sm:$0xff]
        %v1266 = vld [vmem:[#allocation5 + $0x20b0] sm:$0xff]
        %v1267 = vld [vmem:[#allocation5 + $0x20b8] sm:$0xff]
        %v1268 = vld [vmem:[#allocation5 + $0x20c0] sm:$0xff]
        %v1269 = vld [vmem:[#allocation5 + $0x20c8] sm:$0xff]
        %v1270 = vld [vmem:[#allocation5 + $0x20d0] sm:$0xff]
        %v1271 = vld [vmem:[#allocation5 + $0x20d8] sm:$0xff]
        %v1272 = vld [vmem:[#allocation5 + $0x20e0] sm:$0xff]
        %v1273 = vld [vmem:[#allocation5 + $0x20e8] sm:$0xff]
        %v1274 = vld [vmem:[#allocation5 + $0x20f0] sm:$0xff]
        %v1275 = vld [vmem:[#allocation5 + $0x20f8] sm:$0xff]
        %v1276 = vld [vmem:[#allocation5 + $0x2100] sm:$0xff]
        %v1277 = vld [vmem:[#allocation5 + $0x2108] sm:$0xff]
        %v1278 = vld [vmem:[#allocation5 + $0x2110] sm:$0xff]
        %v1279 = vld [vmem:[#allocation5 + $0x2118] sm:$0xff]
        %v1280 = vld [vmem:[#allocation5 + $0x2120] sm:$0xff]
        %v1281 = vld [vmem:[#allocation5 + $0x2128] sm:$0xff]
        %v1282 = vld [vmem:[#allocation5 + $0x2130] sm:$0xff]
        %v1283 = vld [vmem:[#allocation5 + $0x2138] sm:$0xff]
        %v1284 = vld [vmem:[#allocation5 + $0x2140] sm:$0xff]
        %v1285 = vld [vmem:[#allocation5 + $0x2148] sm:$0xff]
        %v1286 = vld [vmem:[#allocation5 + $0x2150] sm:$0xff]
        %v1287 = vld [vmem:[#allocation5 + $0x2158] sm:$0xff]
        %v1288 = vld [vmem:[#allocation5 + $0x2160] sm:$0xff]
        %v1289 = vld [vmem:[#allocation5 + $0x2168] sm:$0xff]
        %v1290 = vld [vmem:[#allocation5 + $0x2170] sm:$0xff]
        %v1291 = vld [vmem:[#allocation5 + $0x2178] sm:$0xff]
        %v1292 = vld [vmem:[#allocation5 + $0x2180] sm:$0xff]
        %v1293 = vld [vmem:[#allocation5 + $0x2188] sm:$0xff]
        %v1294 = vld [vmem:[#allocation5 + $0x2190] sm:$0xff]
        %v1295 = vld [vmem:[#allocation5 + $0x2198] sm:$0xff]
        %v1296 = vld [vmem:[#allocation5 + $0x21a0] sm:$0xff]
        %v1297 = vld [vmem:[#allocation5 + $0x21a8] sm:$0xff]
        %v1298 = vld [vmem:[#allocation5 + $0x21b0] sm:$0xff]
        %v1299 = vld [vmem:[#allocation5 + $0x21b8] sm:$0xff]
        %v1300 = vld [vmem:[#allocation5 + $0x21c0] sm:$0xff]
        %v1301 = vld [vmem:[#allocation5 + $0x21c8] sm:$0xff]
        %v1302 = vld [vmem:[#allocation5 + $0x21d0] sm:$0xff]
        %v1303 = vld [vmem:[#allocation5 + $0x21d8] sm:$0xff]
        %v1304 = vld [vmem:[#allocation5 + $0x21e0] sm:$0xff]
        %v1305 = vld [vmem:[#allocation5 + $0x21e8] sm:$0xff]
        %v1306 = vld [vmem:[#allocation5 + $0x21f0] sm:$0xff]
        %v1307 = vld [vmem:[#allocation5 + $0x21f8] sm:$0xff]
        %v1308 = vld [vmem:[#allocation5 + $0x2200] sm:$0xff]
        %v1309 = vld [vmem:[#allocation5 + $0x2208] sm:$0xff]
        %v1310 = vld [vmem:[#allocation5 + $0x2210] sm:$0xff]
        %v1311 = vld [vmem:[#allocation5 + $0x2218] sm:$0xff]
        %v1312 = vld [vmem:[#allocation5 + $0x2220] sm:$0xff]
        %v1313 = vld [vmem:[#allocation5 + $0x2228] sm:$0xff]
        %v1314 = vld [vmem:[#allocation5 + $0x2230] sm:$0xff]
        %v1315 = vld [vmem:[#allocation5 + $0x2238] sm:$0xff]
        %v1316 = vld [vmem:[#allocation5 + $0x2240] sm:$0xff]
        %v1317 = vld [vmem:[#allocation5 + $0x2248] sm:$0xff]
        %v1318 = vld [vmem:[#allocation5 + $0x2250] sm:$0xff]
        %v1319 = vld [vmem:[#allocation5 + $0x2258] sm:$0xff]
        %v1320 = vld [vmem:[#allocation5 + $0x2260] sm:$0xff]
        %v1321 = vld [vmem:[#allocation5 + $0x2268] sm:$0xff]
        %v1322 = vld [vmem:[#allocation5 + $0x2270] sm:$0xff]
        %v1323 = vld [vmem:[#allocation5 + $0x2278] sm:$0xff]
        %v1324 = vld [vmem:[#allocation5 + $0x2280] sm:$0xff]
        %v1325 = vld [vmem:[#allocation5 + $0x2288] sm:$0xff]
        %v1326 = vld [vmem:[#allocation5 + $0x2290] sm:$0xff]
        %v1327 = vld [vmem:[#allocation5 + $0x2298] sm:$0xff]
        %v1328 = vld [vmem:[#allocation5 + $0x22a0] sm:$0xff]
        %v1329 = vld [vmem:[#allocation5 + $0x22a8] sm:$0xff]
        %v1330 = vld [vmem:[#allocation5 + $0x22b0] sm:$0xff]
        %v1331 = vld [vmem:[#allocation5 + $0x22b8] sm:$0xff]
        %v1332 = vld [vmem:[#allocation5 + $0x22c0] sm:$0xff]
        %v1333 = vld [vmem:[#allocation5 + $0x22c8] sm:$0xff]
        %v1334 = vld [vmem:[#allocation5 + $0x22d0] sm:$0xff]
        %v1335 = vld [vmem:[#allocation5 + $0x22d8] sm:$0xff]
        %v1336 = vld [vmem:[#allocation5 + $0x22e0] sm:$0xff]
        %v1337 = vld [vmem:[#allocation5 + $0x22e8] sm:$0xff]
        %v1338 = vld [vmem:[#allocation5 + $0x22f0] sm:$0xff]
        %v1339 = vld [vmem:[#allocation5 + $0x22f8] sm:$0xff]
        %v1340 = vld [vmem:[#allocation5 + $0x2300] sm:$0xff]
        %v1341 = vld [vmem:[#allocation5 + $0x2308] sm:$0xff]
        %v1342 = vld [vmem:[#allocation5 + $0x2310] sm:$0xff]
        %v1343 = vld [vmem:[#allocation5 + $0x2318] sm:$0xff]
        %v1344 = vld [vmem:[#allocation5 + $0x2320] sm:$0xff]
        %v1345 = vld [vmem:[#allocation5 + $0x2328] sm:$0xff]
        %v1346 = vld [vmem:[#allocation5 + $0x2330] sm:$0xff]
        %v1347 = vld [vmem:[#allocation5 + $0x2338] sm:$0xff]
        %v1348 = vld [vmem:[#allocation5 + $0x2340] sm:$0xff]
        %v1349 = vld [vmem:[#allocation5 + $0x2348] sm:$0xff]
        %v1350 = vld [vmem:[#allocation5 + $0x2350] sm:$0xff]
        %v1351 = vld [vmem:[#allocation5 + $0x2358] sm:$0xff]
        %v1352 = vld [vmem:[#allocation5 + $0x2360] sm:$0xff]
        %v1353 = vld [vmem:[#allocation5 + $0x2368] sm:$0xff]
        %v1354 = vld [vmem:[#allocation5 + $0x2370] sm:$0xff]
        %v1355 = vld [vmem:[#allocation5 + $0x2378] sm:$0xff]
        %v1356 = vld [vmem:[#allocation5 + $0x2380] sm:$0xff]
        %v1357 = vld [vmem:[#allocation5 + $0x2388] sm:$0xff]
        %v1358 = vld [vmem:[#allocation5 + $0x2390] sm:$0xff]
        %v1359 = vld [vmem:[#allocation5 + $0x2398] sm:$0xff]
        %v1360 = vld [vmem:[#allocation5 + $0x23a0] sm:$0xff]
        %v1361 = vld [vmem:[#allocation5 + $0x23a8] sm:$0xff]
        %v1362 = vld [vmem:[#allocation5 + $0x23b0] sm:$0xff]
        %v1363 = vld [vmem:[#allocation5 + $0x23b8] sm:$0xff]
        %v1364 = vld [vmem:[#allocation5 + $0x23c0] sm:$0xff]
        %v1365 = vld [vmem:[#allocation5 + $0x23c8] sm:$0xff]
        %v1366 = vld [vmem:[#allocation5 + $0x23d0] sm:$0xff]
        %v1367 = vld [vmem:[#allocation5 + $0x23d8] sm:$0xff]
        %v1368 = vld [vmem:[#allocation5 + $0x23e0] sm:$0xff]
        %v1369 = vld [vmem:[#allocation5 + $0x23e8] sm:$0xff]
        %v1370 = vld [vmem:[#allocation5 + $0x23f0] sm:$0xff]
        %v1371 = vld [vmem:[#allocation5 + $0x23f8] sm:$0xff]
        %v1372 = vld [vmem:[#allocation7] sm:$0xff]
        %v1373 = vld [vmem:[#allocation7 + $0x8] sm:$0xf]
        %v1376 = vlaneseq
        %v1377 = vshrl.u32 %v1376, 7
        %v1378 = vsub.s32 0, %v1377
        %v1379 = vrot.slane %v1372, %v1378
        %v1380 = vlaneseq
        %v1381 = vshrl.u32 %v1380, 7
        %v1382 = vsub.s32 1, %v1381
        %v1383 = vrot.slane %v1372, %v1382
        %v1384 = vlaneseq
        %v1385 = vshrl.u32 %v1384, 7
        %v1386 = vsub.s32 2, %v1385
        %v1387 = vrot.slane %v1372, %v1386
        %v1388 = vlaneseq
        %v1389 = vshrl.u32 %v1388, 7
        %v1390 = vsub.s32 3, %v1389
        %v1391 = vrot.slane %v1372, %v1390
        %v1392 = vlaneseq
        %v1393 = vshrl.u32 %v1392, 7
        %v1394 = vsub.s32 4, %v1393
        %v1395 = vrot.slane %v1372, %v1394
        %v1396 = vlaneseq
        %v1397 = vshrl.u32 %v1396, 7
        %v1398 = vsub.s32 5, %v1397
        %v1399 = vrot.slane %v1372, %v1398
        %v1400 = vlaneseq
        %v1401 = vshrl.u32 %v1400, 7
        %v1402 = vsub.s32 6, %v1401
        %v1403 = vrot.slane %v1372, %v1402
        %v1404 = vlaneseq
        %v1405 = vshrl.u32 %v1404, 7
        %v1406 = vsub.s32 7, %v1405
        %v1407 = vrot.slane %v1372, %v1406
        %v1408 = vlaneseq
        %v1409 = vshrl.u32 %v1408, 7
        %v1410 = vsub.s32 0, %v1409
        %v1411 = vrot.slane %v1373, %v1410
        %v1412 = vlaneseq
        %v1413 = vshrl.u32 %v1412, 7
        %v1414 = vsub.s32 1, %v1413
        %v1415 = vrot.slane %v1373, %v1414
        %v1416 = vlaneseq
        %v1417 = vshrl.u32 %v1416, 7
        %v1418 = vsub.s32 2, %v1417
        %v1419 = vrot.slane %v1373, %v1418
        %v1420 = vlaneseq
        %v1421 = vshrl.u32 %v1420, 7
        %v1422 = vsub.s32 3, %v1421
        %v1423 = vrot.slane %v1373, %v1422
        %1436 = vmatprep.subr.mxu0 %v221
        %1437 = vmatpush1.msra.mxu0 %v220
        %1438 = vmatprep.subr.mxu0 %v233
        %1439 = vmatpush1.msra.mxu0 %v232
        %1440 = vmatprep.subr.mxu0 %v245
        %1441 = vmatpush1.msra.mxu0 %v244
        %1442 = vmatprep.subr.mxu0 %v257
        %1443 = vmatpush1.msra.mxu0 %v256
        %1444 = vmatprep.subr.mxu0 %v269
        %1445 = vmatpush1.msra.mxu0 %v268
        %1446 = vmatprep.subr.mxu0 %v281
        %1447 = vmatpush1.msra.mxu0 %v280
        %1448 = vmatprep.subr.mxu0 %v293
        %1449 = vmatpush1.msra.mxu0 %v292
        %1450 = vmatprep.subr.mxu0 %v305
        %1451 = vmatpush1.msra.mxu0 %v304
        %1452 = vmatprep.subr.mxu0 %v317
        %1453 = vmatpush1.msra.mxu0 %v316
        %1454 = vmatprep.subr.mxu0 %v329
        %1455 = vmatpush1.msra.mxu0 %v328
        %1456 = vmatprep.subr.mxu0 %v341
        %1457 = vmatpush1.msra.mxu0 %v340
        %1458 = vmatprep.subr.mxu0 %v353
        %1459 = vmatpush1.msra.mxu0 %v352
        %1460 = vmatprep.subr.mxu0 %v365
        %1461 = vmatpush1.msra.mxu0 %v364
        %1462 = vmatprep.subr.mxu0 %v377
        %1463 = vmatpush1.msra.mxu0 %v376
        %1464 = vmatprep.subr.mxu0 %v389
        %1465 = vmatpush1.msra.mxu0 %v388
        %1466 = vmatprep.subr.mxu0 %v401
        %1467 = vmatpush1.msra.mxu0 %v400
        %1468 = vmatprep.subr.mxu0 %v413
        %1469 = vmatpush1.msra.mxu0 %v412
        %1470 = vmatprep.subr.mxu0 %v425
        %1471 = vmatpush1.msra.mxu0 %v424
        %1472 = vmatprep.subr.mxu0 %v437
        %1473 = vmatpush1.msra.mxu0 %v436
        %1474 = vmatprep.subr.mxu0 %v449
        %1475 = vmatpush1.msra.mxu0 %v448
        %1476 = vmatprep.subr.mxu0 %v461
        %1477 = vmatpush1.msra.mxu0 %v460
        %1478 = vmatprep.subr.mxu0 %v473
        %1479 = vmatpush1.msra.mxu0 %v472
        %1480 = vmatprep.subr.mxu0 %v485
        %1481 = vmatpush1.msra.mxu0 %v484
        %1482 = vmatprep.subr.mxu0 %v497
        %1483 = vmatpush1.msra.mxu0 %v496
        %1484 = vmatprep.subr.mxu0 %v509
        %1485 = vmatpush1.msra.mxu0 %v508
        %1486 = vmatprep.subr.mxu0 %v521
        %1487 = vmatpush1.msra.mxu0 %v520
        %1488 = vmatprep.subr.mxu0 %v533
        %1489 = vmatpush1.msra.mxu0 %v532
        %1490 = vmatprep.subr.mxu0 %v545
        %1491 = vmatpush1.msra.mxu0 %v544
        %1492 = vmatprep.subr.mxu0 %v557
        %1493 = vmatpush1.msra.mxu0 %v556
        %1494 = vmatprep.subr.mxu0 %v569
        %1495 = vmatpush1.msra.mxu0 %v568
        %1496 = vmatprep.subr.mxu0 %v581
        %1497 = vmatpush1.msra.mxu0 %v580
        %1498 = vmatprep.subr.mxu0 %v593
        %1499 = vmatpush1.msra.mxu0 %v592
        %1500 = vmatprep.mubr.f32.mxu0 %v215
        %1501 = vmatmul.mubr.f32.gmra.mrb[0].mxu0 %v214
        %v1502 = vpop.f32.mrb[0].mxu0
        %v1503 = vadd.f32 %v1379, %v1502
        %v1504 = vpop.f32.mrb[0].mxu0
        %v1505 = vadd.f32 %v1383, %v1504
        %1506 = vdwg.mxu0
        %1507 = vmatprep.subr.mxu0 %v605
        %1508 = vmatpush1.msra.mxu0 %v604
        %1509 = vmatprep.subr.mxu0 %v617
        %1510 = vmatpush1.msra.mxu0 %v616
        %1511 = vmatprep.subr.mxu0 %v629
        %1512 = vmatpush1.msra.mxu0 %v628
        %1513 = vmatprep.subr.mxu0 %v641
        %1514 = vmatpush1.msra.mxu0 %v640
        %1515 = vmatprep.subr.mxu0 %v653
        %1516 = vmatpush1.msra.mxu0 %v652
        %1517 = vmatprep.subr.mxu0 %v665
        %1518 = vmatpush1.msra.mxu0 %v664
        %1519 = vmatprep.subr.mxu0 %v677
        %1520 = vmatpush1.msra.mxu0 %v676
        %1521 = vmatprep.subr.mxu0 %v689
        %1522 = vmatpush1.msra.mxu0 %v688
        %1523 = vmatprep.subr.mxu0 %v701
        %1524 = vmatpush1.msra.mxu0 %v700
        %1525 = vmatprep.subr.mxu0 %v713
        %1526 = vmatpush1.msra.mxu0 %v712
        %1527 = vmatprep.subr.mxu0 %v725
        %1528 = vmatpush1.msra.mxu0 %v724
        %1529 = vmatprep.subr.mxu0 %v737
        %1530 = vmatpush1.msra.mxu0 %v736
        %1531 = vmatprep.subr.mxu0 %v749
        %1532 = vmatpush1.msra.mxu0 %v748
        %1533 = vmatprep.subr.mxu0 %v761
        %1534 = vmatpush1.msra.mxu0 %v760
        %1535 = vmatprep.subr.mxu0 %v773
        %1536 = vmatpush1.msra.mxu0 %v772
        %1537 = vmatprep.subr.mxu0 %v785
        %1538 = vmatpush1.msra.mxu0 %v784
        %1539 = vmatprep.subr.mxu0 %v797
        %1540 = vmatpush1.msra.mxu0 %v796
        %1541 = vmatprep.subr.mxu0 %v809
        %1542 = vmatpush1.msra.mxu0 %v808
        %1543 = vmatprep.subr.mxu0 %v821
        %1544 = vmatpush1.msra.mxu0 %v820
        %1545 = vmatprep.subr.mxu0 %v833
        %1546 = vmatpush1.msra.mxu0 %v832
        %1547 = vmatprep.subr.mxu0 %v845
        %1548 = vmatpush1.msra.mxu0 %v844
        %1549 = vmatprep.subr.mxu0 %v857
        %1550 = vmatpush1.msra.mxu0 %v856
        %1551 = vmatprep.subr.mxu0 %v869
        %1552 = vmatpush1.msra.mxu0 %v868
        %1553 = vmatprep.subr.mxu0 %v881
        %1554 = vmatpush1.msra.mxu0 %v880
        %1555 = vmatprep.subr.mxu0 %v893
        %1556 = vmatpush1.msra.mxu0 %v892
        %1557 = vmatprep.subr.mxu0 %v905
        %1558 = vmatpush1.msra.mxu0 %v904
        %1559 = vmatprep.subr.mxu0 %v917
        %1560 = vmatpush1.msra.mxu0 %v916
        %1561 = vmatprep.subr.mxu0 %v929
        %1562 = vmatpush1.msra.mxu0 %v928
        %1563 = vmatprep.subr.mxu0 %v941
        %1564 = vmatpush1.msra.mxu0 %v940
        %1565 = vmatprep.subr.mxu0 %v953
        %1566 = vmatpush1.msra.mxu0 %v952
        %1567 = vmatprep.subr.mxu0 %v965
        %1568 = vmatpush1.msra.mxu0 %v964
        %1569 = vmatprep.subr.mxu0 %v977
        %1570 = vmatpush1.msra.mxu0 %v976
        %1571 = vmatprep.mubr.f32.mxu0 %v217
        %1572 = vmatmul.mubr.f32.gmra.mrb[0].mxu0 %v216
        %v1573 = vpop.f32.mrb[0].mxu0
        %v1574 = vadd.f32 %v1503, %v1573
        %v1575 = vpop.f32.mrb[0].mxu0
        %v1576 = vadd.f32 %v1505, %v1575
        %1577 = vdwg.mxu0
        %1578 = vmatprep.subr.mxu0 %v989
        %1579 = vmatpush1.msra.mxu0 %v988
        %1580 = vmatprep.subr.mxu0 %v1001
        %1581 = vmatpush1.msra.mxu0 %v1000
        %1582 = vmatprep.subr.mxu0 %v1013
        %1583 = vmatpush1.msra.mxu0 %v1012
        %1584 = vmatprep.subr.mxu0 %v1025
        %1585 = vmatpush1.msra.mxu0 %v1024
        %1586 = vmatprep.subr.mxu0 %v1037
        %1587 = vmatpush1.msra.mxu0 %v1036
        %1588 = vmatprep.subr.mxu0 %v1049
        %1589 = vmatpush1.msra.mxu0 %v1048
        %1590 = vmatprep.subr.mxu0 %v1061
        %1591 = vmatpush1.msra.mxu0 %v1060
        %1592 = vmatprep.subr.mxu0 %v1073
        %1593 = vmatpush1.msra.mxu0 %v1072
        %1594 = vmatprep.subr.mxu0 %v1085
        %1595 = vmatpush1.msra.mxu0 %v1084
        %1596 = vmatprep.subr.mxu0 %v1097
        %1597 = vmatpush1.msra.mxu0 %v1096
        %1598 = vmatprep.subr.mxu0 %v1109
        %1599 = vmatpush1.msra.mxu0 %v1108
        %1600 = vmatprep.subr.mxu0 %v1121
        %1601 = vmatpush1.msra.mxu0 %v1120
        %1602 = vmatprep.subr.mxu0 %v1133
        %1603 = vmatpush1.msra.mxu0 %v1132
        %1604 = vmatprep.subr.mxu0 %v1145
        %1605 = vmatpush1.msra.mxu0 %v1144
        %1606 = vmatprep.subr.mxu0 %v1157
        %1607 = vmatpush1.msra.mxu0 %v1156
        %1608 = vmatprep.subr.mxu0 %v1169
        %1609 = vmatpush1.msra.mxu0 %v1168
        %1610 = vmatprep.subr.mxu0 %v1181
        %1611 = vmatpush1.msra.mxu0 %v1180
        %1612 = vmatprep.subr.mxu0 %v1193
        %1613 = vmatpush1.msra.mxu0 %v1192
        %1614 = vmatprep.subr.mxu0 %v1205
        %1615 = vmatpush1.msra.mxu0 %v1204
        %1616 = vmatprep.subr.mxu0 %v1217
        %1617 = vmatpush1.msra.mxu0 %v1216
        %1618 = vmatprep.subr.mxu0 %v1229
        %1619 = vmatpush1.msra.mxu0 %v1228
        %1620 = vmatprep.subr.mxu0 %v1241
        %1621 = vmatpush1.msra.mxu0 %v1240
        %1622 = vmatprep.subr.mxu0 %v1253
        %1623 = vmatpush1.msra.mxu0 %v1252
        %1624 = vmatprep.subr.mxu0 %v1265
        %1625 = vmatpush1.msra.mxu0 %v1264
        %1626 = vmatprep.subr.mxu0 %v1277
        %1627 = vmatpush1.msra.mxu0 %v1276
        %1628 = vmatprep.subr.mxu0 %v1289
        %1629 = vmatpush1.msra.mxu0 %v1288
        %1630 = vmatprep.subr.mxu0 %v1301
        %1631 = vmatpush1.msra.mxu0 %v1300
        %1632 = vmatprep.subr.mxu0 %v1313
        %1633 = vmatpush1.msra.mxu0 %v1312
        %1634 = vmatprep.subr.mxu0 %v1325
        %1635 = vmatpush1.msra.mxu0 %v1324
        %1636 = vmatprep.subr.mxu0 %v1337
        %1637 = vmatpush1.msra.mxu0 %v1336
        %1638 = vmatprep.subr.mxu0 %v1349
        %1639 = vmatpush1.msra.mxu0 %v1348
        %1640 = vmatprep.subr.mxu0 %v1361
        %1641 = vmatpush1.msra.mxu0 %v1360
        %1642 = vmatprep.mubr.f32.mxu0 %v219
        %1643 = vmatmul.mubr.f32.gmra.mrb[0].mxu0 %v218
        %v1644 = vpop.f32.mrb[0].mxu0
        %v1645 = vadd.f32 %v1574, %v1644
        %v1646 = vpop.f32.mrb[0].mxu0
        %v1647 = vadd.f32 %v1576, %v1646
        %1648 = vdwg.mxu0
        %1649 = vmatprep.subr.mxu0 %v223
        %1650 = vmatpush1.msra.mxu0 %v222
        %1651 = vmatprep.subr.mxu0 %v235
        %1652 = vmatpush1.msra.mxu0 %v234
        %1653 = vmatprep.subr.mxu0 %v247
        %1654 = vmatpush1.msra.mxu0 %v246
        %1655 = vmatprep.subr.mxu0 %v259
        %1656 = vmatpush1.msra.mxu0 %v258
        %1657 = vmatprep.subr.mxu0 %v271
        %1658 = vmatpush1.msra.mxu0 %v270
        %1659 = vmatprep.subr.mxu0 %v283
        %1660 = vmatpush1.msra.mxu0 %v282
        %1661 = vmatprep.subr.mxu0 %v295
        %1662 = vmatpush1.msra.mxu0 %v294
        %1663 = vmatprep.subr.mxu0 %v307
        %1664 = vmatpush1.msra.mxu0 %v306
        %1665 = vmatprep.subr.mxu0 %v319
        %1666 = vmatpush1.msra.mxu0 %v318
        %1667 = vmatprep.subr.mxu0 %v331
        %1668 = vmatpush1.msra.mxu0 %v330
        %1669 = vmatprep.subr.mxu0 %v343
        %1670 = vmatpush1.msra.mxu0 %v342
        %1671 = vmatprep.subr.mxu0 %v355
        %1672 = vmatpush1.msra.mxu0 %v354
        %1673 = vmatprep.subr.mxu0 %v367
        %1674 = vmatpush1.msra.mxu0 %v366
        %1675 = vmatprep.subr.mxu0 %v379
        %1676 = vmatpush1.msra.mxu0 %v378
        %1677 = vmatprep.subr.mxu0 %v391
        %1678 = vmatpush1.msra.mxu0 %v390
        %1679 = vmatprep.subr.mxu0 %v403
        %1680 = vmatpush1.msra.mxu0 %v402
        %1681 = vmatprep.subr.mxu0 %v415
        %1682 = vmatpush1.msra.mxu0 %v414
        %1683 = vmatprep.subr.mxu0 %v427
        %1684 = vmatpush1.msra.mxu0 %v426
        %1685 = vmatprep.subr.mxu0 %v439
        %1686 = vmatpush1.msra.mxu0 %v438
        %1687 = vmatprep.subr.mxu0 %v451
        %1688 = vmatpush1.msra.mxu0 %v450
        %1689 = vmatprep.subr.mxu0 %v463
        %1690 = vmatpush1.msra.mxu0 %v462
        %1691 = vmatprep.subr.mxu0 %v475
        %1692 = vmatpush1.msra.mxu0 %v474
        %1693 = vmatprep.subr.mxu0 %v487
        %1694 = vmatpush1.msra.mxu0 %v486
        %1695 = vmatprep.subr.mxu0 %v499
        %1696 = vmatpush1.msra.mxu0 %v498
        %1697 = vmatprep.subr.mxu0 %v511
        %1698 = vmatpush1.msra.mxu0 %v510
        %1699 = vmatprep.subr.mxu0 %v523
        %1700 = vmatpush1.msra.mxu0 %v522
        %1701 = vmatprep.subr.mxu0 %v535
        %1702 = vmatpush1.msra.mxu0 %v534
        %1703 = vmatprep.subr.mxu0 %v547
        %1704 = vmatpush1.msra.mxu0 %v546
        %1705 = vmatprep.subr.mxu0 %v559
        %1706 = vmatpush1.msra.mxu0 %v558
        %1707 = vmatprep.subr.mxu0 %v571
        %1708 = vmatpush1.msra.mxu0 %v570
        %1709 = vmatprep.subr.mxu0 %v583
        %1710 = vmatpush1.msra.mxu0 %v582
        %1711 = vmatprep.subr.mxu0 %v595
        %1712 = vmatpush1.msra.mxu0 %v594
        %1713 = vmatprep.mubr.f32.mxu0 %v215
        %1714 = vmatmul.mubr.f32.gmra.mrb[0].mxu0 %v214
        %v1715 = vpop.f32.mrb[0].mxu0
        %v1716 = vadd.f32 %v1387, %v1715
        %v1717 = vpop.f32.mrb[0].mxu0
        %v1718 = vadd.f32 %v1391, %v1717
        %1719 = vdwg.mxu0
        %1720 = vmatprep.subr.mxu0 %v607
        %1721 = vmatpush1.msra.mxu0 %v606
        %1722 = vmatprep.subr.mxu0 %v619
        %1723 = vmatpush1.msra.mxu0 %v618
        %1724 = vmatprep.subr.mxu0 %v631
        %1725 = vmatpush1.msra.mxu0 %v630
        %1726 = vmatprep.subr.mxu0 %v643
        %1727 = vmatpush1.msra.mxu0 %v642
        %1728 = vmatprep.subr.mxu0 %v655
        %1729 = vmatpush1.msra.mxu0 %v654
        %1730 = vmatprep.subr.mxu0 %v667
        %1731 = vmatpush1.msra.mxu0 %v666
        %1732 = vmatprep.subr.mxu0 %v679
        %1733 = vmatpush1.msra.mxu0 %v678
        %1734 = vmatprep.subr.mxu0 %v691
        %1735 = vmatpush1.msra.mxu0 %v690
        %1736 = vmatprep.subr.mxu0 %v703
        %1737 = vmatpush1.msra.mxu0 %v702
        %1738 = vmatprep.subr.mxu0 %v715
        %1739 = vmatpush1.msra.mxu0 %v714
        %1740 = vmatprep.subr.mxu0 %v727
        %1741 = vmatpush1.msra.mxu0 %v726
        %1742 = vmatprep.subr.mxu0 %v739
        %1743 = vmatpush1.msra.mxu0 %v738
        %1744 = vmatprep.subr.mxu0 %v751
        %1745 = vmatpush1.msra.mxu0 %v750
        %1746 = vmatprep.subr.mxu0 %v763
        %1747 = vmatpush1.msra.mxu0 %v762
        %1748 = vmatprep.subr.mxu0 %v775
        %1749 = vmatpush1.msra.mxu0 %v774
        %1750 = vmatprep.subr.mxu0 %v787
        %1751 = vmatpush1.msra.mxu0 %v786
        %1752 = vmatprep.subr.mxu0 %v799
        %1753 = vmatpush1.msra.mxu0 %v798
        %1754 = vmatprep.subr.mxu0 %v811
        %1755 = vmatpush1.msra.mxu0 %v810
        %1756 = vmatprep.subr.mxu0 %v823
        %1757 = vmatpush1.msra.mxu0 %v822
        %1758 = vmatprep.subr.mxu0 %v835
        %1759 = vmatpush1.msra.mxu0 %v834
        %1760 = vmatprep.subr.mxu0 %v847
        %1761 = vmatpush1.msra.mxu0 %v846
        %1762 = vmatprep.subr.mxu0 %v859
        %1763 = vmatpush1.msra.mxu0 %v858
        %1764 = vmatprep.subr.mxu0 %v871
        %1765 = vmatpush1.msra.mxu0 %v870
        %1766 = vmatprep.subr.mxu0 %v883
        %1767 = vmatpush1.msra.mxu0 %v882
        %1768 = vmatprep.subr.mxu0 %v895
        %1769 = vmatpush1.msra.mxu0 %v894
        %1770 = vmatprep.subr.mxu0 %v907
        %1771 = vmatpush1.msra.mxu0 %v906
        %1772 = vmatprep.subr.mxu0 %v919
        %1773 = vmatpush1.msra.mxu0 %v918
        %1774 = vmatprep.subr.mxu0 %v931
        %1775 = vmatpush1.msra.mxu0 %v930
        %1776 = vmatprep.subr.mxu0 %v943
        %1777 = vmatpush1.msra.mxu0 %v942
        %1778 = vmatprep.subr.mxu0 %v955
        %1779 = vmatpush1.msra.mxu0 %v954
        %1780 = vmatprep.subr.mxu0 %v967
        %1781 = vmatpush1.msra.mxu0 %v966
        %1782 = vmatprep.subr.mxu0 %v979
        %1783 = vmatpush1.msra.mxu0 %v978
        %1784 = vmatprep.mubr.f32.mxu0 %v217
        %1785 = vmatmul.mubr.f32.gmra.mrb[0].mxu0 %v216
        %v1786 = vpop.f32.mrb[0].mxu0
        %v1787 = vadd.f32 %v1716, %v1786
        %v1788 = vpop.f32.mrb[0].mxu0
        %v1789 = vadd.f32 %v1718, %v1788
        %1790 = vdwg.mxu0
        %1791 = vmatprep.subr.mxu0 %v991
        %1792 = vmatpush1.msra.mxu0 %v990
        %1793 = vmatprep.subr.mxu0 %v1003
        %1794 = vmatpush1.msra.mxu0 %v1002
        %1795 = vmatprep.subr.mxu0 %v1015
        %1796 = vmatpush1.msra.mxu0 %v1014
        %1797 = vmatprep.subr.mxu0 %v1027
        %1798 = vmatpush1.msra.mxu0 %v1026
        %1799 = vmatprep.subr.mxu0 %v1039
        %1800 = vmatpush1.msra.mxu0 %v1038
        %1801 = vmatprep.subr.mxu0 %v1051
        %1802 = vmatpush1.msra.mxu0 %v1050
        %1803 = vmatprep.subr.mxu0 %v1063
        %1804 = vmatpush1.msra.mxu0 %v1062
        %1805 = vmatprep.subr.mxu0 %v1075
        %1806 = vmatpush1.msra.mxu0 %v1074
        %1807 = vmatprep.subr.mxu0 %v1087
        %1808 = vmatpush1.msra.mxu0 %v1086
        %1809 = vmatprep.subr.mxu0 %v1099
        %1810 = vmatpush1.msra.mxu0 %v1098
        %1811 = vmatprep.subr.mxu0 %v1111
        %1812 = vmatpush1.msra.mxu0 %v1110
        %1813 = vmatprep.subr.mxu0 %v1123
        %1814 = vmatpush1.msra.mxu0 %v1122
        %1815 = vmatprep.subr.mxu0 %v1135
        %1816 = vmatpush1.msra.mxu0 %v1134
        %1817 = vmatprep.subr.mxu0 %v1147
        %1818 = vmatpush1.msra.mxu0 %v1146
        %1819 = vmatprep.subr.mxu0 %v1159
        %1820 = vmatpush1.msra.mxu0 %v1158
        %1821 = vmatprep.subr.mxu0 %v1171
        %1822 = vmatpush1.msra.mxu0 %v1170
        %1823 = vmatprep.subr.mxu0 %v1183
        %1824 = vmatpush1.msra.mxu0 %v1182
        %1825 = vmatprep.subr.mxu0 %v1195
        %1826 = vmatpush1.msra.mxu0 %v1194
        %1827 = vmatprep.subr.mxu0 %v1207
        %1828 = vmatpush1.msra.mxu0 %v1206
        %1829 = vmatprep.subr.mxu0 %v1219
        %1830 = vmatpush1.msra.mxu0 %v1218
        %1831 = vmatprep.subr.mxu0 %v1231
        %1832 = vmatpush1.msra.mxu0 %v1230
        %1833 = vmatprep.subr.mxu0 %v1243
        %1834 = vmatpush1.msra.mxu0 %v1242
        %1835 = vmatprep.subr.mxu0 %v1255
        %1836 = vmatpush1.msra.mxu0 %v1254
        %1837 = vmatprep.subr.mxu0 %v1267
        %1838 = vmatpush1.msra.mxu0 %v1266
        %1839 = vmatprep.subr.mxu0 %v1279
        %1840 = vmatpush1.msra.mxu0 %v1278
        %1841 = vmatprep.subr.mxu0 %v1291
        %1842 = vmatpush1.msra.mxu0 %v1290
        %1843 = vmatprep.subr.mxu0 %v1303
        %1844 = vmatpush1.msra.mxu0 %v1302
        %1845 = vmatprep.subr.mxu0 %v1315
        %1846 = vmatpush1.msra.mxu0 %v1314
        %1847 = vmatprep.subr.mxu0 %v1327
        %1848 = vmatpush1.msra.mxu0 %v1326
        %1849 = vmatprep.subr.mxu0 %v1339
        %1850 = vmatpush1.msra.mxu0 %v1338
        %1851 = vmatprep.subr.mxu0 %v1351
        %1852 = vmatpush1.msra.mxu0 %v1350
        %1853 = vmatprep.subr.mxu0 %v1363
        %1854 = vmatpush1.msra.mxu0 %v1362
        %1855 = vmatprep.mubr.f32.mxu0 %v219
        %1856 = vmatmul.mubr.f32.gmra.mrb[0].mxu0 %v218
        %v1857 = vpop.f32.mrb[0].mxu0
        %v1858 = vadd.f32 %v1787, %v1857
        %v1859 = vpop.f32.mrb[0].mxu0
        %v1860 = vadd.f32 %v1789, %v1859
        %1861 = vdwg.mxu0
        %1862 = vmatprep.subr.mxu0 %v225
        %1863 = vmatpush1.msra.mxu0 %v224
        %1864 = vmatprep.subr.mxu0 %v237
        %1865 = vmatpush1.msra.mxu0 %v236
        %1866 = vmatprep.subr.mxu0 %v249
        %1867 = vmatpush1.msra.mxu0 %v248
        %1868 = vmatprep.subr.mxu0 %v261
        %1869 = vmatpush1.msra.mxu0 %v260
        %1870 = vmatprep.subr.mxu0 %v273
        %1871 = vmatpush1.msra.mxu0 %v272
        %1872 = vmatprep.subr.mxu0 %v285
        %1873 = vmatpush1.msra.mxu0 %v284
        %1874 = vmatprep.subr.mxu0 %v297
        %1875 = vmatpush1.msra.mxu0 %v296
        %1876 = vmatprep.subr.mxu0 %v309
        %1877 = vmatpush1.msra.mxu0 %v308
        %1878 = vmatprep.subr.mxu0 %v321
        %1879 = vmatpush1.msra.mxu0 %v320
        %1880 = vmatprep.subr.mxu0 %v333
        %1881 = vmatpush1.msra.mxu0 %v332
        %1882 = vmatprep.subr.mxu0 %v345
        %1883 = vmatpush1.msra.mxu0 %v344
        %1884 = vmatprep.subr.mxu0 %v357
        %1885 = vmatpush1.msra.mxu0 %v356
        %1886 = vmatprep.subr.mxu0 %v369
        %1887 = vmatpush1.msra.mxu0 %v368
        %1888 = vmatprep.subr.mxu0 %v381
        %1889 = vmatpush1.msra.mxu0 %v380
        %1890 = vmatprep.subr.mxu0 %v393
        %1891 = vmatpush1.msra.mxu0 %v392
        %1892 = vmatprep.subr.mxu0 %v405
        %1893 = vmatpush1.msra.mxu0 %v404
        %1894 = vmatprep.subr.mxu0 %v417
        %1895 = vmatpush1.msra.mxu0 %v416
        %1896 = vmatprep.subr.mxu0 %v429
        %1897 = vmatpush1.msra.mxu0 %v428
        %1898 = vmatprep.subr.mxu0 %v441
        %1899 = vmatpush1.msra.mxu0 %v440
        %1900 = vmatprep.subr.mxu0 %v453
        %1901 = vmatpush1.msra.mxu0 %v452
        %1902 = vmatprep.subr.mxu0 %v465
        %1903 = vmatpush1.msra.mxu0 %v464
        %1904 = vmatprep.subr.mxu0 %v477
        %1905 = vmatpush1.msra.mxu0 %v476
        %1906 = vmatprep.subr.mxu0 %v489
        %1907 = vmatpush1.msra.mxu0 %v488
        %1908 = vmatprep.subr.mxu0 %v501
        %1909 = vmatpush1.msra.mxu0 %v500
        %1910 = vmatprep.subr.mxu0 %v513
        %1911 = vmatpush1.msra.mxu0 %v512
        %1912 = vmatprep.subr.mxu0 %v525
        %1913 = vmatpush1.msra.mxu0 %v524
        %1914 = vmatprep.subr.mxu0 %v537
        %1915 = vmatpush1.msra.mxu0 %v536
        %1916 = vmatprep.subr.mxu0 %v549
        %1917 = vmatpush1.msra.mxu0 %v548
        %1918 = vmatprep.subr.mxu0 %v561
        %1919 = vmatpush1.msra.mxu0 %v560
        %1920 = vmatprep.subr.mxu0 %v573
        %1921 = vmatpush1.msra.mxu0 %v572
        %1922 = vmatprep.subr.mxu0 %v585
        %1923 = vmatpush1.msra.mxu0 %v584
        %1924 = vmatprep.subr.mxu0 %v597
        %1925 = vmatpush1.msra.mxu0 %v596
        %1926 = vmatprep.mubr.f32.mxu0 %v215
        %1927 = vmatmul.mubr.f32.gmra.mrb[0].mxu0 %v214
        %v1928 = vpop.f32.mrb[0].mxu0
        %v1929 = vadd.f32 %v1395, %v1928
        %v1930 = vpop.f32.mrb[0].mxu0
        %v1931 = vadd.f32 %v1399, %v1930
        %1932 = vdwg.mxu0
        %1933 = vmatprep.subr.mxu0 %v609
        %1934 = vmatpush1.msra.mxu0 %v608
        %1935 = vmatprep.subr.mxu0 %v621
        %1936 = vmatpush1.msra.mxu0 %v620
        %1937 = vmatprep.subr.mxu0 %v633
        %1938 = vmatpush1.msra.mxu0 %v632
        %1939 = vmatprep.subr.mxu0 %v645
        %1940 = vmatpush1.msra.mxu0 %v644
        %1941 = vmatprep.subr.mxu0 %v657
        %1942 = vmatpush1.msra.mxu0 %v656
        %1943 = vmatprep.subr.mxu0 %v669
        %1944 = vmatpush1.msra.mxu0 %v668
        %1945 = vmatprep.subr.mxu0 %v681
        %1946 = vmatpush1.msra.mxu0 %v680
        %1947 = vmatprep.subr.mxu0 %v693
        %1948 = vmatpush1.msra.mxu0 %v692
        %1949 = vmatprep.subr.mxu0 %v705
        %1950 = vmatpush1.msra.mxu0 %v704
        %1951 = vmatprep.subr.mxu0 %v717
        %1952 = vmatpush1.msra.mxu0 %v716
        %1953 = vmatprep.subr.mxu0 %v729
        %1954 = vmatpush1.msra.mxu0 %v728
        %1955 = vmatprep.subr.mxu0 %v741
        %1956 = vmatpush1.msra.mxu0 %v740
        %1957 = vmatprep.subr.mxu0 %v753
        %1958 = vmatpush1.msra.mxu0 %v752
        %1959 = vmatprep.subr.mxu0 %v765
        %1960 = vmatpush1.msra.mxu0 %v764
        %1961 = vmatprep.subr.mxu0 %v777
        %1962 = vmatpush1.msra.mxu0 %v776
        %1963 = vmatprep.subr.mxu0 %v789
        %1964 = vmatpush1.msra.mxu0 %v788
        %1965 = vmatprep.subr.mxu0 %v801
        %1966 = vmatpush1.msra.mxu0 %v800
        %1967 = vmatprep.subr.mxu0 %v813
        %1968 = vmatpush1.msra.mxu0 %v812
        %1969 = vmatprep.subr.mxu0 %v825
        %1970 = vmatpush1.msra.mxu0 %v824
        %1971 = vmatprep.subr.mxu0 %v837
        %1972 = vmatpush1.msra.mxu0 %v836
        %1973 = vmatprep.subr.mxu0 %v849
        %1974 = vmatpush1.msra.mxu0 %v848
        %1975 = vmatprep.subr.mxu0 %v861
        %1976 = vmatpush1.msra.mxu0 %v860
        %1977 = vmatprep.subr.mxu0 %v873
        %1978 = vmatpush1.msra.mxu0 %v872
        %1979 = vmatprep.subr.mxu0 %v885
        %1980 = vmatpush1.msra.mxu0 %v884
        %1981 = vmatprep.subr.mxu0 %v897
        %1982 = vmatpush1.msra.mxu0 %v896
        %1983 = vmatprep.subr.mxu0 %v909
        %1984 = vmatpush1.msra.mxu0 %v908
        %1985 = vmatprep.subr.mxu0 %v921
        %1986 = vmatpush1.msra.mxu0 %v920
        %1987 = vmatprep.subr.mxu0 %v933
        %1988 = vmatpush1.msra.mxu0 %v932
        %1989 = vmatprep.subr.mxu0 %v945
        %1990 = vmatpush1.msra.mxu0 %v944
        %1991 = vmatprep.subr.mxu0 %v957
        %1992 = vmatpush1.msra.mxu0 %v956
        %1993 = vmatprep.subr.mxu0 %v969
        %1994 = vmatpush1.msra.mxu0 %v968
        %1995 = vmatprep.subr.mxu0 %v981
        %1996 = vmatpush1.msra.mxu0 %v980
        %1997 = vmatprep.mubr.f32.mxu0 %v217
        %1998 = vmatmul.mubr.f32.gmra.mrb[0].mxu0 %v216
        %v1999 = vpop.f32.mrb[0].mxu0
        %v2000 = vadd.f32 %v1929, %v1999
        %v2001 = vpop.f32.mrb[0].mxu0
        %v2002 = vadd.f32 %v1931, %v2001
        %2003 = vdwg.mxu0
        %2004 = vmatprep.subr.mxu0 %v993
        %2005 = vmatpush1.msra.mxu0 %v992
        %2006 = vmatprep.subr.mxu0 %v1005
        %2007 = vmatpush1.msra.mxu0 %v1004
        %2008 = vmatprep.subr.mxu0 %v1017
        %2009 = vmatpush1.msra.mxu0 %v1016
        %2010 = vmatprep.subr.mxu0 %v1029
        %2011 = vmatpush1.msra.mxu0 %v1028
        %2012 = vmatprep.subr.mxu0 %v1041
        %2013 = vmatpush1.msra.mxu0 %v1040
        %2014 = vmatprep.subr.mxu0 %v1053
        %2015 = vmatpush1.msra.mxu0 %v1052
        %2016 = vmatprep.subr.mxu0 %v1065
        %2017 = vmatpush1.msra.mxu0 %v1064
        %2018 = vmatprep.subr.mxu0 %v1077
        %2019 = vmatpush1.msra.mxu0 %v1076
        %2020 = vmatprep.subr.mxu0 %v1089
        %2021 = vmatpush1.msra.mxu0 %v1088
        %2022 = vmatprep.subr.mxu0 %v1101
        %2023 = vmatpush1.msra.mxu0 %v1100
        %2024 = vmatprep.subr.mxu0 %v1113
        %2025 = vmatpush1.msra.mxu0 %v1112
        %2026 = vmatprep.subr.mxu0 %v1125
        %2027 = vmatpush1.msra.mxu0 %v1124
        %2028 = vmatprep.subr.mxu0 %v1137
        %2029 = vmatpush1.msra.mxu0 %v1136
        %2030 = vmatprep.subr.mxu0 %v1149
        %2031 = vmatpush1.msra.mxu0 %v1148
        %2032 = vmatprep.subr.mxu0 %v1161
        %2033 = vmatpush1.msra.mxu0 %v1160
        %2034 = vmatprep.subr.mxu0 %v1173
        %2035 = vmatpush1.msra.mxu0 %v1172
        %2036 = vmatprep.subr.mxu0 %v1185
        %2037 = vmatpush1.msra.mxu0 %v1184
        %2038 = vmatprep.subr.mxu0 %v1197
        %2039 = vmatpush1.msra.mxu0 %v1196
        %2040 = vmatprep.subr.mxu0 %v1209
        %2041 = vmatpush1.msra.mxu0 %v1208
        %2042 = vmatprep.subr.mxu0 %v1221
        %2043 = vmatpush1.msra.mxu0 %v1220
        %2044 = vmatprep.subr.mxu0 %v1233
        %2045 = vmatpush1.msra.mxu0 %v1232
        %2046 = vmatprep.subr.mxu0 %v1245
        %2047 = vmatpush1.msra.mxu0 %v1244
        %2048 = vmatprep.subr.mxu0 %v1257
        %2049 = vmatpush1.msra.mxu0 %v1256
        %2050 = vmatprep.subr.mxu0 %v1269
        %2051 = vmatpush1.msra.mxu0 %v1268
        %2052 = vmatprep.subr.mxu0 %v1281
        %2053 = vmatpush1.msra.mxu0 %v1280
        %2054 = vmatprep.subr.mxu0 %v1293
        %2055 = vmatpush1.msra.mxu0 %v1292
        %2056 = vmatprep.subr.mxu0 %v1305
        %2057 = vmatpush1.msra.mxu0 %v1304
        %2058 = vmatprep.subr.mxu0 %v1317
        %2059 = vmatpush1.msra.mxu0 %v1316
        %2060 = vmatprep.subr.mxu0 %v1329
        %2061 = vmatpush1.msra.mxu0 %v1328
        %2062 = vmatprep.subr.mxu0 %v1341
        %2063 = vmatpush1.msra.mxu0 %v1340
        %2064 = vmatprep.subr.mxu0 %v1353
        %2065 = vmatpush1.msra.mxu0 %v1352
        %2066 = vmatprep.subr.mxu0 %v1365
        %2067 = vmatpush1.msra.mxu0 %v1364
        %2068 = vmatprep.mubr.f32.mxu0 %v219
        %2069 = vmatmul.mubr.f32.gmra.mrb[0].mxu0 %v218
        %v2070 = vpop.f32.mrb[0].mxu0
        %v2071 = vadd.f32 %v2000, %v2070
        %v2072 = vpop.f32.mrb[0].mxu0
        %v2073 = vadd.f32 %v2002, %v2072
        %2074 = vdwg.mxu0
        %2075 = vmatprep.subr.mxu0 %v227
        %2076 = vmatpush1.msra.mxu0 %v226
        %2077 = vmatprep.subr.mxu0 %v239
        %2078 = vmatpush1.msra.mxu0 %v238
        %2079 = vmatprep.subr.mxu0 %v251
        %2080 = vmatpush1.msra.mxu0 %v250
        %2081 = vmatprep.subr.mxu0 %v263
        %2082 = vmatpush1.msra.mxu0 %v262
        %2083 = vmatprep.subr.mxu0 %v275
        %2084 = vmatpush1.msra.mxu0 %v274
        %2085 = vmatprep.subr.mxu0 %v287
        %2086 = vmatpush1.msra.mxu0 %v286
        %2087 = vmatprep.subr.mxu0 %v299
        %2088 = vmatpush1.msra.mxu0 %v298
        %2089 = vmatprep.subr.mxu0 %v311
        %2090 = vmatpush1.msra.mxu0 %v310
        %2091 = vmatprep.subr.mxu0 %v323
        %2092 = vmatpush1.msra.mxu0 %v322
        %2093 = vmatprep.subr.mxu0 %v335
        %2094 = vmatpush1.msra.mxu0 %v334
        %2095 = vmatprep.subr.mxu0 %v347
        %2096 = vmatpush1.msra.mxu0 %v346
        %2097 = vmatprep.subr.mxu0 %v359
        %2098 = vmatpush1.msra.mxu0 %v358
        %2099 = vmatprep.subr.mxu0 %v371
        %2100 = vmatpush1.msra.mxu0 %v370
        %2101 = vmatprep.subr.mxu0 %v383
        %2102 = vmatpush1.msra.mxu0 %v382
        %2103 = vmatprep.subr.mxu0 %v395
        %2104 = vmatpush1.msra.mxu0 %v394
        %2105 = vmatprep.subr.mxu0 %v407
        %2106 = vmatpush1.msra.mxu0 %v406
        %2107 = vmatprep.subr.mxu0 %v419
        %2108 = vmatpush1.msra.mxu0 %v418
        %2109 = vmatprep.subr.mxu0 %v431
        %2110 = vmatpush1.msra.mxu0 %v430
        %2111 = vmatprep.subr.mxu0 %v443
        %2112 = vmatpush1.msra.mxu0 %v442
        %2113 = vmatprep.subr.mxu0 %v455
        %2114 = vmatpush1.msra.mxu0 %v454
        %2115 = vmatprep.subr.mxu0 %v467
        %2116 = vmatpush1.msra.mxu0 %v466
        %2117 = vmatprep.subr.mxu0 %v479
        %2118 = vmatpush1.msra.mxu0 %v478
        %2119 = vmatprep.subr.mxu0 %v491
        %2120 = vmatpush1.msra.mxu0 %v490
        %2121 = vmatprep.subr.mxu0 %v503
        %2122 = vmatpush1.msra.mxu0 %v502
        %2123 = vmatprep.subr.mxu0 %v515
        %2124 = vmatpush1.msra.mxu0 %v514
        %2125 = vmatprep.subr.mxu0 %v527
        %2126 = vmatpush1.msra.mxu0 %v526
        %2127 = vmatprep.subr.mxu0 %v539
        %2128 = vmatpush1.msra.mxu0 %v538
        %2129 = vmatprep.subr.mxu0 %v551
        %2130 = vmatpush1.msra.mxu0 %v550
        %2131 = vmatprep.subr.mxu0 %v563
        %2132 = vmatpush1.msra.mxu0 %v562
        %2133 = vmatprep.subr.mxu0 %v575
        %2134 = vmatpush1.msra.mxu0 %v574
        %2135 = vmatprep.subr.mxu0 %v587
        %2136 = vmatpush1.msra.mxu0 %v586
        %2137 = vmatprep.subr.mxu0 %v599
        %2138 = vmatpush1.msra.mxu0 %v598
        %2139 = vmatprep.mubr.f32.mxu0 %v215
        %2140 = vmatmul.mubr.f32.gmra.mrb[0].mxu0 %v214
        %v2141 = vpop.f32.mrb[0].mxu0
        %v2142 = vadd.f32 %v1403, %v2141
        %v2143 = vpop.f32.mrb[0].mxu0
        %v2144 = vadd.f32 %v1407, %v2143
        %2145 = vdwg.mxu0
        %2146 = vmatprep.subr.mxu0 %v611
        %2147 = vmatpush1.msra.mxu0 %v610
        %2148 = vmatprep.subr.mxu0 %v623
        %2149 = vmatpush1.msra.mxu0 %v622
        %2150 = vmatprep.subr.mxu0 %v635
        %2151 = vmatpush1.msra.mxu0 %v634
        %2152 = vmatprep.subr.mxu0 %v647
        %2153 = vmatpush1.msra.mxu0 %v646
        %2154 = vmatprep.subr.mxu0 %v659
        %2155 = vmatpush1.msra.mxu0 %v658
        %2156 = vmatprep.subr.mxu0 %v671
        %2157 = vmatpush1.msra.mxu0 %v670
        %2158 = vmatprep.subr.mxu0 %v683
        %2159 = vmatpush1.msra.mxu0 %v682
        %2160 = vmatprep.subr.mxu0 %v695
        %2161 = vmatpush1.msra.mxu0 %v694
        %2162 = vmatprep.subr.mxu0 %v707
        %2163 = vmatpush1.msra.mxu0 %v706
        %2164 = vmatprep.subr.mxu0 %v719
        %2165 = vmatpush1.msra.mxu0 %v718
        %2166 = vmatprep.subr.mxu0 %v731
        %2167 = vmatpush1.msra.mxu0 %v730
        %2168 = vmatprep.subr.mxu0 %v743
        %2169 = vmatpush1.msra.mxu0 %v742
        %2170 = vmatprep.subr.mxu0 %v755
        %2171 = vmatpush1.msra.mxu0 %v754
        %2172 = vmatprep.subr.mxu0 %v767
        %2173 = vmatpush1.msra.mxu0 %v766
        %2174 = vmatprep.subr.mxu0 %v779
        %2175 = vmatpush1.msra.mxu0 %v778
        %2176 = vmatprep.subr.mxu0 %v791
        %2177 = vmatpush1.msra.mxu0 %v790
        %2178 = vmatprep.subr.mxu0 %v803
        %2179 = vmatpush1.msra.mxu0 %v802
        %2180 = vmatprep.subr.mxu0 %v815
        %2181 = vmatpush1.msra.mxu0 %v814
        %2182 = vmatprep.subr.mxu0 %v827
        %2183 = vmatpush1.msra.mxu0 %v826
        %2184 = vmatprep.subr.mxu0 %v839
        %2185 = vmatpush1.msra.mxu0 %v838
        %2186 = vmatprep.subr.mxu0 %v851
        %2187 = vmatpush1.msra.mxu0 %v850
        %2188 = vmatprep.subr.mxu0 %v863
        %2189 = vmatpush1.msra.mxu0 %v862
        %2190 = vmatprep.subr.mxu0 %v875
        %2191 = vmatpush1.msra.mxu0 %v874
        %2192 = vmatprep.subr.mxu0 %v887
        %2193 = vmatpush1.msra.mxu0 %v886
        %2194 = vmatprep.subr.mxu0 %v899
        %2195 = vmatpush1.msra.mxu0 %v898
        %2196 = vmatprep.subr.mxu0 %v911
        %2197 = vmatpush1.msra.mxu0 %v910
        %2198 = vmatprep.subr.mxu0 %v923
        %2199 = vmatpush1.msra.mxu0 %v922
        %2200 = vmatprep.subr.mxu0 %v935
        %2201 = vmatpush1.msra.mxu0 %v934
        %2202 = vmatprep.subr.mxu0 %v947
        %2203 = vmatpush1.msra.mxu0 %v946
        %2204 = vmatprep.subr.mxu0 %v959
        %2205 = vmatpush1.msra.mxu0 %v958
        %2206 = vmatprep.subr.mxu0 %v971
        %2207 = vmatpush1.msra.mxu0 %v970
        %2208 = vmatprep.subr.mxu0 %v983
        %2209 = vmatpush1.msra.mxu0 %v982
        %2210 = vmatprep.mubr.f32.mxu0 %v217
        %2211 = vmatmul.mubr.f32.gmra.mrb[0].mxu0 %v216
        %v2212 = vpop.f32.mrb[0].mxu0
        %v2213 = vadd.f32 %v2142, %v2212
        %v2214 = vpop.f32.mrb[0].mxu0
        %v2215 = vadd.f32 %v2144, %v2214
        %2216 = vdwg.mxu0
        %2217 = vmatprep.subr.mxu0 %v995
        %2218 = vmatpush1.msra.mxu0 %v994
        %2219 = vmatprep.subr.mxu0 %v1007
        %2220 = vmatpush1.msra.mxu0 %v1006
        %2221 = vmatprep.subr.mxu0 %v1019
        %2222 = vmatpush1.msra.mxu0 %v1018
        %2223 = vmatprep.subr.mxu0 %v1031
        %2224 = vmatpush1.msra.mxu0 %v1030
        %2225 = vmatprep.subr.mxu0 %v1043
        %2226 = vmatpush1.msra.mxu0 %v1042
        %2227 = vmatprep.subr.mxu0 %v1055
        %2228 = vmatpush1.msra.mxu0 %v1054
        %2229 = vmatprep.subr.mxu0 %v1067
        %2230 = vmatpush1.msra.mxu0 %v1066
        %2231 = vmatprep.subr.mxu0 %v1079
        %2232 = vmatpush1.msra.mxu0 %v1078
        %2233 = vmatprep.subr.mxu0 %v1091
        %2234 = vmatpush1.msra.mxu0 %v1090
        %2235 = vmatprep.subr.mxu0 %v1103
        %2236 = vmatpush1.msra.mxu0 %v1102
        %2237 = vmatprep.subr.mxu0 %v1115
        %2238 = vmatpush1.msra.mxu0 %v1114
        %2239 = vmatprep.subr.mxu0 %v1127
        %2240 = vmatpush1.msra.mxu0 %v1126
        %2241 = vmatprep.subr.mxu0 %v1139
        %2242 = vmatpush1.msra.mxu0 %v1138
        %2243 = vmatprep.subr.mxu0 %v1151
        %2244 = vmatpush1.msra.mxu0 %v1150
        %2245 = vmatprep.subr.mxu0 %v1163
        %2246 = vmatpush1.msra.mxu0 %v1162
        %2247 = vmatprep.subr.mxu0 %v1175
        %2248 = vmatpush1.msra.mxu0 %v1174
        %2249 = vmatprep.subr.mxu0 %v1187
        %2250 = vmatpush1.msra.mxu0 %v1186
        %2251 = vmatprep.subr.mxu0 %v1199
        %2252 = vmatpush1.msra.mxu0 %v1198
        %2253 = vmatprep.subr.mxu0 %v1211
        %2254 = vmatpush1.msra.mxu0 %v1210
        %2255 = vmatprep.subr.mxu0 %v1223
        %2256 = vmatpush1.msra.mxu0 %v1222
        %2257 = vmatprep.subr.mxu0 %v1235
        %2258 = vmatpush1.msra.mxu0 %v1234
        %2259 = vmatprep.subr.mxu0 %v1247
        %2260 = vmatpush1.msra.mxu0 %v1246
        %2261 = vmatprep.subr.mxu0 %v1259
        %2262 = vmatpush1.msra.mxu0 %v1258
        %2263 = vmatprep.subr.mxu0 %v1271
        %2264 = vmatpush1.msra.mxu0 %v1270
        %2265 = vmatprep.subr.mxu0 %v1283
        %2266 = vmatpush1.msra.mxu0 %v1282
        %2267 = vmatprep.subr.mxu0 %v1295
        %2268 = vmatpush1.msra.mxu0 %v1294
        %2269 = vmatprep.subr.mxu0 %v1307
        %2270 = vmatpush1.msra.mxu0 %v1306
        %2271 = vmatprep.subr.mxu0 %v1319
        %2272 = vmatpush1.msra.mxu0 %v1318
        %2273 = vmatprep.subr.mxu0 %v1331
        %2274 = vmatpush1.msra.mxu0 %v1330
        %2275 = vmatprep.subr.mxu0 %v1343
        %2276 = vmatpush1.msra.mxu0 %v1342
        %2277 = vmatprep.subr.mxu0 %v1355
        %2278 = vmatpush1.msra.mxu0 %v1354
        %2279 = vmatprep.subr.mxu0 %v1367
        %2280 = vmatpush1.msra.mxu0 %v1366
        %2281 = vmatprep.mubr.f32.mxu0 %v219
        %2282 = vmatmul.mubr.f32.gmra.mrb[0].mxu0 %v218
        %v2283 = vpop.f32.mrb[0].mxu0
        %v2284 = vadd.f32 %v2213, %v2283
        %v2285 = vpop.f32.mrb[0].mxu0
        %v2286 = vadd.f32 %v2215, %v2285
        %2287 = vdwg.mxu0
        %2288 = vmatprep.subr.mxu0 %v229
        %2289 = vmatpush1.msra.mxu0 %v228
        %2290 = vmatprep.subr.mxu0 %v241
        %2291 = vmatpush1.msra.mxu0 %v240
        %2292 = vmatprep.subr.mxu0 %v253
        %2293 = vmatpush1.msra.mxu0 %v252
        %2294 = vmatprep.subr.mxu0 %v265
        %2295 = vmatpush1.msra.mxu0 %v264
        %2296 = vmatprep.subr.mxu0 %v277
        %2297 = vmatpush1.msra.mxu0 %v276
        %2298 = vmatprep.subr.mxu0 %v289
        %2299 = vmatpush1.msra.mxu0 %v288
        %2300 = vmatprep.subr.mxu0 %v301
        %2301 = vmatpush1.msra.mxu0 %v300
        %2302 = vmatprep.subr.mxu0 %v313
        %2303 = vmatpush1.msra.mxu0 %v312
        %2304 = vmatprep.subr.mxu0 %v325
        %2305 = vmatpush1.msra.mxu0 %v324
        %2306 = vmatprep.subr.mxu0 %v337
        %2307 = vmatpush1.msra.mxu0 %v336
        %2308 = vmatprep.subr.mxu0 %v349
        %2309 = vmatpush1.msra.mxu0 %v348
        %2310 = vmatprep.subr.mxu0 %v361
        %2311 = vmatpush1.msra.mxu0 %v360
        %2312 = vmatprep.subr.mxu0 %v373
        %2313 = vmatpush1.msra.mxu0 %v372
        %2314 = vmatprep.subr.mxu0 %v385
        %2315 = vmatpush1.msra.mxu0 %v384
        %2316 = vmatprep.subr.mxu0 %v397
        %2317 = vmatpush1.msra.mxu0 %v396
        %2318 = vmatprep.subr.mxu0 %v409
        %2319 = vmatpush1.msra.mxu0 %v408
        %2320 = vmatprep.subr.mxu0 %v421
        %2321 = vmatpush1.msra.mxu0 %v420
        %2322 = vmatprep.subr.mxu0 %v433
        %2323 = vmatpush1.msra.mxu0 %v432
        %2324 = vmatprep.subr.mxu0 %v445
        %2325 = vmatpush1.msra.mxu0 %v444
        %2326 = vmatprep.subr.mxu0 %v457
        %2327 = vmatpush1.msra.mxu0 %v456
        %2328 = vmatprep.subr.mxu0 %v469
        %2329 = vmatpush1.msra.mxu0 %v468
        %2330 = vmatprep.subr.mxu0 %v481
        %2331 = vmatpush1.msra.mxu0 %v480
        %2332 = vmatprep.subr.mxu0 %v493
        %2333 = vmatpush1.msra.mxu0 %v492
        %2334 = vmatprep.subr.mxu0 %v505
        %2335 = vmatpush1.msra.mxu0 %v504
        %2336 = vmatprep.subr.mxu0 %v517
        %2337 = vmatpush1.msra.mxu0 %v516
        %2338 = vmatprep.subr.mxu0 %v529
        %2339 = vmatpush1.msra.mxu0 %v528
        %2340 = vmatprep.subr.mxu0 %v541
        %2341 = vmatpush1.msra.mxu0 %v540
        %2342 = vmatprep.subr.mxu0 %v553
        %2343 = vmatpush1.msra.mxu0 %v552
        %2344 = vmatprep.subr.mxu0 %v565
        %2345 = vmatpush1.msra.mxu0 %v564
        %2346 = vmatprep.subr.mxu0 %v577
        %2347 = vmatpush1.msra.mxu0 %v576
        %2348 = vmatprep.subr.mxu0 %v589
        %2349 = vmatpush1.msra.mxu0 %v588
        %2350 = vmatprep.subr.mxu0 %v601
        %2351 = vmatpush1.msra.mxu0 %v600
        %2352 = vmatprep.mubr.f32.mxu0 %v215
        %2353 = vmatmul.mubr.f32.gmra.mrb[0].mxu0 %v214
        %v2354 = vpop.f32.mrb[0].mxu0
        %v2355 = vadd.f32 %v1411, %v2354
        %v2356 = vpop.f32.mrb[0].mxu0
        %v2357 = vadd.f32 %v1415, %v2356
        %2358 = vdwg.mxu0
        %2359 = vmatprep.subr.mxu0 %v613
        %2360 = vmatpush1.msra.mxu0 %v612
        %2361 = vmatprep.subr.mxu0 %v625
        %2362 = vmatpush1.msra.mxu0 %v624
        %2363 = vmatprep.subr.mxu0 %v637
        %2364 = vmatpush1.msra.mxu0 %v636
        %2365 = vmatprep.subr.mxu0 %v649
        %2366 = vmatpush1.msra.mxu0 %v648
        %2367 = vmatprep.subr.mxu0 %v661
        %2368 = vmatpush1.msra.mxu0 %v660
        %2369 = vmatprep.subr.mxu0 %v673
        %2370 = vmatpush1.msra.mxu0 %v672
        %2371 = vmatprep.subr.mxu0 %v685
        %2372 = vmatpush1.msra.mxu0 %v684
        %2373 = vmatprep.subr.mxu0 %v697
        %2374 = vmatpush1.msra.mxu0 %v696
        %2375 = vmatprep.subr.mxu0 %v709
        %2376 = vmatpush1.msra.mxu0 %v708
        %2377 = vmatprep.subr.mxu0 %v721
        %2378 = vmatpush1.msra.mxu0 %v720
        %2379 = vmatprep.subr.mxu0 %v733
        %2380 = vmatpush1.msra.mxu0 %v732
        %2381 = vmatprep.subr.mxu0 %v745
        %2382 = vmatpush1.msra.mxu0 %v744
        %2383 = vmatprep.subr.mxu0 %v757
        %2384 = vmatpush1.msra.mxu0 %v756
        %2385 = vmatprep.subr.mxu0 %v769
        %2386 = vmatpush1.msra.mxu0 %v768
        %2387 = vmatprep.subr.mxu0 %v781
        %2388 = vmatpush1.msra.mxu0 %v780
        %2389 = vmatprep.subr.mxu0 %v793
        %2390 = vmatpush1.msra.mxu0 %v792
        %2391 = vmatprep.subr.mxu0 %v805
        %2392 = vmatpush1.msra.mxu0 %v804
        %2393 = vmatprep.subr.mxu0 %v817
        %2394 = vmatpush1.msra.mxu0 %v816
        %2395 = vmatprep.subr.mxu0 %v829
        %2396 = vmatpush1.msra.mxu0 %v828
        %2397 = vmatprep.subr.mxu0 %v841
        %2398 = vmatpush1.msra.mxu0 %v840
        %2399 = vmatprep.subr.mxu0 %v853
        %2400 = vmatpush1.msra.mxu0 %v852
        %2401 = vmatprep.subr.mxu0 %v865
        %2402 = vmatpush1.msra.mxu0 %v864
        %2403 = vmatprep.subr.mxu0 %v877
        %2404 = vmatpush1.msra.mxu0 %v876
        %2405 = vmatprep.subr.mxu0 %v889
        %2406 = vmatpush1.msra.mxu0 %v888
        %2407 = vmatprep.subr.mxu0 %v901
        %2408 = vmatpush1.msra.mxu0 %v900
        %2409 = vmatprep.subr.mxu0 %v913
        %2410 = vmatpush1.msra.mxu0 %v912
        %2411 = vmatprep.subr.mxu0 %v925
        %2412 = vmatpush1.msra.mxu0 %v924
        %2413 = vmatprep.subr.mxu0 %v937
        %2414 = vmatpush1.msra.mxu0 %v936
        %2415 = vmatprep.subr.mxu0 %v949
        %2416 = vmatpush1.msra.mxu0 %v948
        %2417 = vmatprep.subr.mxu0 %v961
        %2418 = vmatpush1.msra.mxu0 %v960
        %2419 = vmatprep.subr.mxu0 %v973
        %2420 = vmatpush1.msra.mxu0 %v972
        %2421 = vmatprep.subr.mxu0 %v985
        %2422 = vmatpush1.msra.mxu0 %v984
        %2423 = vmatprep.mubr.f32.mxu0 %v217
        %2424 = vmatmul.mubr.f32.gmra.mrb[0].mxu0 %v216
        %v2425 = vpop.f32.mrb[0].mxu0
        %v2426 = vadd.f32 %v2355, %v2425
        %v2427 = vpop.f32.mrb[0].mxu0
        %v2428 = vadd.f32 %v2357, %v2427
        %2429 = vdwg.mxu0
        %2430 = vmatprep.subr.mxu0 %v997
        %2431 = vmatpush1.msra.mxu0 %v996
        %2432 = vmatprep.subr.mxu0 %v1009
        %2433 = vmatpush1.msra.mxu0 %v1008
        %2434 = vmatprep.subr.mxu0 %v1021
        %2435 = vmatpush1.msra.mxu0 %v1020
        %2436 = vmatprep.subr.mxu0 %v1033
        %2437 = vmatpush1.msra.mxu0 %v1032
        %2438 = vmatprep.subr.mxu0 %v1045
        %2439 = vmatpush1.msra.mxu0 %v1044
        %2440 = vmatprep.subr.mxu0 %v1057
        %2441 = vmatpush1.msra.mxu0 %v1056
        %2442 = vmatprep.subr.mxu0 %v1069
        %2443 = vmatpush1.msra.mxu0 %v1068
        %2444 = vmatprep.subr.mxu0 %v1081
        %2445 = vmatpush1.msra.mxu0 %v1080
        %2446 = vmatprep.subr.mxu0 %v1093
        %2447 = vmatpush1.msra.mxu0 %v1092
        %2448 = vmatprep.subr.mxu0 %v1105
        %2449 = vmatpush1.msra.mxu0 %v1104
        %2450 = vmatprep.subr.mxu0 %v1117
        %2451 = vmatpush1.msra.mxu0 %v1116
        %2452 = vmatprep.subr.mxu0 %v1129
        %2453 = vmatpush1.msra.mxu0 %v1128
        %2454 = vmatprep.subr.mxu0 %v1141
        %2455 = vmatpush1.msra.mxu0 %v1140
        %2456 = vmatprep.subr.mxu0 %v1153
        %2457 = vmatpush1.msra.mxu0 %v1152
        %2458 = vmatprep.subr.mxu0 %v1165
        %2459 = vmatpush1.msra.mxu0 %v1164
        %2460 = vmatprep.subr.mxu0 %v1177
        %2461 = vmatpush1.msra.mxu0 %v1176
        %2462 = vmatprep.subr.mxu0 %v1189
        %2463 = vmatpush1.msra.mxu0 %v1188
        %2464 = vmatprep.subr.mxu0 %v1201
        %2465 = vmatpush1.msra.mxu0 %v1200
        %2466 = vmatprep.subr.mxu0 %v1213
        %2467 = vmatpush1.msra.mxu0 %v1212
        %2468 = vmatprep.subr.mxu0 %v1225
        %2469 = vmatpush1.msra.mxu0 %v1224
        %2470 = vmatprep.subr.mxu0 %v1237
        %2471 = vmatpush1.msra.mxu0 %v1236
        %2472 = vmatprep.subr.mxu0 %v1249
        %2473 = vmatpush1.msra.mxu0 %v1248
        %2474 = vmatprep.subr.mxu0 %v1261
        %2475 = vmatpush1.msra.mxu0 %v1260
        %2476 = vmatprep.subr.mxu0 %v1273
        %2477 = vmatpush1.msra.mxu0 %v1272
        %2478 = vmatprep.subr.mxu0 %v1285
        %2479 = vmatpush1.msra.mxu0 %v1284
        %2480 = vmatprep.subr.mxu0 %v1297
        %2481 = vmatpush1.msra.mxu0 %v1296
        %2482 = vmatprep.subr.mxu0 %v1309
        %2483 = vmatpush1.msra.mxu0 %v1308
        %2484 = vmatprep.subr.mxu0 %v1321
        %2485 = vmatpush1.msra.mxu0 %v1320
        %2486 = vmatprep.subr.mxu0 %v1333
        %2487 = vmatpush1.msra.mxu0 %v1332
        %2488 = vmatprep.subr.mxu0 %v1345
        %2489 = vmatpush1.msra.mxu0 %v1344
        %2490 = vmatprep.subr.mxu0 %v1357
        %2491 = vmatpush1.msra.mxu0 %v1356
        %2492 = vmatprep.subr.mxu0 %v1369
        %2493 = vmatpush1.msra.mxu0 %v1368
        %2494 = vmatprep.mubr.f32.mxu0 %v219
        %2495 = vmatmul.mubr.f32.gmra.mrb[0].mxu0 %v218
        %v2496 = vpop.f32.mrb[0].mxu0
        %v2497 = vadd.f32 %v2426, %v2496
        %v2498 = vpop.f32.mrb[0].mxu0
        %v2499 = vadd.f32 %v2428, %v2498
        %2500 = vdwg.mxu0
        %2501 = vmatprep.subr.mxu0 %v231
        %2502 = vmatpush1.msra.mxu0 %v230
        %2503 = vmatprep.subr.mxu0 %v243
        %2504 = vmatpush1.msra.mxu0 %v242
        %2505 = vmatprep.subr.mxu0 %v255
        %2506 = vmatpush1.msra.mxu0 %v254
        %2507 = vmatprep.subr.mxu0 %v267
        %2508 = vmatpush1.msra.mxu0 %v266
        %2509 = vmatprep.subr.mxu0 %v279
        %2510 = vmatpush1.msra.mxu0 %v278
        %2511 = vmatprep.subr.mxu0 %v291
        %2512 = vmatpush1.msra.mxu0 %v290
        %2513 = vmatprep.subr.mxu0 %v303
        %2514 = vmatpush1.msra.mxu0 %v302
        %2515 = vmatprep.subr.mxu0 %v315
        %2516 = vmatpush1.msra.mxu0 %v314
        %2517 = vmatprep.subr.mxu0 %v327
        %2518 = vmatpush1.msra.mxu0 %v326
        %2519 = vmatprep.subr.mxu0 %v339
        %2520 = vmatpush1.msra.mxu0 %v338
        %2521 = vmatprep.subr.mxu0 %v351
        %2522 = vmatpush1.msra.mxu0 %v350
        %2523 = vmatprep.subr.mxu0 %v363
        %2524 = vmatpush1.msra.mxu0 %v362
        %2525 = vmatprep.subr.mxu0 %v375
        %2526 = vmatpush1.msra.mxu0 %v374
        %2527 = vmatprep.subr.mxu0 %v387
        %2528 = vmatpush1.msra.mxu0 %v386
        %2529 = vmatprep.subr.mxu0 %v399
        %2530 = vmatpush1.msra.mxu0 %v398
        %2531 = vmatprep.subr.mxu0 %v411
        %2532 = vmatpush1.msra.mxu0 %v410
        %2533 = vmatprep.subr.mxu0 %v423
        %2534 = vmatpush1.msra.mxu0 %v422
        %2535 = vmatprep.subr.mxu0 %v435
        %2536 = vmatpush1.msra.mxu0 %v434
        %2537 = vmatprep.subr.mxu0 %v447
        %2538 = vmatpush1.msra.mxu0 %v446
        %2539 = vmatprep.subr.mxu0 %v459
        %2540 = vmatpush1.msra.mxu0 %v458
        %2541 = vmatprep.subr.mxu0 %v471
        %2542 = vmatpush1.msra.mxu0 %v470
        %2543 = vmatprep.subr.mxu0 %v483
        %2544 = vmatpush1.msra.mxu0 %v482
        %2545 = vmatprep.subr.mxu0 %v495
        %2546 = vmatpush1.msra.mxu0 %v494
        %2547 = vmatprep.subr.mxu0 %v507
        %2548 = vmatpush1.msra.mxu0 %v506
        %2549 = vmatprep.subr.mxu0 %v519
        %2550 = vmatpush1.msra.mxu0 %v518
        %2551 = vmatprep.subr.mxu0 %v531
        %2552 = vmatpush1.msra.mxu0 %v530
        %2553 = vmatprep.subr.mxu0 %v543
        %2554 = vmatpush1.msra.mxu0 %v542
        %2555 = vmatprep.subr.mxu0 %v555
        %2556 = vmatpush1.msra.mxu0 %v554
        %2557 = vmatprep.subr.mxu0 %v567
        %2558 = vmatpush1.msra.mxu0 %v566
        %2559 = vmatprep.subr.mxu0 %v579
        %2560 = vmatpush1.msra.mxu0 %v578
        %2561 = vmatprep.subr.mxu0 %v591
        %2562 = vmatpush1.msra.mxu0 %v590
        %2563 = vmatprep.subr.mxu0 %v603
        %2564 = vmatpush1.msra.mxu0 %v602
        %2565 = vmatprep.mubr.f32.mxu0 %v215
        %2566 = vmatmul.mubr.f32.gmra.mrb[0].mxu0 %v214
        %v2567 = vpop.f32.mrb[0].mxu0
        %v2568 = vadd.f32 %v1419, %v2567
        %v2569 = vpop.f32.mrb[0].mxu0
        %v2570 = vadd.f32 %v1423, %v2569
        %2571 = vdwg.mxu0
        %2572 = vmatprep.subr.mxu0 %v615
        %2573 = vmatpush1.msra.mxu0 %v614
        %2574 = vmatprep.subr.mxu0 %v627
        %2575 = vmatpush1.msra.mxu0 %v626
        %2576 = vmatprep.subr.mxu0 %v639
        %2577 = vmatpush1.msra.mxu0 %v638
        %2578 = vmatprep.subr.mxu0 %v651
        %2579 = vmatpush1.msra.mxu0 %v650
        %2580 = vmatprep.subr.mxu0 %v663
        %2581 = vmatpush1.msra.mxu0 %v662
        %2582 = vmatprep.subr.mxu0 %v675
        %2583 = vmatpush1.msra.mxu0 %v674
        %2584 = vmatprep.subr.mxu0 %v687
        %2585 = vmatpush1.msra.mxu0 %v686
        %2586 = vmatprep.subr.mxu0 %v699
        %2587 = vmatpush1.msra.mxu0 %v698
        %2588 = vmatprep.subr.mxu0 %v711
        %2589 = vmatpush1.msra.mxu0 %v710
        %2590 = vmatprep.subr.mxu0 %v723
        %2591 = vmatpush1.msra.mxu0 %v722
        %2592 = vmatprep.subr.mxu0 %v735
        %2593 = vmatpush1.msra.mxu0 %v734
        %2594 = vmatprep.subr.mxu0 %v747
        %2595 = vmatpush1.msra.mxu0 %v746
        %2596 = vmatprep.subr.mxu0 %v759
        %2597 = vmatpush1.msra.mxu0 %v758
        %2598 = vmatprep.subr.mxu0 %v771
        %2599 = vmatpush1.msra.mxu0 %v770
        %2600 = vmatprep.subr.mxu0 %v783
        %2601 = vmatpush1.msra.mxu0 %v782
        %2602 = vmatprep.subr.mxu0 %v795
        %2603 = vmatpush1.msra.mxu0 %v794
        %2604 = vmatprep.subr.mxu0 %v807
        %2605 = vmatpush1.msra.mxu0 %v806
        %2606 = vmatprep.subr.mxu0 %v819
        %2607 = vmatpush1.msra.mxu0 %v818
        %2608 = vmatprep.subr.mxu0 %v831
        %2609 = vmatpush1.msra.mxu0 %v830
        %2610 = vmatprep.subr.mxu0 %v843
        %2611 = vmatpush1.msra.mxu0 %v842
        %2612 = vmatprep.subr.mxu0 %v855
        %2613 = vmatpush1.msra.mxu0 %v854
        %2614 = vmatprep.subr.mxu0 %v867
        %2615 = vmatpush1.msra.mxu0 %v866
        %2616 = vmatprep.subr.mxu0 %v879
        %2617 = vmatpush1.msra.mxu0 %v878
        %2618 = vmatprep.subr.mxu0 %v891
        %2619 = vmatpush1.msra.mxu0 %v890
        %2620 = vmatprep.subr.mxu0 %v903
        %2621 = vmatpush1.msra.mxu0 %v902
        %2622 = vmatprep.subr.mxu0 %v915
        %2623 = vmatpush1.msra.mxu0 %v914
        %2624 = vmatprep.subr.mxu0 %v927
        %2625 = vmatpush1.msra.mxu0 %v926
        %2626 = vmatprep.subr.mxu0 %v939
        %2627 = vmatpush1.msra.mxu0 %v938
        %2628 = vmatprep.subr.mxu0 %v951
        %2629 = vmatpush1.msra.mxu0 %v950
        %2630 = vmatprep.subr.mxu0 %v963
        %2631 = vmatpush1.msra.mxu0 %v962
        %2632 = vmatprep.subr.mxu0 %v975
        %2633 = vmatpush1.msra.mxu0 %v974
        %2634 = vmatprep.subr.mxu0 %v987
        %2635 = vmatpush1.msra.mxu0 %v986
        %2636 = vmatprep.mubr.f32.mxu0 %v217
        %2637 = vmatmul.mubr.f32.gmra.mrb[0].mxu0 %v216
        %v2638 = vpop.f32.mrb[0].mxu0
        %v2639 = vadd.f32 %v2568, %v2638
        %v2640 = vpop.f32.mrb[0].mxu0
        %v2641 = vadd.f32 %v2570, %v2640
        %2642 = vdwg.mxu0
        %2643 = vmatprep.subr.mxu0 %v999
        %2644 = vmatpush1.msra.mxu0 %v998
        %2645 = vmatprep.subr.mxu0 %v1011
        %2646 = vmatpush1.msra.mxu0 %v1010
        %2647 = vmatprep.subr.mxu0 %v1023
        %2648 = vmatpush1.msra.mxu0 %v1022
        %2649 = vmatprep.subr.mxu0 %v1035
        %2650 = vmatpush1.msra.mxu0 %v1034
        %2651 = vmatprep.subr.mxu0 %v1047
        %2652 = vmatpush1.msra.mxu0 %v1046
        %2653 = vmatprep.subr.mxu0 %v1059
        %2654 = vmatpush1.msra.mxu0 %v1058
        %2655 = vmatprep.subr.mxu0 %v1071
        %2656 = vmatpush1.msra.mxu0 %v1070
        %2657 = vmatprep.subr.mxu0 %v1083
        %2658 = vmatpush1.msra.mxu0 %v1082
        %2659 = vmatprep.subr.mxu0 %v1095
        %2660 = vmatpush1.msra.mxu0 %v1094
        %2661 = vmatprep.subr.mxu0 %v1107
        %2662 = vmatpush1.msra.mxu0 %v1106
        %2663 = vmatprep.subr.mxu0 %v1119
        %2664 = vmatpush1.msra.mxu0 %v1118
        %2665 = vmatprep.subr.mxu0 %v1131
        %2666 = vmatpush1.msra.mxu0 %v1130
        %2667 = vmatprep.subr.mxu0 %v1143
        %2668 = vmatpush1.msra.mxu0 %v1142
        %2669 = vmatprep.subr.mxu0 %v1155
        %2670 = vmatpush1.msra.mxu0 %v1154
        %2671 = vmatprep.subr.mxu0 %v1167
        %2672 = vmatpush1.msra.mxu0 %v1166
        %2673 = vmatprep.subr.mxu0 %v1179
        %2674 = vmatpush1.msra.mxu0 %v1178
        %2675 = vmatprep.subr.mxu0 %v1191
        %2676 = vmatpush1.msra.mxu0 %v1190
        %2677 = vmatprep.subr.mxu0 %v1203
        %2678 = vmatpush1.msra.mxu0 %v1202
        %2679 = vmatprep.subr.mxu0 %v1215
        %2680 = vmatpush1.msra.mxu0 %v1214
        %2681 = vmatprep.subr.mxu0 %v1227
        %2682 = vmatpush1.msra.mxu0 %v1226
        %2683 = vmatprep.subr.mxu0 %v1239
        %2684 = vmatpush1.msra.mxu0 %v1238
        %2685 = vmatprep.subr.mxu0 %v1251
        %2686 = vmatpush1.msra.mxu0 %v1250
        %2687 = vmatprep.subr.mxu0 %v1263
        %2688 = vmatpush1.msra.mxu0 %v1262
        %2689 = vmatprep.subr.mxu0 %v1275
        %2690 = vmatpush1.msra.mxu0 %v1274
        %2691 = vmatprep.subr.mxu0 %v1287
        %2692 = vmatpush1.msra.mxu0 %v1286
        %2693 = vmatprep.subr.mxu0 %v1299
        %2694 = vmatpush1.msra.mxu0 %v1298
        %2695 = vmatprep.subr.mxu0 %v1311
        %2696 = vmatpush1.msra.mxu0 %v1310
        %2697 = vmatprep.subr.mxu0 %v1323
        %2698 = vmatpush1.msra.mxu0 %v1322
        %2699 = vmatprep.subr.mxu0 %v1335
        %2700 = vmatpush1.msra.mxu0 %v1334
        %2701 = vmatprep.subr.mxu0 %v1347
        %2702 = vmatpush1.msra.mxu0 %v1346
        %2703 = vmatprep.subr.mxu0 %v1359
        %2704 = vmatpush1.msra.mxu0 %v1358
        %2705 = vmatprep.subr.mxu0 %v1371
        %2706 = vmatpush1.msra.mxu0 %v1370
        %2707 = vmatprep.mubr.f32.mxu0 %v219
        %2708 = vmatmul.mubr.f32.gmra.mrb[0].mxu0 %v218
        %v2709 = vpop.f32.mrb[0].mxu0
        %v2710 = vadd.f32 %v2639, %v2709
        %v2711 = vpop.f32.mrb[0].mxu0
        %v2712 = vadd.f32 %v2641, %v2711
        %2713 = vdwg.mxu0
        %v2714 = vmax.f32 %v1645, 0.0
        %v2715 = vmax.f32 %v1647, 0.0
        %v2716 = vmax.f32 %v1858, 0.0
        %v2717 = vmax.f32 %v1860, 0.0
        %v2718 = vmax.f32 %v2071, 0.0
        %v2719 = vmax.f32 %v2073, 0.0
        %v2720 = vxor.u32 %v2284, 2147483648
        %v2721 = vxor.u32 %v2286, 2147483648
        %v2722 = vxor.u32 %v2497, 2147483648
        %v2723 = vxor.u32 %v2499, 2147483648
        %v2724 = vxor.u32 %v2710, 2147483648
        %v2725 = vxor.u32 %v2712, 2147483648
        %v2726 = vmul.f32 %v2720, 1.442695
        %v2727 = vpow.pop %v2726
        %v2728 = vmul.f32 %v2721, 1.442695
        %v2729 = vpow.pop %v2728
        %v2730 = vmul.f32 %v2722, 1.442695
        %v2731 = vpow.pop %v2730
        %v2732 = vmul.f32 %v2723, 1.442695
        %v2733 = vpow.pop %v2732
        %v2734 = vmul.f32 %v2724, 1.442695
        %v2735 = vpow.pop %v2734
        %v2736 = vmul.f32 %v2725, 1.442695
        %v2737 = vpow.pop %v2736
        %v2738 = vadd.f32 %v2727, 1.0
        %v2739 = vadd.f32 %v2729, 1.0
        %v2740 = vadd.f32 %v2731, 1.0
        %v2741 = vadd.f32 %v2733, 1.0
        %v2742 = vadd.f32 %v2735, 1.0
        %v2743 = vadd.f32 %v2737, 1.0
        %v2744 = vrcp.pop %v2738
        %v2745 = vmul.f32 1.0, %v2744
        %v2746 = vrcp.pop %v2739
        %v2747 = vmul.f32 1.0, %v2746
        %v2748 = vrcp.pop %v2740
        %v2749 = vmul.f32 1.0, %v2748
        %v2750 = vrcp.pop %v2741
        %v2751 = vmul.f32 1.0, %v2750
        %v2752 = vrcp.pop %v2742
        %v2753 = vmul.f32 1.0, %v2752
        %v2754 = vrcp.pop %v2743
        %v2755 = vmul.f32 1.0, %v2754
        %v2756 = vsub.f32 %v2714, %v214
        %v2757 = vsub.f32 %v2715, %v215
        %v2758 = vsub.f32 %v2716, %v216
        %v2759 = vsub.f32 %v2717, %v217
        %v2760 = vsub.f32 %v2718, %v218
        %v2761 = vsub.f32 %v2719, %v219
        %v2762 = vmul.f32 %v2745, %v2756
        %v2763 = vmul.f32 %v2747, %v2757
        %v2764 = vmul.f32 %v2749, %v2758
        %v2765 = vmul.f32 %v2751, %v2759
        %v2766 = vmul.f32 %v2753, %v2760
        %v2767 = vmul.f32 %v2755, %v2761
        %v2768 = vadd.f32 %v2762, %v214
        %v2769 = vadd.f32 %v2763, %v215
        %v2770 = vadd.f32 %v2764, %v216
        %v2771 = vadd.f32 %v2765, %v217
        %v2772 = vadd.f32 %v2766, %v218
        %v2773 = vadd.f32 %v2767, %v219
        %2774 = vst [vmem:[%s213] sm:$0xff] %v2768
        %2775 = vst [vmem:[%s213 + $0x8] sm:$0xff] %v2769
        %2776 = vst [vmem:[%s213 + $0x10] sm:$0xff] %v2770
        %2777 = vst [vmem:[%s213 + $0x18] sm:$0xff] %v2771
        %2778 = vst [vmem:[%s213 + $0x20] sm:$0xff] %v2772
        %2779 = vst [vmem:[%s213 + $0x28] sm:$0xff] %v2773
        %s2780 = sand.u32 %s97, 1
        %s2781 = scalar_lea.sflag [#allocation4], %s2780
        %s2782 = sand.u32 %s97, 1
        %s2783 = smul.addr %s2782, 48
        %s2784 = scalar_lea.vmem [#allocation8], %s2783
        // Predicated region
        $region45: #{tpu_custom_call.1} parent=31 // pred_check
          %p2785 = pneg %p107
        $region46: #{tpu_custom_call.1} parent=31 // pred_check_branch
          %2787 = sbr.rel (%p2785) target = $region48
        $region47: #{tpu_custom_call.1} parent=31 // pred_region
          %s2789 = ssub.s32 768, 768
          %2790 = vsyncadd %s2781, %s2789
          %s2791 = smul.addr %s21, 6
          %s2792 = smul.addr %s2791, 128
          %s2793 = scalar_lea.hbm %s3, %s2792
          %s2795 = sshll.u32 %s2784, 4
          %s2796 = int_to_ptr.vmem [resolvable:$true] %s2795
          %2798 = dma.vmem_to_hbm [thread:$0]  %s2796, 768, %s2793, %s2781
        $region48: #{tpu_custom_call.1} parent=31 // pred_fallthru
          _
      $region32: #{tpu_custom_call.1} parent=5 // pred_fallthru
        _
      %p2799 = scmp.le.s32.totalorder 2, %s16
      // Predicated region
      $region49: #{tpu_custom_call.1} parent=5 // pred_check
        %p2800 = pneg %p2799
      $region50: #{tpu_custom_call.1} parent=5 // pred_check_branch
        %2802 = sbr.rel (%p2800) target = $region52
      $region51: #{tpu_custom_call.1} parent=5 // pred_region
        %s2803 = ssub.s32 %s16, 2
        // Predicated region
        $region53: #{tpu_custom_call.1} parent=51 // pred_check
          %p2804 = pneg %p113
        $region54: #{tpu_custom_call.1} parent=51 // pred_check_branch
          %2806 = sbr.rel (%p2804) target = $region56
        $region55: #{tpu_custom_call.1} parent=51 // pred_region
          %s2807 = sand.u32 %s98, 1
          %s2808 = scalar_lea.sflag [#allocation4], %s2807
          %s2809 = sand.u32 %s98, 1
          %s2810 = smul.addr %s2809, 48
          %s2811 = scalar_lea.vmem [#allocation8], %s2810
          %2812 = dma.done %s2808, 768
        $region56: #{tpu_custom_call.1} parent=51 // pred_fallthru
          _
      $region52: #{tpu_custom_call.1} parent=5 // pred_fallthru
        _
    $region6: #{tpu_custom_call.1} parent=1 // loop_footer
      %s20 = sadd.s32 1, %s16
    $region7: #{tpu_custom_call.1} parent=1 // loop_footer_branch
      %15 = sbr.rel target = $region3
    $region8: #{tpu_custom_call.1} parent=1 // loop_exit
      _
    %2813 = vsyncpa [#allocation3], 1
    %s2814 = scalar_lea.sflag [#allocation3], 1
    %2815 = vsyncpa %s2814, 1
    %2816 = vsyncpa [#allocation6], 1
    %2817 = vsyncpa [#allocation4], 1
    %s2818 = scalar_lea.sflag [#allocation4], 1
    %2819 = vsyncpa %s2818, 1

</llo_original>
